<compile_context>
chip_gen: v5e
topology: v5e:2x2
jax: 0.10.0
libtpu: 0.0.40
codegen_flags: <defaults>
</compile_context>

<pallas_src>
import functools
import math

import jax
import jax.numpy as jnp
from jax import lax
from jax.experimental import pallas as pl
from jax.experimental.pallas import tpu as pltpu


_VMEM_LIMIT = 32 * 1024 * 1024  # fits v5e/v6e/v7x scoped+physical budgets


# ----------------------------- tiling helper --------------------------------

def _pick_tile(dim, desired, base):
    """Largest block <= desired that is a multiple of `base` and divides `dim`,
    or the full dim when dim <= desired (or no such divisor exists)."""
    if dim <= desired:
        return dim
    t = (desired // base) * base
    while t >= base:
        if dim % t == 0:
            return t
        t -= base
    return dim


# ----------------------------- Pallas kernels -------------------------------

def _ln_proj_kernel(x_ref, g_ref, bln_ref, w_ref, b_ref, *out_refs, eps, out_dims):
    """y = LayerNorm(x) @ W + b (torch-style unbiased std, a*(x-m)/(std+eps)+b),
    split along columns into len(out_refs) bf16 outputs. bf16 MXU operands,
    f32 accumulate, LN math in f32."""
    x = x_ref[...].astype(jnp.float32)                          # (tm, D)
    d = x.shape[-1]
    mean = jnp.mean(x, axis=-1, keepdims=True)
    xc = x - mean
    var = jnp.sum(xc * xc, axis=-1, keepdims=True) / (d - 1)    # unbiased
    inv = pl.reciprocal(jnp.sqrt(var) + eps, approx=False)      # EUP, not VALU divide
    ln = (g_ref[...] * xc * inv + bln_ref[...]).astype(jnp.bfloat16)
    y = jnp.dot(ln, w_ref[...], preferred_element_type=jnp.float32) + b_ref[...]
    off = 0
    for o_ref, n in zip(out_refs, out_dims):
        o_ref[...] = y[:, off:off + n].astype(o_ref.dtype)
        off += n


def _proj_kernel(x_ref, w_ref, b_ref, *out_refs, out_dims):
    """y = x @ W + b, split along columns into len(out_refs) bf16 outputs."""
    x = x_ref[...].astype(jnp.bfloat16)
    y = jnp.dot(x, w_ref[...], preferred_element_type=jnp.float32) + b_ref[...]
    off = 0
    for o_ref, n in zip(out_refs, out_dims):
        o_ref[...] = y[:, off:off + n].astype(o_ref.dtype)
        off += n


def _attn_kernel(q_ref, k_ref, v_ref, m_ref, wo_ref, bo_ref, res_ref, o_ref,
                 m_sc, l_sc, acc_sc, *, n_heads, dk, scale):
    """Flash-style multi-head attention for one (batch, q-tile, kv-tile) step,
    with the output projection (Wo, bo) and residual add fused into the epilogue.

    q_ref  : (1, tq,  D) bf16      k_ref/v_ref : (1, tkv, D) bf16
    m_ref  : (1, tq|1, tkv) bf16   (1.0 keep, 0.0 masked)
    wo_ref : (D, D) bf16,  bo_ref : (1, D) f32,  res_ref : (1, tq, D) f32
    o_ref  : (1, tq, D) f32
    scratch: m_sc/l_sc (H, tq, 1) f32, acc_sc (H, tq, dk) f32
    """
    ki = pl.program_id(2)

    @pl.when(ki == 0)
    def _():
        m_sc[...] = jnp.full(m_sc.shape, -jnp.inf, jnp.float32)
        l_sc[...] = jnp.zeros(l_sc.shape, jnp.float32)
        acc_sc[...] = jnp.zeros(acc_sc.shape, jnp.float32)

    q = q_ref[0]                                                # (tq,  D) bf16
    k = k_ref[0]                                                # (tkv, D) bf16
    v = v_ref[0]                                                # (tkv, D) bf16
    mask = m_ref[0]                                             # (tq|1, tkv)

    for h in range(n_heads):
        sl = slice(h * dk, (h + 1) * dk)
        # q_h @ k_h^T without an explicit XLU transpose (contract last dims).
        s = lax.dot_general(q[:, sl], k[:, sl],
                            dimension_numbers=(((1,), (1,)), ((), ())),
                            preferred_element_type=jnp.float32) * scale
        s = jnp.where(mask == 0, jnp.float32(-1e9), s)          # masked_fill(mask==0)
        m_prev = m_sc[h]                                        # (tq, 1)
        m_new = jnp.maximum(m_prev, jnp.max(s, axis=-1, keepdims=True))
        alpha = jnp.exp(m_prev - m_new)
        p = jnp.exp(s - m_new)
        l_sc[h] = alpha * l_sc[h] + jnp.sum(p, axis=-1, keepdims=True)
        pv = jnp.dot(p.astype(jnp.bfloat16), v[:, sl],
                     preferred_element_type=jnp.float32)
        acc_sc[h] = alpha * acc_sc[h] + pv
        m_sc[h] = m_new

    @pl.when(ki == pl.num_programs(2) - 1)
    def _():
        parts = [acc_sc[h] * pl.reciprocal(l_sc[h], approx=False)
                 for h in range(n_heads)]
        ctx = jnp.concatenate(parts, axis=-1).astype(jnp.bfloat16)  # (tq, D)
        y = jnp.dot(ctx, wo_ref[...], preferred_element_type=jnp.float32) + bo_ref[...]
        o_ref[0] = (y + res_ref[0]).astype(o_ref.dtype)


def _ffn_kernel(x_ref, g_ref, bln_ref, w1_ref, b1_ref, w2_ref, b2_ref,
                o_ref, ln_ref, acc_ref, *, eps):
    """out = x + relu(LayerNorm(x) @ W1 + b1) @ W2 + b2, K-looped over d_ff.
    LN cached once per row tile (bf16 scratch = MXU operand form)."""
    kk = pl.program_id(1)

    @pl.when(kk == 0)
    def _():
        x = x_ref[...].astype(jnp.float32)
        d = x.shape[-1]
        mean = jnp.mean(x, axis=-1, keepdims=True)
        xc = x - mean
        var = jnp.sum(xc * xc, axis=-1, keepdims=True) / (d - 1)
        inv = pl.reciprocal(jnp.sqrt(var) + eps, approx=False)
        ln_ref[...] = (g_ref[...] * xc * inv + bln_ref[...]).astype(ln_ref.dtype)
        acc_ref[...] = jnp.zeros(acc_ref.shape, acc_ref.dtype)

    h = jnp.dot(ln_ref[...], w1_ref[...], preferred_element_type=jnp.float32)
    h = jnp.maximum(h + b1_ref[...], 0.0).astype(jnp.bfloat16)
    acc_ref[...] += jnp.dot(h, w2_ref[...], preferred_element_type=jnp.float32)

    @pl.when(kk == pl.num_programs(1) - 1)
    def _():
        o_ref[...] = (x_ref[...] + acc_ref[...] + b2_ref[...]).astype(o_ref.dtype)


# ----------------------------- wrappers --------------------------------------

def ln_proj(x2, g, b_ln, w, b, out_dims, *, eps=1e-6, tm=128):
    """x2: (M, D) f32. Returns LayerNorm(x2) @ w + b split by columns into
    len(out_dims) bf16 arrays of shapes (M, out_dims[i])."""
    M, D = x2.shape
    N = w.shape[-1]
    tm = _pick_tile(M, tm, 16)
    out_shape = tuple(jax.ShapeDtypeStruct((M, n), jnp.bfloat16) for n in out_dims)
    out_specs = tuple(pl.BlockSpec((tm, n), lambda i: (i, 0)) for n in out_dims)
    out = pl.pallas_call(
        functools.partial(_ln_proj_kernel, eps=eps, out_dims=tuple(out_dims)),
        out_shape=out_shape,
        grid=(M // tm,),
        in_specs=[
            pl.BlockSpec((tm, D), lambda i: (i, 0)),
            pl.BlockSpec((1, D), lambda i: (0, 0)),
            pl.BlockSpec((1, D), lambda i: (0, 0)),
            pl.BlockSpec((D, N), lambda i: (0, 0)),
            pl.BlockSpec((1, N), lambda i: (0, 0)),
        ],
        out_specs=out_specs,
        compiler_params=pltpu.CompilerParams(
            dimension_semantics=("parallel",),
            vmem_limit_bytes=_VMEM_LIMIT),
        cost_estimate=pl.CostEstimate(
            flops=2 * M * N * D, transcendentals=0,
            bytes_accessed=4 * M * D + 2 * (D * N + M * N)),
    )(x2, g, b_ln, w, b)
    if not isinstance(out, (tuple, list)):
        out = (out,)
    return tuple(out)


def proj_split(x2, w, b, out_dims, *, tm=128):
    """x2: (M, D) f32. Returns x2 @ w + b split by columns into bf16 arrays."""
    M, D = x2.shape
    N = w.shape[-1]
    tm = _pick_tile(M, tm, 16)
    out_shape = tuple(jax.ShapeDtypeStruct((M, n), jnp.bfloat16) for n in out_dims)
    out_specs = tuple(pl.BlockSpec((tm, n), lambda i: (i, 0)) for n in out_dims)
    out = pl.pallas_call(
        functools.partial(_proj_kernel, out_dims=tuple(out_dims)),
        out_shape=out_shape,
        grid=(M // tm,),
        in_specs=[
            pl.BlockSpec((tm, D), lambda i: (i, 0)),
            pl.BlockSpec((D, N), lambda i: (0, 0)),
            pl.BlockSpec((1, N), lambda i: (0, 0)),
        ],
        out_specs=out_specs,
        compiler_params=pltpu.CompilerParams(
            dimension_semantics=("parallel",),
            vmem_limit_bytes=_VMEM_LIMIT),
        cost_estimate=pl.CostEstimate(
            flops=2 * M * N * D, transcendentals=0,
            bytes_accessed=4 * M * D + 2 * (D * N + M * N)),
    )(x2, w, b)
    if not isinstance(out, (tuple, list)):
        out = (out,)
    return tuple(out)


def attention_core(q, k, v, mask, wo, bo, residual, *, n_heads, scale,
                   tq=128, tkv=128):
    """Flash-style MHA + fused output projection + residual.
    q: (B, T, D) bf16, k/v: (B, S, D) bf16, mask: (1,T,S) or (B,1,S) bf16,
    wo: (D, D) bf16, bo: (1, D) f32, residual: (B, T, D) f32 -> (B, T, D) f32."""
    B, T, D = q.shape
    S = k.shape[1]
    dk = D // n_heads
    Bm, Tm, Sm = mask.shape
    tq = _pick_tile(T, tq, 16)
    tkv = _pick_tile(S, tkv, 16)
    mt = tq if Tm == T else 1

    def m_map(b, qi, ki):
        return (b if Bm > 1 else 0, qi if Tm == T else 0, ki)

    return pl.pallas_call(
        functools.partial(_attn_kernel, n_heads=n_heads, dk=dk, scale=scale),
        out_shape=jax.ShapeDtypeStruct((B, T, D), residual.dtype),
        grid=(B, T // tq, S // tkv),
        in_specs=[
            pl.BlockSpec((1, tq, D), lambda b, qi, ki: (b, qi, 0)),
            pl.BlockSpec((1, tkv, D), lambda b, qi, ki: (b, ki, 0)),
            pl.BlockSpec((1, tkv, D), lambda b, qi, ki: (b, ki, 0)),
            pl.BlockSpec((1, mt, tkv), m_map),
            pl.BlockSpec((D, D), lambda b, qi, ki: (0, 0)),
            pl.BlockSpec((1, D), lambda b, qi, ki: (0, 0)),
            pl.BlockSpec((1, tq, D), lambda b, qi, ki: (b, qi, 0)),
        ],
        out_specs=pl.BlockSpec((1, tq, D), lambda b, qi, ki: (b, qi, 0)),
        scratch_shapes=[pltpu.VMEM((n_heads, tq, 1), jnp.float32),
                        pltpu.VMEM((n_heads, tq, 1), jnp.float32),
                        pltpu.VMEM((n_heads, tq, dk), jnp.float32)],
        compiler_params=pltpu.CompilerParams(
            dimension_semantics=("parallel", "parallel", "arbitrary"),
            vmem_limit_bytes=_VMEM_LIMIT),
        cost_estimate=pl.CostEstimate(
            flops=4 * B * n_heads * T * S * dk + 2 * B * T * D * D,
            transcendentals=B * n_heads * T * S,
            bytes_accessed=2 * (B * T * D + 2 * B * S * D + Bm * Tm * Sm + D * D)
                           + 4 * 2 * B * T * D),
    )(q, k, v, mask, wo, bo, residual)


def ffn_block(x2, g, b_ln, w1, b1, w2, b2, *, eps=1e-6, tm=128, tk=256):
    """x2: (M, D) f32. Returns x2 + relu(LN(x2) @ w1 + b1) @ w2 + b2 (f32)."""
    M, D = x2.shape
    DFF = w1.shape[-1]
    tm = _pick_tile(M, tm, 16)
    tk = _pick_tile(DFF, tk, 128)
    return pl.pallas_call(
        functools.partial(_ffn_kernel, eps=eps),
        out_shape=jax.ShapeDtypeStruct((M, D), x2.dtype),
        grid=(M // tm, DFF // tk),
        in_specs=[
            pl.BlockSpec((tm, D), lambda i, kk: (i, 0)),
            pl.BlockSpec((1, D), lambda i, kk: (0, 0)),
            pl.BlockSpec((1, D), lambda i, kk: (0, 0)),
            pl.BlockSpec((D, tk), lambda i, kk: (0, kk)),
            pl.BlockSpec((1, tk), lambda i, kk: (0, kk)),
            pl.BlockSpec((tk, D), lambda i, kk: (kk, 0)),
            pl.BlockSpec((1, D), lambda i, kk: (0, 0)),
        ],
        out_specs=pl.BlockSpec((tm, D), lambda i, kk: (i, 0)),
        scratch_shapes=[pltpu.VMEM((tm, D), jnp.bfloat16),
                        pltpu.VMEM((tm, D), jnp.float32)],
        compiler_params=pltpu.CompilerParams(
            dimension_semantics=("parallel", "arbitrary"),
            vmem_limit_bytes=_VMEM_LIMIT),
        cost_estimate=pl.CostEstimate(
            flops=4 * M * D * DFF, transcendentals=0,
            bytes_accessed=4 * 2 * M * D + 2 * (2 * D * DFF)),
    )(x2, g, b_ln, w1, b1, w2, b2)


# ----------------------------- parameter prep & layer ------------------------

def prepare_params(params):
    """One-time preparation: fuse [Wq|Wk|Wv] / [Wk|Wv], cast weights to bf16,
    reshape LN params and biases to (1, N) f32 rows (hoisted out of the layer)."""
    sa, ca, f = params["self_attn"], params["src_attn"], params["ffn"]
    bf = jnp.bfloat16

    def row(v):
        return v.reshape(1, -1).astype(jnp.float32)

    return {
        "ln0_g": row(params["ln0_g"]), "ln0_b": row(params["ln0_b"]),
        "ln1_g": row(params["ln1_g"]), "ln1_b": row(params["ln1_b"]),
        "ln2_g": row(params["ln2_g"]), "ln2_b": row(params["ln2_b"]),
        "w_qkv": jnp.concatenate([sa["wq"], sa["wk"], sa["wv"]], axis=1).astype(bf),
        "b_qkv": jnp.concatenate([sa["bq"], sa["bk"], sa["bv"]]).reshape(1, -1),
        "wo_self": sa["wo"].astype(bf), "bo_self": row(sa["bo"]),
        "wq_src": ca["wq"].astype(bf), "bq_src": row(ca["bq"]),
        "w_kv_src": jnp.concatenate([ca["wk"], ca["wv"]], axis=1).astype(bf),
        "b_kv_src": jnp.concatenate([ca["bk"], ca["bv"]]).reshape(1, -1),
        "wo_src": ca["wo"].astype(bf), "bo_src": row(ca["bo"]),
        "w1": f["w1"].astype(bf), "b1": row(f["b1"]),
        "w2": f["w2"].astype(bf), "b2": row(f["b2"]),
    }


def decoder_layer(pp, x, memory, src_mask, tgt_mask, n_heads):
    """Pre-norm decoder layer: self-attn, src-attn, FFN, each with residual."""
    B, T, D = x.shape
    S = memory.shape[1]
    dk = D // n_heads
    scale = 1.0 / math.sqrt(dk)
    tgt_m = tgt_mask.astype(jnp.bfloat16)
    src_m = src_mask.astype(jnp.bfloat16)

    # --- sublayer 0: x + self_attn(LN(x), LN(x), LN(x), tgt_mask) @ Wo ---
    q, k, v = ln_proj(x.reshape(B * T, D), pp["ln0_g"], pp["ln0_b"],
                      pp["w_qkv"], pp["b_qkv"], out_dims=(D, D, D))
    x = attention_core(q.reshape(B, T, D), k.reshape(B, T, D), v.reshape(B, T, D),
                       tgt_m, pp["wo_self"], pp["bo_self"], x,
                       n_heads=n_heads, scale=scale)

    # --- sublayer 1: x + src_attn(LN(x), memory, memory, src_mask) @ Wo ---
    (qs,) = ln_proj(x.reshape(B * T, D), pp["ln1_g"], pp["ln1_b"],
                    pp["wq_src"], pp["bq_src"], out_dims=(D,))
    ks, vs = proj_split(memory.reshape(B * S, D), pp["w_kv_src"], pp["b_kv_src"],
                        out_dims=(D, D))
    x = attention_core(qs.reshape(B, T, D), ks.reshape(B, S, D), vs.reshape(B, S, D),
                       src_m, pp["wo_src"], pp["bo_src"], x,
                       n_heads=n_heads, scale=scale)

    # --- sublayer 2: x + feed_forward(LN(x)) ---
    y = ffn_block(x.reshape(B * T, D), pp["ln2_g"], pp["ln2_b"],
                  pp["w1"], pp["b1"], pp["w2"], pp["b2"])
    return y.reshape(B, T, D)


# ----------------------------- pure-JAX reference ----------------------------

def _ref_layernorm(x, g, b, eps=1e-6):
    mean = x.mean(-1, keepdims=True)
    std = jnp.sqrt(((x - mean) ** 2).sum(-1, keepdims=True) / (x.shape[-1] - 1))
    return g * (x - mean) / (std + eps) + b


def _ref_mha(p, q, k, v, mask, h):
    B, T, D = q.shape
    S = k.shape[1]
    dk = D // h
    qh = (q @ p["wq"] + p["bq"]).reshape(B, T, h, dk).transpose(0, 2, 1, 3)
    kh = (k @ p["wk"] + p["bk"]).reshape(B, S, h, dk).transpose(0, 2, 1, 3)
    vh = (v @ p["wv"] + p["bv"]).reshape(B, S, h, dk).transpose(0, 2, 1, 3)
    s = jnp.einsum("bhtd,bhsd->bhts", qh, kh) / math.sqrt(dk)
    m = jnp.broadcast_to(mask, (B, T, S))[:, None]
    s = jnp.where(m == 0.0, -1e9, s)
    pattn = jax.nn.softmax(s, axis=-1)
    o = jnp.einsum("bhts,bhsd->bhtd", pattn, vh).transpose(0, 2, 1, 3).reshape(B, T, D)
    return o @ p["wo"] + p["bo"]


def _ref_decoder(params, x, memory, src_mask, tgt_mask, h):
    n0 = _ref_layernorm(x, params["ln0_g"], params["ln0_b"])
    x = x + _ref_mha(params["self_attn"], n0, n0, n0, tgt_mask, h)
    n1 = _ref_layernorm(x, params["ln1_g"], params["ln1_b"])
    x = x + _ref_mha(params["src_attn"], n1, memory, memory, src_mask, h)
    n2 = _ref_layernorm(x, params["ln2_g"], params["ln2_b"])
    f = params["ffn"]
    ff = jnp.maximum(n2 @ f["w1"] + f["b1"], 0.0) @ f["w2"] + f["b2"]
    return x + ff


# ----------------------------- main -------------------------------------------

def _init_params(key, d_model, d_ff):
    def attn_params(k):
        ks = jax.random.split(k, 4)
        p = {}
        for name, kk in zip(("q", "k", "v", "o"), ks):
            p["w" + name] = 0.1 * jax.random.normal(kk, (d_model, d_model), jnp.float32)
            p["b" + name] = jnp.zeros((d_model,), jnp.float32)
        return p

    k1, k2, k3, k4 = jax.random.split(key, 4)
    return {
        "self_attn": attn_params(k1),
        "src_attn": attn_params(k2),
        "ffn": {
            "w1": 0.1 * jax.random.normal(k3, (d_model, d_ff), jnp.float32),
            "b1": jnp.zeros((d_ff,), jnp.float32),
            "w2": 0.1 * jax.random.normal(k4, (d_ff, d_model), jnp.float32),
            "b2": jnp.zeros((d_model,), jnp.float32),
        },
        "ln0_g": jnp.ones((d_model,), jnp.float32),
        "ln0_b": jnp.zeros((d_model,), jnp.float32),
        "ln1_g": jnp.ones((d_model,), jnp.float32),
        "ln1_b": jnp.zeros((d_model,), jnp.float32),
        "ln2_g": jnp.ones((d_model,), jnp.float32),
        "ln2_b": jnp.zeros((d_model,), jnp.float32),
    }


if __name__ == "__main__":
    B, T, S, D, H, D_FF = 2, 8, 8, 32, 4, 64

    key = jax.random.PRNGKey(0)
    kx, km, kp = jax.random.split(key, 3)
    x = jax.random.normal(kx, (B, T, D), jnp.float32)
    memory = jax.random.normal(km, (B, S, D), jnp.float32)
    params = _init_params(kp, D, D_FF)
    pp = prepare_params(params)

    # tgt_mask: subsequent (causal) mask, src_mask: all-ones padding mask.
    tgt_mask = jnp.tril(jnp.ones((T, T), jnp.float32))[None, :, :]   # (1, T, T)
    src_mask = jnp.ones((B, 1, S), jnp.float32)                      # (B, 1, S)

    layer = jax.jit(functools.partial(decoder_layer, n_heads=H))
    out = layer(pp, x, memory, src_mask, tgt_mask)
    out = jax.block_until_ready(out)

    ref = _ref_decoder(params, x, memory, src_mask, tgt_mask, H)
    assert out.shape == (B, T, D)
    max_err = float(jnp.max(jnp.abs(out - ref)))
    # bf16 MXU operands (f32 accumulation) vs the f32 reference -> bf16-level tol.
    assert jnp.allclose(out, ref, rtol=2e-2, atol=2e-2), \
        f"mismatch vs reference (max abs err {max_err:.4e})"

    print("KERNEL_OK")
</pallas_src>

<mosaic_0001>
module attributes {stable_mosaic.version = 11 : i64} {
  func.func @_proj_kernel(%arg0: i32, %arg1: memref<16x32xf32, #tpu.memory_space<vmem>>, %arg2: memref<32x64xbf16, #tpu.memory_space<vmem>>, %arg3: memref<1x64xf32, #tpu.memory_space<vmem>>, %arg4: memref<16x32xbf16, #tpu.memory_space<vmem>>, %arg5: memref<16x32xbf16, #tpu.memory_space<vmem>>) attributes {dimension_semantics = [#tpu.dimension_semantics<parallel>], iteration_bounds = array<i64: 1>, scalar_prefetch = 0 : i64, scratch_operands = 0 : i64, tpu.core_type = #tpu.core_type<tc>, window_params = [{transform_indices = @transform_0, window_bounds = array<i64: 16, 32>}, {pipeline_mode = #tpu.pipeline_mode<synchronous>, transform_indices = @transform_1, window_bounds = array<i64: 32, 64>}, {pipeline_mode = #tpu.pipeline_mode<synchronous>, transform_indices = @transform_2, window_bounds = array<i64: 1, 64>}, {transform_indices = @transform_3, window_bounds = array<i64: 16, 32>}, {transform_indices = @transform_4, window_bounds = array<i64: 16, 32>}]} {
    %c0 = arith.constant 0 : index
    %c0_0 = arith.constant 0 : index
    %0 = vector.load %arg1[%c0, %c0_0] : memref<16x32xf32, #tpu.memory_space<vmem>>, vector<16x32xf32>
    %1 = arith.truncf %0 : vector<16x32xf32> to vector<16x32xbf16>
    %c0_1 = arith.constant 0 : index
    %c0_2 = arith.constant 0 : index
    %2 = vector.load %arg2[%c0_1, %c0_2] : memref<32x64xbf16, #tpu.memory_space<vmem>>, vector<32x64xbf16>
    %cst = arith.constant dense<0.000000e+00> : vector<16x64xf32>
    %3 = tpu.matmul %1, %2, %cst {dimension_numbers = #tpu.dot_dimension_numbers<[1], [0], [0], [1], [0, 0, 1, 1], [], []>} : vector<16x32xbf16>, vector<32x64xbf16>, vector<16x64xf32> -> vector<16x64xf32>
    %c0_3 = arith.constant 0 : index
    %c0_4 = arith.constant 0 : index
    %4 = vector.load %arg3[%c0_3, %c0_4] : memref<1x64xf32, #tpu.memory_space<vmem>>, vector<1x64xf32>
    %5 = vector.broadcast %4 : vector<1x64xf32> to vector<16x64xf32>
    %6 = arith.addf %3, %5 : vector<16x64xf32>
    %7 = vector.extract_strided_slice %6 {offsets = [0, 0], sizes = [16, 32], strides = [1, 1]} : vector<16x64xf32> to vector<16x32xf32>
    %8 = arith.truncf %7 : vector<16x32xf32> to vector<16x32xbf16>
    %c0_5 = arith.constant 0 : index
    %c0_6 = arith.constant 0 : index
    %9 = vector.load %arg4[%c0_5, %c0_6] : memref<16x32xbf16, #tpu.memory_space<vmem>>, vector<16x32xbf16>
    tpu.vector_store %arg4[%c0_5, %c0_6], %8 {strides = array<i32>} : memref<16x32xbf16, #tpu.memory_space<vmem>>, vector<16x32xbf16>,
    %10 = vector.extract_strided_slice %6 {offsets = [0, 32], sizes = [16, 32], strides = [1, 1]} : vector<16x64xf32> to vector<16x32xf32>
    %11 = arith.truncf %10 : vector<16x32xf32> to vector<16x32xbf16>
    %c0_7 = arith.constant 0 : index
    %c0_8 = arith.constant 0 : index
    %12 = vector.load %arg5[%c0_7, %c0_8] : memref<16x32xbf16, #tpu.memory_space<vmem>>, vector<16x32xbf16>
    tpu.vector_store %arg5[%c0_7, %c0_8], %11 {strides = array<i32>} : memref<16x32xbf16, #tpu.memory_space<vmem>>, vector<16x32xbf16>,
    return
  }
  func.func @transform_0(%arg0: i32) -> (i32, i32) {
    %c0_i32 = arith.constant 0 : i32
    %c0_i32_0 = arith.constant 0 : i32
    return %arg0, %c0_i32 : i32, i32
  }
  func.func @transform_1(%arg0: i32) -> (i32, i32) {
    %c0_i32 = arith.constant 0 : i32
    %c0_i32_0 = arith.constant 0 : i32
    %c0_i32_1 = arith.constant 0 : i32
    return %c0_i32, %c0_i32_0 : i32, i32
  }
  func.func @transform_2(%arg0: i32) -> (i32, i32) {
    %c0_i32 = arith.constant 0 : i32
    %c0_i32_0 = arith.constant 0 : i32
    %c0_i32_1 = arith.constant 0 : i32
    return %c0_i32, %c0_i32_0 : i32, i32
  }
  func.func @transform_3(%arg0: i32) -> (i32, i32) {
    %c0_i32 = arith.constant 0 : i32
    %c0_i32_0 = arith.constant 0 : i32
    return %arg0, %c0_i32 : i32, i32
  }
  func.func @transform_4(%arg0: i32) -> (i32, i32) {
    %c0_i32 = arith.constant 0 : i32
    %c0_i32_0 = arith.constant 0 : i32
    return %arg0, %c0_i32 : i32, i32
  }
}

module attributes {stable_mosaic.version = 11 : i64} {
  func.func @_ln_proj_kernel(%arg0: i32, %arg1: memref<16x32xf32, #tpu.memory_space<vmem>>, %arg2: memref<1x32xf32, #tpu.memory_space<vmem>>, %arg3: memref<1x32xf32, #tpu.memory_space<vmem>>, %arg4: memref<32x96xbf16, #tpu.memory_space<vmem>>, %arg5: memref<1x96xf32, #tpu.memory_space<vmem>>, %arg6: memref<16x32xbf16, #tpu.memory_space<vmem>>, %arg7: memref<16x32xbf16, #tpu.memory_space<vmem>>, %arg8: memref<16x32xbf16, #tpu.memory_space<vmem>>) attributes {dimension_semantics = [#tpu.dimension_semantics<parallel>], iteration_bounds = array<i64: 1>, scalar_prefetch = 0 : i64, scratch_operands = 0 : i64, tpu.core_type = #tpu.core_type<tc>, window_params = [{transform_indices = @transform_0, window_bounds = array<i64: 16, 32>}, {pipeline_mode = #tpu.pipeline_mode<synchronous>, transform_indices = @transform_1, window_bounds = array<i64: 1, 32>}, {pipeline_mode = #tpu.pipeline_mode<synchronous>, transform_indices = @transform_2, window_bounds = array<i64: 1, 32>}, {pipeline_mode = #tpu.pipeline_mode<synchronous>, transform_indices = @transform_3, window_bounds = array<i64: 32, 96>}, {pipeline_mode = #tpu.pipeline_mode<synchronous>, transform_indices = @transform_4, window_bounds = array<i64: 1, 96>}, {transform_indices = @transform_5, window_bounds = array<i64: 16, 32>}, {transform_indices = @transform_6, window_bounds = array<i64: 16, 32>}, {transform_indices = @transform_7, window_bounds = array<i64: 16, 32>}]} {
    %c0 = arith.constant 0 : index
    %c0_0 = arith.constant 0 : index
    %0 = vector.load %arg1[%c0, %c0_0] : memref<16x32xf32, #tpu.memory_space<vmem>>, vector<16x32xf32>
    %cst = arith.constant dense<0.000000e+00> : vector<16xf32>
    %1 = vector.multi_reduction <add>, %0, %cst [1] : vector<16x32xf32> to vector<16xf32>
    %2 = vector.shape_cast %1 : vector<16xf32> to vector<16x1xf32>
    %cst_1 = arith.constant 3.200000e+01 : f32
    %3 = vector.broadcast %cst_1 : f32 to vector<16x1xf32>
    %4 = arith.divf %2, %3 : vector<16x1xf32>
    %5 = vector.broadcast %4 : vector<16x1xf32> to vector<16x32xf32>
    %6 = arith.subf %0, %5 : vector<16x32xf32>
    %7 = arith.mulf %6, %6 : vector<16x32xf32>
    %cst_2 = arith.constant dense<0.000000e+00> : vector<16xf32>
    %8 = vector.multi_reduction <add>, %7, %cst_2 [1] : vector<16x32xf32> to vector<16xf32>
    %9 = vector.shape_cast %8 : vector<16xf32> to vector<16x1xf32>
    %cst_3 = arith.constant 3.100000e+01 : f32
    %10 = vector.broadcast %cst_3 : f32 to vector<16x1xf32>
    %11 = arith.divf %9, %10 : vector<16x1xf32>
    %12 = math.sqrt %11 : vector<16x1xf32>
    %cst_4 = arith.constant 9.99999997E-7 : f32
    %13 = vector.broadcast %cst_4 : f32 to vector<16x1xf32>
    %14 = arith.addf %12, %13 : vector<16x1xf32>
    %15 = tpu.reciprocal %14 : vector<16x1xf32> -> vector<16x1xf32>
    %c0_5 = arith.constant 0 : index
    %c0_6 = arith.constant 0 : index
    %16 = vector.load %arg2[%c0_5, %c0_6] : memref<1x32xf32, #tpu.memory_space<vmem>>, vector<1x32xf32>
    %17 = vector.broadcast %16 : vector<1x32xf32> to vector<16x32xf32>
    %18 = arith.mulf %17, %6 : vector<16x32xf32>
    %19 = vector.broadcast %15 : vector<16x1xf32> to vector<16x32xf32>
    %20 = arith.mulf %18, %19 : vector<16x32xf32>
    %c0_7 = arith.constant 0 : index
    %c0_8 = arith.constant 0 : index
    %21 = vector.load %arg3[%c0_7, %c0_8] : memref<1x32xf32, #tpu.memory_space<vmem>>, vector<1x32xf32>
    %22 = vector.broadcast %21 : vector<1x32xf32> to vector<16x32xf32>
    %23 = arith.addf %20, %22 : vector<16x32xf32>
    %24 = arith.truncf %23 : vector<16x32xf32> to vector<16x32xbf16>
    %c0_9 = arith.constant 0 : index
    %c0_10 = arith.constant 0 : index
    %25 = vector.load %arg4[%c0_9, %c0_10] : memref<32x96xbf16, #tpu.memory_space<vmem>>, vector<32x96xbf16>
    %cst_11 = arith.constant dense<0.000000e+00> : vector<16x96xf32>
    %26 = tpu.matmul %24, %25, %cst_11 {dimension_numbers = #tpu.dot_dimension_numbers<[1], [0], [0], [1], [0, 0, 1, 1], [], []>} : vector<16x32xbf16>, vector<32x96xbf16>, vector<16x96xf32> -> vector<16x96xf32>
    %c0_12 = arith.constant 0 : index
    %c0_13 = arith.constant 0 : index
    %27 = vector.load %arg5[%c0_12, %c0_13] : memref<1x96xf32, #tpu.memory_space<vmem>>, vector<1x96xf32>
    %28 = vector.broadcast %27 : vector<1x96xf32> to vector<16x96xf32>
    %29 = arith.addf %26, %28 : vector<16x96xf32>
    %30 = vector.extract_strided_slice %29 {offsets = [0, 0], sizes = [16, 32], strides = [1, 1]} : vector<16x96xf32> to vector<16x32xf32>
    %31 = arith.truncf %30 : vector<16x32xf32> to vector<16x32xbf16>
    %c0_14 = arith.constant 0 : index
    %c0_15 = arith.constant 0 : index
    %32 = vector.load %arg6[%c0_14, %c0_15] : memref<16x32xbf16, #tpu.memory_space<vmem>>, vector<16x32xbf16>
    tpu.vector_store %arg6[%c0_14, %c0_15], %31 {strides = array<i32>} : memref<16x32xbf16, #tpu.memory_space<vmem>>, vector<16x32xbf16>,
    %33 = vector.extract_strided_slice %29 {offsets = [0, 32], sizes = [16, 32], strides = [1, 1]} : vector<16x96xf32> to vector<16x32xf32>
    %34 = arith.truncf %33 : vector<16x32xf32> to vector<16x32xbf16>
    %c0_16 = arith.constant 0 : index
    %c0_17 = arith.constant 0 : index
    %35 = vector.load %arg7[%c0_16, %c0_17] : memref<16x32xbf16, #tpu.memory_space<vmem>>, vector<16x32xbf16>
    tpu.vector_store %arg7[%c0_16, %c0_17], %34 {strides = array<i32>} : memref<16x32xbf16, #tpu.memory_space<vmem>>, vector<16x32xbf16>,
    %36 = vector.extract_strided_slice %29 {offsets = [0, 64], sizes = [16, 32], strides = [1, 1]} : vector<16x96xf32> to vector<16x32xf32>
    %37 = arith.truncf %36 : vector<16x32xf32> to vector<16x32xbf16>
    %c0_18 = arith.constant 0 : index
    %c0_19 = arith.constant 0 : index
    %38 = vector.load %arg8[%c0_18, %c0_19] : memref<16x32xbf16, #tpu.memory_space<vmem>>, vector<16x32xbf16>
    tpu.vector_store %arg8[%c0_18, %c0_19], %37 {strides = array<i32>} : memref<16x32xbf16, #tpu.memory_space<vmem>>, vector<16x32xbf16>,
    return
  }
  func.func @transform_0(%arg0: i32) -> (i32, i32) {
    %c0_i32 = arith.constant 0 : i32
    %c0_i32_0 = arith.constant 0 : i32
    return %arg0, %c0_i32 : i32, i32
  }
  func.func @transform_1(%arg0: i32) -> (i32, i32) {
    %c0_i32 = arith.constant 0 : i32
    %c0_i32_0 = arith.constant 0 : i32
    %c0_i32_1 = arith.constant 0 : i32
    return %c0_i32, %c0_i32_0 : i32, i32
  }
  func.func @transform_2(%arg0: i32) -> (i32, i32) {
    %c0_i32 = arith.constant 0 : i32
    %c0_i32_0 = arith.constant 0 : i32
    %c0_i32_1 = arith.constant 0 : i32
    return %c0_i32, %c0_i32_0 : i32, i32
  }
  func.func @transform_3(%arg0: i32) -> (i32, i32) {
    %c0_i32 = arith.constant 0 : i32
    %c0_i32_0 = arith.constant 0 : i32
    %c0_i32_1 = arith.constant 0 : i32
    return %c0_i32, %c0_i32_0 : i32, i32
  }
  func.func @transform_4(%arg0: i32) -> (i32, i32) {
    %c0_i32 = arith.constant 0 : i32
    %c0_i32_0 = arith.constant 0 : i32
    %c0_i32_1 = arith.constant 0 : i32
    return %c0_i32, %c0_i32_0 : i32, i32
  }
  func.func @transform_5(%arg0: i32) -> (i32, i32) {
    %c0_i32 = arith.constant 0 : i32
    %c0_i32_0 = arith.constant 0 : i32
    return %arg0, %c0_i32 : i32, i32
  }
  func.func @transform_6(%arg0: i32) -> (i32, i32) {
    %c0_i32 = arith.constant 0 : i32
    %c0_i32_0 = arith.constant 0 : i32
    return %arg0, %c0_i32 : i32, i32
  }
  func.func @transform_7(%arg0: i32) -> (i32, i32) {
    %c0_i32 = arith.constant 0 : i32
    %c0_i32_0 = arith.constant 0 : i32
    return %arg0, %c0_i32 : i32, i32
  }
}

module attributes {stable_mosaic.version = 11 : i64} {
  func.func @_ln_proj_kernel(%arg0: i32, %arg1: memref<16x32xf32, #tpu.memory_space<vmem>>, %arg2: memref<1x32xf32, #tpu.memory_space<vmem>>, %arg3: memref<1x32xf32, #tpu.memory_space<vmem>>, %arg4: memref<32x32xbf16, #tpu.memory_space<vmem>>, %arg5: memref<1x32xf32, #tpu.memory_space<vmem>>, %arg6: memref<16x32xbf16, #tpu.memory_space<vmem>>) attributes {dimension_semantics = [#tpu.dimension_semantics<parallel>], iteration_bounds = array<i64: 1>, scalar_prefetch = 0 : i64, scratch_operands = 0 : i64, tpu.core_type = #tpu.core_type<tc>, window_params = [{transform_indices = @transform_0, window_bounds = array<i64: 16, 32>}, {pipeline_mode = #tpu.pipeline_mode<synchronous>, transform_indices = @transform_1, window_bounds = array<i64: 1, 32>}, {pipeline_mode = #tpu.pipeline_mode<synchronous>, transform_indices = @transform_2, window_bounds = array<i64: 1, 32>}, {pipeline_mode = #tpu.pipeline_mode<synchronous>, transform_indices = @transform_3, window_bounds = array<i64: 32, 32>}, {pipeline_mode = #tpu.pipeline_mode<synchronous>, transform_indices = @transform_4, window_bounds = array<i64: 1, 32>}, {transform_indices = @transform_5, window_bounds = array<i64: 16, 32>}]} {
    %c0 = arith.constant 0 : index
    %c0_0 = arith.constant 0 : index
    %0 = vector.load %arg1[%c0, %c0_0] : memref<16x32xf32, #tpu.memory_space<vmem>>, vector<16x32xf32>
    %cst = arith.constant dense<0.000000e+00> : vector<16xf32>
    %1 = vector.multi_reduction <add>, %0, %cst [1] : vector<16x32xf32> to vector<16xf32>
    %2 = vector.shape_cast %1 : vector<16xf32> to vector<16x1xf32>
    %cst_1 = arith.constant 3.200000e+01 : f32
    %3 = vector.broadcast %cst_1 : f32 to vector<16x1xf32>
    %4 = arith.divf %2, %3 : vector<16x1xf32>
    %5 = vector.broadcast %4 : vector<16x1xf32> to vector<16x32xf32>
    %6 = arith.subf %0, %5 : vector<16x32xf32>
    %7 = arith.mulf %6, %6 : vector<16x32xf32>
    %cst_2 = arith.constant dense<0.000000e+00> : vector<16xf32>
    %8 = vector.multi_reduction <add>, %7, %cst_2 [1] : vector<16x32xf32> to vector<16xf32>
    %9 = vector.shape_cast %8 : vector<16xf32> to vector<16x1xf32>
    %cst_3 = arith.constant 3.100000e+01 : f32
    %10 = vector.broadcast %cst_3 : f32 to vector<16x1xf32>
    %11 = arith.divf %9, %10 : vector<16x1xf32>
    %12 = math.sqrt %11 : vector<16x1xf32>
    %cst_4 = arith.constant 9.99999997E-7 : f32
    %13 = vector.broadcast %cst_4 : f32 to vector<16x1xf32>
    %14 = arith.addf %12, %13 : vector<16x1xf32>
    %15 = tpu.reciprocal %14 : vector<16x1xf32> -> vector<16x1xf32>
    %c0_5 = arith.constant 0 : index
    %c0_6 = arith.constant 0 : index
    %16 = vector.load %arg2[%c0_5, %c0_6] : memref<1x32xf32, #tpu.memory_space<vmem>>, vector<1x32xf32>
    %17 = vector.broadcast %16 : vector<1x32xf32> to vector<16x32xf32>
    %18 = arith.mulf %17, %6 : vector<16x32xf32>
    %19 = vector.broadcast %15 : vector<16x1xf32> to vector<16x32xf32>
    %20 = arith.mulf %18, %19 : vector<16x32xf32>
    %c0_7 = arith.constant 0 : index
    %c0_8 = arith.constant 0 : index
    %21 = vector.load %arg3[%c0_7, %c0_8] : memref<1x32xf32, #tpu.memory_space<vmem>>, vector<1x32xf32>
    %22 = vector.broadcast %21 : vector<1x32xf32> to vector<16x32xf32>
    %23 = arith.addf %20, %22 : vector<16x32xf32>
    %24 = arith.truncf %23 : vector<16x32xf32> to vector<16x32xbf16>
    %c0_9 = arith.constant 0 : index
    %c0_10 = arith.constant 0 : index
    %25 = vector.load %arg4[%c0_9, %c0_10] : memref<32x32xbf16, #tpu.memory_space<vmem>>, vector<32x32xbf16>
    %cst_11 = arith.constant dense<0.000000e+00> : vector<16x32xf32>
    %26 = tpu.matmul %24, %25, %cst_11 {dimension_numbers = #tpu.dot_dimension_numbers<[1], [0], [0], [1], [0, 0, 1, 1], [], []>} : vector<16x32xbf16>, vector<32x32xbf16>, vector<16x32xf32> -> vector<16x32xf32>
    %c0_12 = arith.constant 0 : index
    %c0_13 = arith.constant 0 : index
    %27 = vector.load %arg5[%c0_12, %c0_13] : memref<1x32xf32, #tpu.memory_space<vmem>>, vector<1x32xf32>
    %28 = vector.broadcast %27 : vector<1x32xf32> to vector<16x32xf32>
    %29 = arith.addf %26, %28 : vector<16x32xf32>
    %30 = arith.truncf %29 : vector<16x32xf32> to vector<16x32xbf16>
    %c0_14 = arith.constant 0 : index
    %c0_15 = arith.constant 0 : index
    %31 = vector.load %arg6[%c0_14, %c0_15] : memref<16x32xbf16, #tpu.memory_space<vmem>>, vector<16x32xbf16>
    tpu.vector_store %arg6[%c0_14, %c0_15], %30 {strides = array<i32>} : memref<16x32xbf16, #tpu.memory_space<vmem>>, vector<16x32xbf16>,
    return
  }
  func.func @transform_0(%arg0: i32) -> (i32, i32) {
    %c0_i32 = arith.constant 0 : i32
    %c0_i32_0 = arith.constant 0 : i32
    return %arg0, %c0_i32 : i32, i32
  }
  func.func @transform_1(%arg0: i32) -> (i32, i32) {
    %c0_i32 = arith.constant 0 : i32
    %c0_i32_0 = arith.constant 0 : i32
    %c0_i32_1 = arith.constant 0 : i32
    return %c0_i32, %c0_i32_0 : i32, i32
  }
  func.func @transform_2(%arg0: i32) -> (i32, i32) {
    %c0_i32 = arith.constant 0 : i32
    %c0_i32_0 = arith.constant 0 : i32
    %c0_i32_1 = arith.constant 0 : i32
    return %c0_i32, %c0_i32_0 : i32, i32
  }
  func.func @transform_3(%arg0: i32) -> (i32, i32) {
    %c0_i32 = arith.constant 0 : i32
    %c0_i32_0 = arith.constant 0 : i32
    %c0_i32_1 = arith.constant 0 : i32
    return %c0_i32, %c0_i32_0 : i32, i32
  }
  func.func @transform_4(%arg0: i32) -> (i32, i32) {
    %c0_i32 = arith.constant 0 : i32
    %c0_i32_0 = arith.constant 0 : i32
    %c0_i32_1 = arith.constant 0 : i32
    return %c0_i32, %c0_i32_0 : i32, i32
  }
  func.func @transform_5(%arg0: i32) -> (i32, i32) {
    %c0_i32 = arith.constant 0 : i32
    %c0_i32_0 = arith.constant 0 : i32
    return %arg0, %c0_i32 : i32, i32
  }
}

module attributes {stable_mosaic.version = 11 : i64} {
  func.func @_attn_kernel(%arg0: i32, %arg1: i32, %arg2: i32, %arg3: memref<1x8x32xbf16, #tpu.memory_space<vmem>>, %arg4: memref<1x8x32xbf16, #tpu.memory_space<vmem>>, %arg5: memref<1x8x32xbf16, #tpu.memory_space<vmem>>, %arg6: memref<1x8x8xbf16, #tpu.memory_space<vmem>>, %arg7: memref<32x32xbf16, #tpu.memory_space<vmem>>, %arg8: memref<1x32xf32, #tpu.memory_space<vmem>>, %arg9: memref<1x8x32xf32, #tpu.memory_space<vmem>>, %arg10: memref<1x8x32xf32, #tpu.memory_space<vmem>>, %arg11: memref<4x8x1xf32, #tpu.memory_space<vmem>>, %arg12: memref<4x8x1xf32, #tpu.memory_space<vmem>>, %arg13: memref<4x8x8xf32, #tpu.memory_space<vmem>>) attributes {dimension_semantics = [#tpu.dimension_semantics<parallel>, #tpu.dimension_semantics<parallel>, #tpu.dimension_semantics<arbitrary>], iteration_bounds = array<i64: 2, 1, 1>, scalar_prefetch = 0 : i64, scratch_operands = 3 : i64, tpu.core_type = #tpu.core_type<tc>, window_params = [{transform_indices = @transform_0, window_bounds = array<i64: 1, 8, 32>}, {transform_indices = @transform_1, window_bounds = array<i64: 1, 8, 32>}, {transform_indices = @transform_2, window_bounds = array<i64: 1, 8, 32>}, {transform_indices = @transform_3, window_bounds = array<i64: 1, 8, 8>}, {pipeline_mode = #tpu.pipeline_mode<synchronous>, transform_indices = @transform_4, window_bounds = array<i64: 32, 32>}, {pipeline_mode = #tpu.pipeline_mode<synchronous>, transform_indices = @transform_5, window_bounds = array<i64: 1, 32>}, {transform_indices = @transform_6, window_bounds = array<i64: 1, 8, 32>}, {transform_indices = @transform_7, window_bounds = array<i64: 1, 8, 32>}]} {
    %c0_i32 = arith.constant 0 : i32
    %0 = arith.cmpi eq, %arg2, %c0_i32 : i32
    %1 = arith.extui %0 : i1 to i32
    %c0_i32_0 = arith.constant 0 : i32
    %2 = arith.cmpi ne, %1, %c0_i32_0 : i32
    scf.if %2 {
      %cst_110 = arith.constant 0xFF800000 : f32
      %182 = vector.broadcast %cst_110 : f32 to vector<4x8x1xf32>
      %c0_111 = arith.constant 0 : index
      %c0_112 = arith.constant 0 : index
      %c0_113 = arith.constant 0 : index
      %183 = vector.load %arg11[%c0_111, %c0_112, %c0_113] : memref<4x8x1xf32, #tpu.memory_space<vmem>>, vector<4x8x1xf32>
      tpu.vector_store %arg11[%c0_111, %c0_112, %c0_113], %182 {strides = array<i32>} : memref<4x8x1xf32, #tpu.memory_space<vmem>>, vector<4x8x1xf32>,
      %cst_114 = arith.constant 0.000000e+00 : f32
      %184 = vector.broadcast %cst_114 : f32 to vector<4x8x1xf32>
      %c0_115 = arith.constant 0 : index
      %c0_116 = arith.constant 0 : index
      %c0_117 = arith.constant 0 : index
      %185 = vector.load %arg12[%c0_115, %c0_116, %c0_117] : memref<4x8x1xf32, #tpu.memory_space<vmem>>, vector<4x8x1xf32>
      tpu.vector_store %arg12[%c0_115, %c0_116, %c0_117], %184 {strides = array<i32>} : memref<4x8x1xf32, #tpu.memory_space<vmem>>, vector<4x8x1xf32>,
      %cst_118 = arith.constant 0.000000e+00 : f32
      %186 = vector.broadcast %cst_118 : f32 to vector<4x8x8xf32>
      %c0_119 = arith.constant 0 : index
      %c0_120 = arith.constant 0 : index
      %c0_121 = arith.constant 0 : index
      %187 = vector.load %arg13[%c0_119, %c0_120, %c0_121] : memref<4x8x8xf32, #tpu.memory_space<vmem>>, vector<4x8x8xf32>
      tpu.vector_store %arg13[%c0_119, %c0_120, %c0_121], %186 {strides = array<i32>} : memref<4x8x8xf32, #tpu.memory_space<vmem>>, vector<4x8x8xf32>,
    } else {
    }
    %c0 = arith.constant 0 : index
    %c0_1 = arith.constant 0 : index
    %c0_2 = arith.constant 0 : index
    %3 = vector.load %arg3[%c0, %c0_1, %c0_2] : memref<1x8x32xbf16, #tpu.memory_space<vmem>>, vector<1x8x32xbf16>
    %4 = vector.shape_cast %3 : vector<1x8x32xbf16> to vector<8x32xbf16>
    %c0_3 = arith.constant 0 : index
    %c0_4 = arith.constant 0 : index
    %c0_5 = arith.constant 0 : index
    %5 = vector.load %arg4[%c0_3, %c0_4, %c0_5] : memref<1x8x32xbf16, #tpu.memory_space<vmem>>, vector<1x8x32xbf16>
    %6 = vector.shape_cast %5 : vector<1x8x32xbf16> to vector<8x32xbf16>
    %c0_6 = arith.constant 0 : index
    %c0_7 = arith.constant 0 : index
    %c0_8 = arith.constant 0 : index
    %7 = vector.load %arg5[%c0_6, %c0_7, %c0_8] : memref<1x8x32xbf16, #tpu.memory_space<vmem>>, vector<1x8x32xbf16>
    %8 = vector.shape_cast %7 : vector<1x8x32xbf16> to vector<8x32xbf16>
    %c0_9 = arith.constant 0 : index
    %c0_10 = arith.constant 0 : index
    %c0_11 = arith.constant 0 : index
    %9 = vector.load %arg6[%c0_9, %c0_10, %c0_11] : memref<1x8x8xbf16, #tpu.memory_space<vmem>>, vector<1x8x8xbf16>
    %10 = vector.shape_cast %9 : vector<1x8x8xbf16> to vector<8x8xbf16>
    %11 = vector.extract_strided_slice %4 {offsets = [0, 0], sizes = [8, 8], strides = [1, 1]} : vector<8x32xbf16> to vector<8x8xbf16>
    %12 = vector.extract_strided_slice %6 {offsets = [0, 0], sizes = [8, 8], strides = [1, 1]} : vector<8x32xbf16> to vector<8x8xbf16>
    %cst = arith.constant dense<0.000000e+00> : vector<8x8xf32>
    %13 = tpu.matmul %11, %12, %cst {dimension_numbers = #tpu.dot_dimension_numbers<[1], [1], [0], [0], [0, 0, 1, 0], [], []>} : vector<8x8xbf16>, vector<8x8xbf16>, vector<8x8xf32> -> vector<8x8xf32>
    %cst_12 = arith.constant 0.353553385 : f32
    %14 = vector.broadcast %cst_12 : f32 to vector<8x8xf32>
    %15 = arith.mulf %13, %14 : vector<8x8xf32>
    %cst_13 = arith.constant 0.000000e+00 : bf16
    %16 = vector.broadcast %cst_13 : bf16 to vector<8x8xbf16>
    %17 = arith.cmpf oeq, %10, %16 : vector<8x8xbf16>
    %cst_14 = arith.constant -1.000000e+09 : f32
    %18 = vector.broadcast %cst_14 : f32 to vector<8x8xf32>
    %19 = arith.select %17, %18, %15 : vector<8x8xi1>, vector<8x8xf32>
    %c0_15 = arith.constant 0 : index
    %c0_16 = arith.constant 0 : index
    %c0_17 = arith.constant 0 : index
    %20 = vector.load %arg11[%c0_15, %c0_16, %c0_17] : memref<4x8x1xf32, #tpu.memory_space<vmem>>, vector<1x8x1xf32>
    %21 = vector.shape_cast %20 : vector<1x8x1xf32> to vector<8x1xf32>
    %cst_18 = arith.constant dense<0xFF800000> : vector<8xf32>
    %22 = vector.multi_reduction <maximumf>, %19, %cst_18 [1] : vector<8x8xf32> to vector<8xf32>
    %23 = vector.shape_cast %22 : vector<8xf32> to vector<8x1xf32>
    %24 = arith.maximumf %21, %23 : vector<8x1xf32>
    %25 = arith.subf %21, %24 : vector<8x1xf32>
    %26 = math.exp %25 : vector<8x1xf32>
    %27 = vector.broadcast %24 : vector<8x1xf32> to vector<8x8xf32>
    %28 = arith.subf %19, %27 : vector<8x8xf32>
    %29 = math.exp %28 : vector<8x8xf32>
    %c0_19 = arith.constant 0 : index
    %c0_20 = arith.constant 0 : index
    %c0_21 = arith.constant 0 : index
    %30 = vector.load %arg12[%c0_19, %c0_20, %c0_21] : memref<4x8x1xf32, #tpu.memory_space<vmem>>, vector<1x8x1xf32>
    %31 = vector.shape_cast %30 : vector<1x8x1xf32> to vector<8x1xf32>
    %32 = arith.mulf %26, %31 : vector<8x1xf32>
    %cst_22 = arith.constant dense<0.000000e+00> : vector<8xf32>
    %33 = vector.multi_reduction <add>, %29, %cst_22 [1] : vector<8x8xf32> to vector<8xf32>
    %34 = vector.shape_cast %33 : vector<8xf32> to vector<8x1xf32>
    %35 = arith.addf %32, %34 : vector<8x1xf32>
    %c0_23 = arith.constant 0 : index
    %c0_24 = arith.constant 0 : index
    %c0_25 = arith.constant 0 : index
    %36 = vector.load %arg12[%c0_23, %c0_24, %c0_25] : memref<4x8x1xf32, #tpu.memory_space<vmem>>, vector<1x8x1xf32>
    %37 = vector.shape_cast %36 : vector<1x8x1xf32> to vector<8x1xf32>
    %38 = vector.shape_cast %35 : vector<8x1xf32> to vector<1x8x1xf32>
    tpu.vector_store %arg12[%c0_23, %c0_24, %c0_25], %38 {strides = array<i32>} : memref<4x8x1xf32, #tpu.memory_space<vmem>>, vector<1x8x1xf32>,
    %39 = arith.truncf %29 : vector<8x8xf32> to vector<8x8xbf16>
    %40 = vector.extract_strided_slice %8 {offsets = [0, 0], sizes = [8, 8], strides = [1, 1]} : vector<8x32xbf16> to vector<8x8xbf16>
    %cst_26 = arith.constant dense<0.000000e+00> : vector<8x8xf32>
    %41 = tpu.matmul %39, %40, %cst_26 {dimension_numbers = #tpu.dot_dimension_numbers<[1], [0], [0], [1], [0, 0, 1, 1], [], []>} : vector<8x8xbf16>, vector<8x8xbf16>, vector<8x8xf32> -> vector<8x8xf32>
    %c0_27 = arith.constant 0 : index
    %c0_28 = arith.constant 0 : index
    %c0_29 = arith.constant 0 : index
    %42 = vector.load %arg13[%c0_27, %c0_28, %c0_29] : memref<4x8x8xf32, #tpu.memory_space<vmem>>, vector<1x8x8xf32>
    %43 = vector.shape_cast %42 : vector<1x8x8xf32> to vector<8x8xf32>
    %44 = vector.broadcast %26 : vector<8x1xf32> to vector<8x8xf32>
    %45 = arith.mulf %44, %43 : vector<8x8xf32>
    %46 = arith.addf %45, %41 : vector<8x8xf32>
    %c0_30 = arith.constant 0 : index
    %c0_31 = arith.constant 0 : index
    %c0_32 = arith.constant 0 : index
    %47 = vector.load %arg13[%c0_30, %c0_31, %c0_32] : memref<4x8x8xf32, #tpu.memory_space<vmem>>, vector<1x8x8xf32>
    %48 = vector.shape_cast %47 : vector<1x8x8xf32> to vector<8x8xf32>
    %49 = vector.shape_cast %46 : vector<8x8xf32> to vector<1x8x8xf32>
    tpu.vector_store %arg13[%c0_30, %c0_31, %c0_32], %49 {strides = array<i32>} : memref<4x8x8xf32, #tpu.memory_space<vmem>>, vector<1x8x8xf32>,
    %c0_33 = arith.constant 0 : index
    %c0_34 = arith.constant 0 : index
    %c0_35 = arith.constant 0 : index
    %50 = vector.load %arg11[%c0_33, %c0_34, %c0_35] : memref<4x8x1xf32, #tpu.memory_space<vmem>>, vector<1x8x1xf32>
    %51 = vector.shape_cast %50 : vector<1x8x1xf32> to vector<8x1xf32>
    %52 = vector.shape_cast %24 : vector<8x1xf32> to vector<1x8x1xf32>
    tpu.vector_store %arg11[%c0_33, %c0_34, %c0_35], %52 {strides = array<i32>} : memref<4x8x1xf32, #tpu.memory_space<vmem>>, vector<1x8x1xf32>,
    %53 = vector.extract_strided_slice %4 {offsets = [0, 8], sizes = [8, 8], strides = [1, 1]} : vector<8x32xbf16> to vector<8x8xbf16>
    %54 = vector.extract_strided_slice %6 {offsets = [0, 8], sizes = [8, 8], strides = [1, 1]} : vector<8x32xbf16> to vector<8x8xbf16>
    %cst_36 = arith.constant dense<0.000000e+00> : vector<8x8xf32>
    %55 = tpu.matmul %53, %54, %cst_36 {dimension_numbers = #tpu.dot_dimension_numbers<[1], [1], [0], [0], [0, 0, 1, 0], [], []>} : vector<8x8xbf16>, vector<8x8xbf16>, vector<8x8xf32> -> vector<8x8xf32>
    %cst_37 = arith.constant 0.353553385 : f32
    %56 = vector.broadcast %cst_37 : f32 to vector<8x8xf32>
    %57 = arith.mulf %55, %56 : vector<8x8xf32>
    %cst_38 = arith.constant 0.000000e+00 : bf16
    %58 = vector.broadcast %cst_38 : bf16 to vector<8x8xbf16>
    %59 = arith.cmpf oeq, %10, %58 : vector<8x8xbf16>
    %cst_39 = arith.constant -1.000000e+09 : f32
    %60 = vector.broadcast %cst_39 : f32 to vector<8x8xf32>
    %61 = arith.select %59, %60, %57 : vector<8x8xi1>, vector<8x8xf32>
    %c1 = arith.constant 1 : index
    %c0_40 = arith.constant 0 : index
    %c0_41 = arith.constant 0 : index
    %62 = vector.load %arg11[%c1, %c0_40, %c0_41] : memref<4x8x1xf32, #tpu.memory_space<vmem>>, vector<1x8x1xf32>
    %63 = vector.shape_cast %62 : vector<1x8x1xf32> to vector<8x1xf32>
    %cst_42 = arith.constant dense<0xFF800000> : vector<8xf32>
    %64 = vector.multi_reduction <maximumf>, %61, %cst_42 [1] : vector<8x8xf32> to vector<8xf32>
    %65 = vector.shape_cast %64 : vector<8xf32> to vector<8x1xf32>
    %66 = arith.maximumf %63, %65 : vector<8x1xf32>
    %67 = arith.subf %63, %66 : vector<8x1xf32>
    %68 = math.exp %67 : vector<8x1xf32>
    %69 = vector.broadcast %66 : vector<8x1xf32> to vector<8x8xf32>
    %70 = arith.subf %61, %69 : vector<8x8xf32>
    %71 = math.exp %70 : vector<8x8xf32>
    %c1_43 = arith.constant 1 : index
    %c0_44 = arith.constant 0 : index
    %c0_45 = arith.constant 0 : index
    %72 = vector.load %arg12[%c1_43, %c0_44, %c0_45] : memref<4x8x1xf32, #tpu.memory_space<vmem>>, vector<1x8x1xf32>
    %73 = vector.shape_cast %72 : vector<1x8x1xf32> to vector<8x1xf32>
    %74 = arith.mulf %68, %73 : vector<8x1xf32>
    %cst_46 = arith.constant dense<0.000000e+00> : vector<8xf32>
    %75 = vector.multi_reduction <add>, %71, %cst_46 [1] : vector<8x8xf32> to vector<8xf32>
    %76 = vector.shape_cast %75 : vector<8xf32> to vector<8x1xf32>
    %77 = arith.addf %74, %76 : vector<8x1xf32>
    %c1_47 = arith.constant 1 : index
    %c0_48 = arith.constant 0 : index
    %c0_49 = arith.constant 0 : index
    %78 = vector.load %arg12[%c1_47, %c0_48, %c0_49] : memref<4x8x1xf32, #tpu.memory_space<vmem>>, vector<1x8x1xf32>
    %79 = vector.shape_cast %78 : vector<1x8x1xf32> to vector<8x1xf32>
    %80 = vector.shape_cast %77 : vector<8x1xf32> to vector<1x8x1xf32>
    tpu.vector_store %arg12[%c1_47, %c0_48, %c0_49], %80 {strides = array<i32>} : memref<4x8x1xf32, #tpu.memory_space<vmem>>, vector<1x8x1xf32>,
    %81 = arith.truncf %71 : vector<8x8xf32> to vector<8x8xbf16>
    %82 = vector.extract_strided_slice %8 {offsets = [0, 8], sizes = [8, 8], strides = [1, 1]} : vector<8x32xbf16> to vector<8x8xbf16>
    %cst_50 = arith.constant dense<0.000000e+00> : vector<8x8xf32>
    %83 = tpu.matmul %81, %82, %cst_50 {dimension_numbers = #tpu.dot_dimension_numbers<[1], [0], [0], [1], [0, 0, 1, 1], [], []>} : vector<8x8xbf16>, vector<8x8xbf16>, vector<8x8xf32> -> vector<8x8xf32>
    %c1_51 = arith.constant 1 : index
    %c0_52 = arith.constant 0 : index
    %c0_53 = arith.constant 0 : index
    %84 = vector.load %arg13[%c1_51, %c0_52, %c0_53] : memref<4x8x8xf32, #tpu.memory_space<vmem>>, vector<1x8x8xf32>
    %85 = vector.shape_cast %84 : vector<1x8x8xf32> to vector<8x8xf32>
    %86 = vector.broadcast %68 : vector<8x1xf32> to vector<8x8xf32>
    %87 = arith.mulf %86, %85 : vector<8x8xf32>
    %88 = arith.addf %87, %83 : vector<8x8xf32>
    %c1_54 = arith.constant 1 : index
    %c0_55 = arith.constant 0 : index
    %c0_56 = arith.constant 0 : index
    %89 = vector.load %arg13[%c1_54, %c0_55, %c0_56] : memref<4x8x8xf32, #tpu.memory_space<vmem>>, vector<1x8x8xf32>
    %90 = vector.shape_cast %89 : vector<1x8x8xf32> to vector<8x8xf32>
    %91 = vector.shape_cast %88 : vector<8x8xf32> to vector<1x8x8xf32>
    tpu.vector_store %arg13[%c1_54, %c0_55, %c0_56], %91 {strides = array<i32>} : memref<4x8x8xf32, #tpu.memory_space<vmem>>, vector<1x8x8xf32>,
    %c1_57 = arith.constant 1 : index
    %c0_58 = arith.constant 0 : index
    %c0_59 = arith.constant 0 : index
    %92 = vector.load %arg11[%c1_57, %c0_58, %c0_59] : memref<4x8x1xf32, #tpu.memory_space<vmem>>, vector<1x8x1xf32>
    %93 = vector.shape_cast %92 : vector<1x8x1xf32> to vector<8x1xf32>
    %94 = vector.shape_cast %66 : vector<8x1xf32> to vector<1x8x1xf32>
    tpu.vector_store %arg11[%c1_57, %c0_58, %c0_59], %94 {strides = array<i32>} : memref<4x8x1xf32, #tpu.memory_space<vmem>>, vector<1x8x1xf32>,
    %95 = vector.extract_strided_slice %4 {offsets = [0, 16], sizes = [8, 8], strides = [1, 1]} : vector<8x32xbf16> to vector<8x8xbf16>
    %96 = vector.extract_strided_slice %6 {offsets = [0, 16], sizes = [8, 8], strides = [1, 1]} : vector<8x32xbf16> to vector<8x8xbf16>
    %cst_60 = arith.constant dense<0.000000e+00> : vector<8x8xf32>
    %97 = tpu.matmul %95, %96, %cst_60 {dimension_numbers = #tpu.dot_dimension_numbers<[1], [1], [0], [0], [0, 0, 1, 0], [], []>} : vector<8x8xbf16>, vector<8x8xbf16>, vector<8x8xf32> -> vector<8x8xf32>
    %cst_61 = arith.constant 0.353553385 : f32
    %98 = vector.broadcast %cst_61 : f32 to vector<8x8xf32>
    %99 = arith.mulf %97, %98 : vector<8x8xf32>
    %cst_62 = arith.constant 0.000000e+00 : bf16
    %100 = vector.broadcast %cst_62 : bf16 to vector<8x8xbf16>
    %101 = arith.cmpf oeq, %10, %100 : vector<8x8xbf16>
    %cst_63 = arith.constant -1.000000e+09 : f32
    %102 = vector.broadcast %cst_63 : f32 to vector<8x8xf32>
    %103 = arith.select %101, %102, %99 : vector<8x8xi1>, vector<8x8xf32>
    %c2 = arith.constant 2 : index
    %c0_64 = arith.constant 0 : index
    %c0_65 = arith.constant 0 : index
    %104 = vector.load %arg11[%c2, %c0_64, %c0_65] : memref<4x8x1xf32, #tpu.memory_space<vmem>>, vector<1x8x1xf32>
    %105 = vector.shape_cast %104 : vector<1x8x1xf32> to vector<8x1xf32>
    %cst_66 = arith.constant dense<0xFF800000> : vector<8xf32>
    %106 = vector.multi_reduction <maximumf>, %103, %cst_66 [1] : vector<8x8xf32> to vector<8xf32>
    %107 = vector.shape_cast %106 : vector<8xf32> to vector<8x1xf32>
    %108 = arith.maximumf %105, %107 : vector<8x1xf32>
    %109 = arith.subf %105, %108 : vector<8x1xf32>
    %110 = math.exp %109 : vector<8x1xf32>
    %111 = vector.broadcast %108 : vector<8x1xf32> to vector<8x8xf32>
    %112 = arith.subf %103, %111 : vector<8x8xf32>
    %113 = math.exp %112 : vector<8x8xf32>
    %c2_67 = arith.constant 2 : index
    %c0_68 = arith.constant 0 : index
    %c0_69 = arith.constant 0 : index
    %114 = vector.load %arg12[%c2_67, %c0_68, %c0_69] : memref<4x8x1xf32, #tpu.memory_space<vmem>>, vector<1x8x1xf32>
    %115 = vector.shape_cast %114 : vector<1x8x1xf32> to vector<8x1xf32>
    %116 = arith.mulf %110, %115 : vector<8x1xf32>
    %cst_70 = arith.constant dense<0.000000e+00> : vector<8xf32>
    %117 = vector.multi_reduction <add>, %113, %cst_70 [1] : vector<8x8xf32> to vector<8xf32>
    %118 = vector.shape_cast %117 : vector<8xf32> to vector<8x1xf32>
    %119 = arith.addf %116, %118 : vector<8x1xf32>
    %c2_71 = arith.constant 2 : index
    %c0_72 = arith.constant 0 : index
    %c0_73 = arith.constant 0 : index
    %120 = vector.load %arg12[%c2_71, %c0_72, %c0_73] : memref<4x8x1xf32, #tpu.memory_space<vmem>>, vector<1x8x1xf32>
    %121 = vector.shape_cast %120 : vector<1x8x1xf32> to vector<8x1xf32>
    %122 = vector.shape_cast %119 : vector<8x1xf32> to vector<1x8x1xf32>
    tpu.vector_store %arg12[%c2_71, %c0_72, %c0_73], %122 {strides = array<i32>} : memref<4x8x1xf32, #tpu.memory_space<vmem>>, vector<1x8x1xf32>,
    %123 = arith.truncf %113 : vector<8x8xf32> to vector<8x8xbf16>
    %124 = vector.extract_strided_slice %8 {offsets = [0, 16], sizes = [8, 8], strides = [1, 1]} : vector<8x32xbf16> to vector<8x8xbf16>
    %cst_74 = arith.constant dense<0.000000e+00> : vector<8x8xf32>
    %125 = tpu.matmul %123, %124, %cst_74 {dimension_numbers = #tpu.dot_dimension_numbers<[1], [0], [0], [1], [0, 0, 1, 1], [], []>} : vector<8x8xbf16>, vector<8x8xbf16>, vector<8x8xf32> -> vector<8x8xf32>
    %c2_75 = arith.constant 2 : index
    %c0_76 = arith.constant 0 : index
    %c0_77 = arith.constant 0 : index
    %126 = vector.load %arg13[%c2_75, %c0_76, %c0_77] : memref<4x8x8xf32, #tpu.memory_space<vmem>>, vector<1x8x8xf32>
    %127 = vector.shape_cast %126 : vector<1x8x8xf32> to vector<8x8xf32>
    %128 = vector.broadcast %110 : vector<8x1xf32> to vector<8x8xf32>
    %129 = arith.mulf %128, %127 : vector<8x8xf32>
    %130 = arith.addf %129, %125 : vector<8x8xf32>
    %c2_78 = arith.constant 2 : index
    %c0_79 = arith.constant 0 : index
    %c0_80 = arith.constant 0 : index
    %131 = vector.load %arg13[%c2_78, %c0_79, %c0_80] : memref<4x8x8xf32, #tpu.memory_space<vmem>>, vector<1x8x8xf32>
    %132 = vector.shape_cast %131 : vector<1x8x8xf32> to vector<8x8xf32>
    %133 = vector.shape_cast %130 : vector<8x8xf32> to vector<1x8x8xf32>
    tpu.vector_store %arg13[%c2_78, %c0_79, %c0_80], %133 {strides = array<i32>} : memref<4x8x8xf32, #tpu.memory_space<vmem>>, vector<1x8x8xf32>,
    %c2_81 = arith.constant 2 : index
    %c0_82 = arith.constant 0 : index
    %c0_83 = arith.constant 0 : index
    %134 = vector.load %arg11[%c2_81, %c0_82, %c0_83] : memref<4x8x1xf32, #tpu.memory_space<vmem>>, vector<1x8x1xf32>
    %135 = vector.shape_cast %134 : vector<1x8x1xf32> to vector<8x1xf32>
    %136 = vector.shape_cast %108 : vector<8x1xf32> to vector<1x8x1xf32>
    tpu.vector_store %arg11[%c2_81, %c0_82, %c0_83], %136 {strides = array<i32>} : memref<4x8x1xf32, #tpu.memory_space<vmem>>, vector<1x8x1xf32>,
    %137 = vector.extract_strided_slice %4 {offsets = [0, 24], sizes = [8, 8], strides = [1, 1]} : vector<8x32xbf16> to vector<8x8xbf16>
    %138 = vector.extract_strided_slice %6 {offsets = [0, 24], sizes = [8, 8], strides = [1, 1]} : vector<8x32xbf16> to vector<8x8xbf16>
    %cst_84 = arith.constant dense<0.000000e+00> : vector<8x8xf32>
    %139 = tpu.matmul %137, %138, %cst_84 {dimension_numbers = #tpu.dot_dimension_numbers<[1], [1], [0], [0], [0, 0, 1, 0], [], []>} : vector<8x8xbf16>, vector<8x8xbf16>, vector<8x8xf32> -> vector<8x8xf32>
    %cst_85 = arith.constant 0.353553385 : f32
    %140 = vector.broadcast %cst_85 : f32 to vector<8x8xf32>
    %141 = arith.mulf %139, %140 : vector<8x8xf32>
    %cst_86 = arith.constant 0.000000e+00 : bf16
    %142 = vector.broadcast %cst_86 : bf16 to vector<8x8xbf16>
    %143 = arith.cmpf oeq, %10, %142 : vector<8x8xbf16>
    %cst_87 = arith.constant -1.000000e+09 : f32
    %144 = vector.broadcast %cst_87 : f32 to vector<8x8xf32>
    %145 = arith.select %143, %144, %141 : vector<8x8xi1>, vector<8x8xf32>
    %c3 = arith.constant 3 : index
    %c0_88 = arith.constant 0 : index
    %c0_89 = arith.constant 0 : index
    %146 = vector.load %arg11[%c3, %c0_88, %c0_89] : memref<4x8x1xf32, #tpu.memory_space<vmem>>, vector<1x8x1xf32>
    %147 = vector.shape_cast %146 : vector<1x8x1xf32> to vector<8x1xf32>
    %cst_90 = arith.constant dense<0xFF800000> : vector<8xf32>
    %148 = vector.multi_reduction <maximumf>, %145, %cst_90 [1] : vector<8x8xf32> to vector<8xf32>
    %149 = vector.shape_cast %148 : vector<8xf32> to vector<8x1xf32>
    %150 = arith.maximumf %147, %149 : vector<8x1xf32>
    %151 = arith.subf %147, %150 : vector<8x1xf32>
    %152 = math.exp %151 : vector<8x1xf32>
    %153 = vector.broadcast %150 : vector<8x1xf32> to vector<8x8xf32>
    %154 = arith.subf %145, %153 : vector<8x8xf32>
    %155 = math.exp %154 : vector<8x8xf32>
    %c3_91 = arith.constant 3 : index
    %c0_92 = arith.constant 0 : index
    %c0_93 = arith.constant 0 : index
    %156 = vector.load %arg12[%c3_91, %c0_92, %c0_93] : memref<4x8x1xf32, #tpu.memory_space<vmem>>, vector<1x8x1xf32>
    %157 = vector.shape_cast %156 : vector<1x8x1xf32> to vector<8x1xf32>
    %158 = arith.mulf %152, %157 : vector<8x1xf32>
    %cst_94 = arith.constant dense<0.000000e+00> : vector<8xf32>
    %159 = vector.multi_reduction <add>, %155, %cst_94 [1] : vector<8x8xf32> to vector<8xf32>
    %160 = vector.shape_cast %159 : vector<8xf32> to vector<8x1xf32>
    %161 = arith.addf %158, %160 : vector<8x1xf32>
    %c3_95 = arith.constant 3 : index
    %c0_96 = arith.constant 0 : index
    %c0_97 = arith.constant 0 : index
    %162 = vector.load %arg12[%c3_95, %c0_96, %c0_97] : memref<4x8x1xf32, #tpu.memory_space<vmem>>, vector<1x8x1xf32>
    %163 = vector.shape_cast %162 : vector<1x8x1xf32> to vector<8x1xf32>
    %164 = vector.shape_cast %161 : vector<8x1xf32> to vector<1x8x1xf32>
    tpu.vector_store %arg12[%c3_95, %c0_96, %c0_97], %164 {strides = array<i32>} : memref<4x8x1xf32, #tpu.memory_space<vmem>>, vector<1x8x1xf32>,
    %165 = arith.truncf %155 : vector<8x8xf32> to vector<8x8xbf16>
    %166 = vector.extract_strided_slice %8 {offsets = [0, 24], sizes = [8, 8], strides = [1, 1]} : vector<8x32xbf16> to vector<8x8xbf16>
    %cst_98 = arith.constant dense<0.000000e+00> : vector<8x8xf32>
    %167 = tpu.matmul %165, %166, %cst_98 {dimension_numbers = #tpu.dot_dimension_numbers<[1], [0], [0], [1], [0, 0, 1, 1], [], []>} : vector<8x8xbf16>, vector<8x8xbf16>, vector<8x8xf32> -> vector<8x8xf32>
    %c3_99 = arith.constant 3 : index
    %c0_100 = arith.constant 0 : index
    %c0_101 = arith.constant 0 : index
    %168 = vector.load %arg13[%c3_99, %c0_100, %c0_101] : memref<4x8x8xf32, #tpu.memory_space<vmem>>, vector<1x8x8xf32>
    %169 = vector.shape_cast %168 : vector<1x8x8xf32> to vector<8x8xf32>
    %170 = vector.broadcast %152 : vector<8x1xf32> to vector<8x8xf32>
    %171 = arith.mulf %170, %169 : vector<8x8xf32>
    %172 = arith.addf %171, %167 : vector<8x8xf32>
    %c3_102 = arith.constant 3 : index
    %c0_103 = arith.constant 0 : index
    %c0_104 = arith.constant 0 : index
    %173 = vector.load %arg13[%c3_102, %c0_103, %c0_104] : memref<4x8x8xf32, #tpu.memory_space<vmem>>, vector<1x8x8xf32>
    %174 = vector.shape_cast %173 : vector<1x8x8xf32> to vector<8x8xf32>
    %175 = vector.shape_cast %172 : vector<8x8xf32> to vector<1x8x8xf32>
    tpu.vector_store %arg13[%c3_102, %c0_103, %c0_104], %175 {strides = array<i32>} : memref<4x8x8xf32, #tpu.memory_space<vmem>>, vector<1x8x8xf32>,
    %c3_105 = arith.constant 3 : index
    %c0_106 = arith.constant 0 : index
    %c0_107 = arith.constant 0 : index
    %176 = vector.load %arg11[%c3_105, %c0_106, %c0_107] : memref<4x8x1xf32, #tpu.memory_space<vmem>>, vector<1x8x1xf32>
    %177 = vector.shape_cast %176 : vector<1x8x1xf32> to vector<8x1xf32>
    %178 = vector.shape_cast %150 : vector<8x1xf32> to vector<1x8x1xf32>
    tpu.vector_store %arg11[%c3_105, %c0_106, %c0_107], %178 {strides = array<i32>} : memref<4x8x1xf32, #tpu.memory_space<vmem>>, vector<1x8x1xf32>,
    %c0_i32_108 = arith.constant 0 : i32
    %179 = arith.cmpi eq, %arg2, %c0_i32_108 : i32
    %180 = arith.extui %179 : i1 to i32
    %c0_i32_109 = arith.constant 0 : i32
    %181 = arith.cmpi ne, %180, %c0_i32_109 : i32
    scf.if %181 {
      %c0_110 = arith.constant 0 : index
      %c0_111 = arith.constant 0 : index
      %c0_112 = arith.constant 0 : index
      %182 = vector.load %arg13[%c0_110, %c0_111, %c0_112] : memref<4x8x8xf32, #tpu.memory_space<vmem>>, vector<1x8x8xf32>
      %183 = vector.shape_cast %182 : vector<1x8x8xf32> to vector<8x8xf32>
      %c0_113 = arith.constant 0 : index
      %c0_114 = arith.constant 0 : index
      %c0_115 = arith.constant 0 : index
      %184 = vector.load %arg12[%c0_113, %c0_114, %c0_115] : memref<4x8x1xf32, #tpu.memory_space<vmem>>, vector<1x8x1xf32>
      %185 = vector.shape_cast %184 : vector<1x8x1xf32> to vector<8x1xf32>
      %186 = tpu.reciprocal %185 : vector<8x1xf32> -> vector<8x1xf32>
      %187 = vector.broadcast %186 : vector<8x1xf32> to vector<8x8xf32>
      %188 = arith.mulf %183, %187 : vector<8x8xf32>
      %c1_116 = arith.constant 1 : index
      %c0_117 = arith.constant 0 : index
      %c0_118 = arith.constant 0 : index
      %189 = vector.load %arg13[%c1_116, %c0_117, %c0_118] : memref<4x8x8xf32, #tpu.memory_space<vmem>>, vector<1x8x8xf32>
      %190 = vector.shape_cast %189 : vector<1x8x8xf32> to vector<8x8xf32>
      %c1_119 = arith.constant 1 : index
      %c0_120 = arith.constant 0 : index
      %c0_121 = arith.constant 0 : index
      %191 = vector.load %arg12[%c1_119, %c0_120, %c0_121] : memref<4x8x1xf32, #tpu.memory_space<vmem>>, vector<1x8x1xf32>
      %192 = vector.shape_cast %191 : vector<1x8x1xf32> to vector<8x1xf32>
      %193 = tpu.reciprocal %192 : vector<8x1xf32> -> vector<8x1xf32>
      %194 = vector.broadcast %193 : vector<8x1xf32> to vector<8x8xf32>
      %195 = arith.mulf %190, %194 : vector<8x8xf32>
      %c2_122 = arith.constant 2 : index
      %c0_123 = arith.constant 0 : index
      %c0_124 = arith.constant 0 : index
      %196 = vector.load %arg13[%c2_122, %c0_123, %c0_124] : memref<4x8x8xf32, #tpu.memory_space<vmem>>, vector<1x8x8xf32>
      %197 = vector.shape_cast %196 : vector<1x8x8xf32> to vector<8x8xf32>
      %c2_125 = arith.constant 2 : index
      %c0_126 = arith.constant 0 : index
      %c0_127 = arith.constant 0 : index
      %198 = vector.load %arg12[%c2_125, %c0_126, %c0_127] : memref<4x8x1xf32, #tpu.memory_space<vmem>>, vector<1x8x1xf32>
      %199 = vector.shape_cast %198 : vector<1x8x1xf32> to vector<8x1xf32>
      %200 = tpu.reciprocal %199 : vector<8x1xf32> -> vector<8x1xf32>
      %201 = vector.broadcast %200 : vector<8x1xf32> to vector<8x8xf32>
      %202 = arith.mulf %197, %201 : vector<8x8xf32>
      %c3_128 = arith.constant 3 : index
      %c0_129 = arith.constant 0 : index
      %c0_130 = arith.constant 0 : index
      %203 = vector.load %arg13[%c3_128, %c0_129, %c0_130] : memref<4x8x8xf32, #tpu.memory_space<vmem>>, vector<1x8x8xf32>
      %204 = vector.shape_cast %203 : vector<1x8x8xf32> to vector<8x8xf32>
      %c3_131 = arith.constant 3 : index
      %c0_132 = arith.constant 0 : index
      %c0_133 = arith.constant 0 : index
      %205 = vector.load %arg12[%c3_131, %c0_132, %c0_133] : memref<4x8x1xf32, #tpu.memory_space<vmem>>, vector<1x8x1xf32>
      %206 = vector.shape_cast %205 : vector<1x8x1xf32> to vector<8x1xf32>
      %207 = tpu.reciprocal %206 : vector<8x1xf32> -> vector<8x1xf32>
      %208 = vector.broadcast %207 : vector<8x1xf32> to vector<8x8xf32>
      %209 = arith.mulf %204, %208 : vector<8x8xf32>
      %210 = tpu.concatenate %188, %195, %202, %209 in 1 : vector<8x8xf32>, vector<8x8xf32>, vector<8x8xf32>, vector<8x8xf32> -> vector<8x32xf32>
      %211 = arith.truncf %210 : vector<8x32xf32> to vector<8x32xbf16>
      %c0_134 = arith.constant 0 : index
      %c0_135 = arith.constant 0 : index
      %212 = vector.load %arg7[%c0_134, %c0_135] : memref<32x32xbf16, #tpu.memory_space<vmem>>, vector<32x32xbf16>
      %cst_136 = arith.constant dense<0.000000e+00> : vector<8x32xf32>
      %213 = tpu.matmul %211, %212, %cst_136 {dimension_numbers = #tpu.dot_dimension_numbers<[1], [0], [0], [1], [0, 0, 1, 1], [], []>} : vector<8x32xbf16>, vector<32x32xbf16>, vector<8x32xf32> -> vector<8x32xf32>
      %c0_137 = arith.constant 0 : index
      %c0_138 = arith.constant 0 : index
      %214 = vector.load %arg8[%c0_137, %c0_138] : memref<1x32xf32, #tpu.memory_space<vmem>>, vector<1x32xf32>
      %215 = vector.broadcast %214 : vector<1x32xf32> to vector<8x32xf32>
      %216 = arith.addf %213, %215 : vector<8x32xf32>
      %c0_139 = arith.constant 0 : index
      %c0_140 = arith.constant 0 : index
      %c0_141 = arith.constant 0 : index
      %217 = vector.load %arg9[%c0_139, %c0_140, %c0_141] : memref<1x8x32xf32, #tpu.memory_space<vmem>>, vector<1x8x32xf32>
      %218 = vector.shape_cast %217 : vector<1x8x32xf32> to vector<8x32xf32>
      %219 = arith.addf %216, %218 : vector<8x32xf32>
      %c0_142 = arith.constant 0 : index
      %c0_143 = arith.constant 0 : index
      %c0_144 = arith.constant 0 : index
      %220 = vector.load %arg10[%c0_142, %c0_143, %c0_144] : memref<1x8x32xf32, #tpu.memory_space<vmem>>, vector<1x8x32xf32>
      %221 = vector.shape_cast %220 : vector<1x8x32xf32> to vector<8x32xf32>
      %222 = vector.shape_cast %219 : vector<8x32xf32> to vector<1x8x32xf32>
      tpu.vector_store %arg10[%c0_142, %c0_143, %c0_144], %222 {strides = array<i32>} : memref<1x8x32xf32, #tpu.memory_space<vmem>>, vector<1x8x32xf32>,
    } else {
    }
    return
  }
  func.func @transform_0(%arg0: i32, %arg1: i32, %arg2: i32) -> (i32, i32, i32) {
    %c0_i32 = arith.constant 0 : i32
    %c0_i32_0 = arith.constant 0 : i32
    return %arg0, %arg1, %c0_i32 : i32, i32, i32
  }
  func.func @transform_1(%arg0: i32, %arg1: i32, %arg2: i32) -> (i32, i32, i32) {
    %c0_i32 = arith.constant 0 : i32
    %c0_i32_0 = arith.constant 0 : i32
    return %arg0, %arg2, %c0_i32 : i32, i32, i32
  }
  func.func @transform_2(%arg0: i32, %arg1: i32, %arg2: i32) -> (i32, i32, i32) {
    %c0_i32 = arith.constant 0 : i32
    %c0_i32_0 = arith.constant 0 : i32
    return %arg0, %arg2, %c0_i32 : i32, i32, i32
  }
  func.func @transform_3(%arg0: i32, %arg1: i32, %arg2: i32) -> (i32, i32, i32) {
    %c0_i32 = arith.constant 0 : i32
    %c0_i32_0 = arith.constant 0 : i32
    return %c0_i32, %arg1, %arg2 : i32, i32, i32
  }
  func.func @transform_4(%arg0: i32, %arg1: i32, %arg2: i32) -> (i32, i32) {
    %c0_i32 = arith.constant 0 : i32
    %c0_i32_0 = arith.constant 0 : i32
    %c0_i32_1 = arith.constant 0 : i32
    return %c0_i32, %c0_i32_0 : i32, i32
  }
  func.func @transform_5(%arg0: i32, %arg1: i32, %arg2: i32) -> (i32, i32) {
    %c0_i32 = arith.constant 0 : i32
    %c0_i32_0 = arith.constant 0 : i32
    %c0_i32_1 = arith.constant 0 : i32
    return %c0_i32, %c0_i32_0 : i32, i32
  }
  func.func @transform_6(%arg0: i32, %arg1: i32, %arg2: i32) -> (i32, i32, i32) {
    %c0_i32 = arith.constant 0 : i32
    %c0_i32_0 = arith.constant 0 : i32
    return %arg0, %arg1, %c0_i32 : i32, i32, i32
  }
  func.func @transform_7(%arg0: i32, %arg1: i32, %arg2: i32) -> (i32, i32, i32) {
    %c0_i32 = arith.constant 0 : i32
    %c0_i32_0 = arith.constant 0 : i32
    return %arg0, %arg1, %c0_i32 : i32, i32, i32
  }
}

module attributes {stable_mosaic.version = 11 : i64} {
  func.func @_attn_kernel(%arg0: i32, %arg1: i32, %arg2: i32, %arg3: memref<1x8x32xbf16, #tpu.memory_space<vmem>>, %arg4: memref<1x8x32xbf16, #tpu.memory_space<vmem>>, %arg5: memref<1x8x32xbf16, #tpu.memory_space<vmem>>, %arg6: memref<1x1x8xbf16, #tpu.memory_space<vmem>>, %arg7: memref<32x32xbf16, #tpu.memory_space<vmem>>, %arg8: memref<1x32xf32, #tpu.memory_space<vmem>>, %arg9: memref<1x8x32xf32, #tpu.memory_space<vmem>>, %arg10: memref<1x8x32xf32, #tpu.memory_space<vmem>>, %arg11: memref<4x8x1xf32, #tpu.memory_space<vmem>>, %arg12: memref<4x8x1xf32, #tpu.memory_space<vmem>>, %arg13: memref<4x8x8xf32, #tpu.memory_space<vmem>>) attributes {dimension_semantics = [#tpu.dimension_semantics<parallel>, #tpu.dimension_semantics<parallel>, #tpu.dimension_semantics<arbitrary>], iteration_bounds = array<i64: 2, 1, 1>, scalar_prefetch = 0 : i64, scratch_operands = 3 : i64, tpu.core_type = #tpu.core_type<tc>, window_params = [{transform_indices = @transform_0, window_bounds = array<i64: 1, 8, 32>}, {transform_indices = @transform_1, window_bounds = array<i64: 1, 8, 32>}, {transform_indices = @transform_2, window_bounds = array<i64: 1, 8, 32>}, {transform_indices = @transform_3, window_bounds = array<i64: 1, 1, 8>}, {pipeline_mode = #tpu.pipeline_mode<synchronous>, transform_indices = @transform_4, window_bounds = array<i64: 32, 32>}, {pipeline_mode = #tpu.pipeline_mode<synchronous>, transform_indices = @transform_5, window_bounds = array<i64: 1, 32>}, {transform_indices = @transform_6, window_bounds = array<i64: 1, 8, 32>}, {transform_indices = @transform_7, window_bounds = array<i64: 1, 8, 32>}]} {
    %c0_i32 = arith.constant 0 : i32
    %0 = arith.cmpi eq, %arg2, %c0_i32 : i32
    %1 = arith.extui %0 : i1 to i32
    %c0_i32_0 = arith.constant 0 : i32
    %2 = arith.cmpi ne, %1, %c0_i32_0 : i32
    scf.if %2 {
      %cst_110 = arith.constant 0xFF800000 : f32
      %190 = vector.broadcast %cst_110 : f32 to vector<4x8x1xf32>
      %c0_111 = arith.constant 0 : index
      %c0_112 = arith.constant 0 : index
      %c0_113 = arith.constant 0 : index
      %191 = vector.load %arg11[%c0_111, %c0_112, %c0_113] : memref<4x8x1xf32, #tpu.memory_space<vmem>>, vector<4x8x1xf32>
      tpu.vector_store %arg11[%c0_111, %c0_112, %c0_113], %190 {strides = array<i32>} : memref<4x8x1xf32, #tpu.memory_space<vmem>>, vector<4x8x1xf32>,
      %cst_114 = arith.constant 0.000000e+00 : f32
      %192 = vector.broadcast %cst_114 : f32 to vector<4x8x1xf32>
      %c0_115 = arith.constant 0 : index
      %c0_116 = arith.constant 0 : index
      %c0_117 = arith.constant 0 : index
      %193 = vector.load %arg12[%c0_115, %c0_116, %c0_117] : memref<4x8x1xf32, #tpu.memory_space<vmem>>, vector<4x8x1xf32>
      tpu.vector_store %arg12[%c0_115, %c0_116, %c0_117], %192 {strides = array<i32>} : memref<4x8x1xf32, #tpu.memory_space<vmem>>, vector<4x8x1xf32>,
      %cst_118 = arith.constant 0.000000e+00 : f32
      %194 = vector.broadcast %cst_118 : f32 to vector<4x8x8xf32>
      %c0_119 = arith.constant 0 : index
      %c0_120 = arith.constant 0 : index
      %c0_121 = arith.constant 0 : index
      %195 = vector.load %arg13[%c0_119, %c0_120, %c0_121] : memref<4x8x8xf32, #tpu.memory_space<vmem>>, vector<4x8x8xf32>
      tpu.vector_store %arg13[%c0_119, %c0_120, %c0_121], %194 {strides = array<i32>} : memref<4x8x8xf32, #tpu.memory_space<vmem>>, vector<4x8x8xf32>,
    } else {
    }
    %c0 = arith.constant 0 : index
    %c0_1 = arith.constant 0 : index
    %c0_2 = arith.constant 0 : index
    %3 = vector.load %arg3[%c0, %c0_1, %c0_2] : memref<1x8x32xbf16, #tpu.memory_space<vmem>>, vector<1x8x32xbf16>
    %4 = vector.shape_cast %3 : vector<1x8x32xbf16> to vector<8x32xbf16>
    %c0_3 = arith.constant 0 : index
    %c0_4 = arith.constant 0 : index
    %c0_5 = arith.constant 0 : index
    %5 = vector.load %arg4[%c0_3, %c0_4, %c0_5] : memref<1x8x32xbf16, #tpu.memory_space<vmem>>, vector<1x8x32xbf16>
    %6 = vector.shape_cast %5 : vector<1x8x32xbf16> to vector<8x32xbf16>
    %c0_6 = arith.constant 0 : index
    %c0_7 = arith.constant 0 : index
    %c0_8 = arith.constant 0 : index
    %7 = vector.load %arg5[%c0_6, %c0_7, %c0_8] : memref<1x8x32xbf16, #tpu.memory_space<vmem>>, vector<1x8x32xbf16>
    %8 = vector.shape_cast %7 : vector<1x8x32xbf16> to vector<8x32xbf16>
    %c0_9 = arith.constant 0 : index
    %c0_10 = arith.constant 0 : index
    %c0_11 = arith.constant 0 : index
    %9 = vector.load %arg6[%c0_9, %c0_10, %c0_11] : memref<1x1x8xbf16, #tpu.memory_space<vmem>>, vector<1x1x8xbf16>
    %10 = vector.shape_cast %9 : vector<1x1x8xbf16> to vector<1x8xbf16>
    %11 = vector.extract_strided_slice %4 {offsets = [0, 0], sizes = [8, 8], strides = [1, 1]} : vector<8x32xbf16> to vector<8x8xbf16>
    %12 = vector.extract_strided_slice %6 {offsets = [0, 0], sizes = [8, 8], strides = [1, 1]} : vector<8x32xbf16> to vector<8x8xbf16>
    %cst = arith.constant dense<0.000000e+00> : vector<8x8xf32>
    %13 = tpu.matmul %11, %12, %cst {dimension_numbers = #tpu.dot_dimension_numbers<[1], [1], [0], [0], [0, 0, 1, 0], [], []>} : vector<8x8xbf16>, vector<8x8xbf16>, vector<8x8xf32> -> vector<8x8xf32>
    %cst_12 = arith.constant 0.353553385 : f32
    %14 = vector.broadcast %cst_12 : f32 to vector<8x8xf32>
    %15 = arith.mulf %13, %14 : vector<8x8xf32>
    %cst_13 = arith.constant 0.000000e+00 : bf16
    %16 = vector.broadcast %cst_13 : bf16 to vector<1x8xbf16>
    %17 = arith.cmpf oeq, %10, %16 : vector<1x8xbf16>
    %cst_14 = arith.constant -1.000000e+09 : f32
    %18 = vector.shape_cast %17 : vector<1x8xi1> to vector<1x8xi1>
    %19 = vector.broadcast %18 : vector<1x8xi1> to vector<8x8xi1>
    %20 = vector.broadcast %cst_14 : f32 to vector<8x8xf32>
    %21 = arith.select %19, %20, %15 : vector<8x8xi1>, vector<8x8xf32>
    %c0_15 = arith.constant 0 : index
    %c0_16 = arith.constant 0 : index
    %c0_17 = arith.constant 0 : index
    %22 = vector.load %arg11[%c0_15, %c0_16, %c0_17] : memref<4x8x1xf32, #tpu.memory_space<vmem>>, vector<1x8x1xf32>
    %23 = vector.shape_cast %22 : vector<1x8x1xf32> to vector<8x1xf32>
    %cst_18 = arith.constant dense<0xFF800000> : vector<8xf32>
    %24 = vector.multi_reduction <maximumf>, %21, %cst_18 [1] : vector<8x8xf32> to vector<8xf32>
    %25 = vector.shape_cast %24 : vector<8xf32> to vector<8x1xf32>
    %26 = arith.maximumf %23, %25 : vector<8x1xf32>
    %27 = arith.subf %23, %26 : vector<8x1xf32>
    %28 = math.exp %27 : vector<8x1xf32>
    %29 = vector.broadcast %26 : vector<8x1xf32> to vector<8x8xf32>
    %30 = arith.subf %21, %29 : vector<8x8xf32>
    %31 = math.exp %30 : vector<8x8xf32>
    %c0_19 = arith.constant 0 : index
    %c0_20 = arith.constant 0 : index
    %c0_21 = arith.constant 0 : index
    %32 = vector.load %arg12[%c0_19, %c0_20, %c0_21] : memref<4x8x1xf32, #tpu.memory_space<vmem>>, vector<1x8x1xf32>
    %33 = vector.shape_cast %32 : vector<1x8x1xf32> to vector<8x1xf32>
    %34 = arith.mulf %28, %33 : vector<8x1xf32>
    %cst_22 = arith.constant dense<0.000000e+00> : vector<8xf32>
    %35 = vector.multi_reduction <add>, %31, %cst_22 [1] : vector<8x8xf32> to vector<8xf32>
    %36 = vector.shape_cast %35 : vector<8xf32> to vector<8x1xf32>
    %37 = arith.addf %34, %36 : vector<8x1xf32>
    %c0_23 = arith.constant 0 : index
    %c0_24 = arith.constant 0 : index
    %c0_25 = arith.constant 0 : index
    %38 = vector.load %arg12[%c0_23, %c0_24, %c0_25] : memref<4x8x1xf32, #tpu.memory_space<vmem>>, vector<1x8x1xf32>
    %39 = vector.shape_cast %38 : vector<1x8x1xf32> to vector<8x1xf32>
    %40 = vector.shape_cast %37 : vector<8x1xf32> to vector<1x8x1xf32>
    tpu.vector_store %arg12[%c0_23, %c0_24, %c0_25], %40 {strides = array<i32>} : memref<4x8x1xf32, #tpu.memory_space<vmem>>, vector<1x8x1xf32>,
    %41 = arith.truncf %31 : vector<8x8xf32> to vector<8x8xbf16>
    %42 = vector.extract_strided_slice %8 {offsets = [0, 0], sizes = [8, 8], strides = [1, 1]} : vector<8x32xbf16> to vector<8x8xbf16>
    %cst_26 = arith.constant dense<0.000000e+00> : vector<8x8xf32>
    %43 = tpu.matmul %41, %42, %cst_26 {dimension_numbers = #tpu.dot_dimension_numbers<[1], [0], [0], [1], [0, 0, 1, 1], [], []>} : vector<8x8xbf16>, vector<8x8xbf16>, vector<8x8xf32> -> vector<8x8xf32>
    %c0_27 = arith.constant 0 : index
    %c0_28 = arith.constant 0 : index
    %c0_29 = arith.constant 0 : index
    %44 = vector.load %arg13[%c0_27, %c0_28, %c0_29] : memref<4x8x8xf32, #tpu.memory_space<vmem>>, vector<1x8x8xf32>
    %45 = vector.shape_cast %44 : vector<1x8x8xf32> to vector<8x8xf32>
    %46 = vector.broadcast %28 : vector<8x1xf32> to vector<8x8xf32>
    %47 = arith.mulf %46, %45 : vector<8x8xf32>
    %48 = arith.addf %47, %43 : vector<8x8xf32>
    %c0_30 = arith.constant 0 : index
    %c0_31 = arith.constant 0 : index
    %c0_32 = arith.constant 0 : index
    %49 = vector.load %arg13[%c0_30, %c0_31, %c0_32] : memref<4x8x8xf32, #tpu.memory_space<vmem>>, vector<1x8x8xf32>
    %50 = vector.shape_cast %49 : vector<1x8x8xf32> to vector<8x8xf32>
    %51 = vector.shape_cast %48 : vector<8x8xf32> to vector<1x8x8xf32>
    tpu.vector_store %arg13[%c0_30, %c0_31, %c0_32], %51 {strides = array<i32>} : memref<4x8x8xf32, #tpu.memory_space<vmem>>, vector<1x8x8xf32>,
    %c0_33 = arith.constant 0 : index
    %c0_34 = arith.constant 0 : index
    %c0_35 = arith.constant 0 : index
    %52 = vector.load %arg11[%c0_33, %c0_34, %c0_35] : memref<4x8x1xf32, #tpu.memory_space<vmem>>, vector<1x8x1xf32>
    %53 = vector.shape_cast %52 : vector<1x8x1xf32> to vector<8x1xf32>
    %54 = vector.shape_cast %26 : vector<8x1xf32> to vector<1x8x1xf32>
    tpu.vector_store %arg11[%c0_33, %c0_34, %c0_35], %54 {strides = array<i32>} : memref<4x8x1xf32, #tpu.memory_space<vmem>>, vector<1x8x1xf32>,
    %55 = vector.extract_strided_slice %4 {offsets = [0, 8], sizes = [8, 8], strides = [1, 1]} : vector<8x32xbf16> to vector<8x8xbf16>
    %56 = vector.extract_strided_slice %6 {offsets = [0, 8], sizes = [8, 8], strides = [1, 1]} : vector<8x32xbf16> to vector<8x8xbf16>
    %cst_36 = arith.constant dense<0.000000e+00> : vector<8x8xf32>
    %57 = tpu.matmul %55, %56, %cst_36 {dimension_numbers = #tpu.dot_dimension_numbers<[1], [1], [0], [0], [0, 0, 1, 0], [], []>} : vector<8x8xbf16>, vector<8x8xbf16>, vector<8x8xf32> -> vector<8x8xf32>
    %cst_37 = arith.constant 0.353553385 : f32
    %58 = vector.broadcast %cst_37 : f32 to vector<8x8xf32>
    %59 = arith.mulf %57, %58 : vector<8x8xf32>
    %cst_38 = arith.constant 0.000000e+00 : bf16
    %60 = vector.broadcast %cst_38 : bf16 to vector<1x8xbf16>
    %61 = arith.cmpf oeq, %10, %60 : vector<1x8xbf16>
    %cst_39 = arith.constant -1.000000e+09 : f32
    %62 = vector.shape_cast %61 : vector<1x8xi1> to vector<1x8xi1>
    %63 = vector.broadcast %62 : vector<1x8xi1> to vector<8x8xi1>
    %64 = vector.broadcast %cst_39 : f32 to vector<8x8xf32>
    %65 = arith.select %63, %64, %59 : vector<8x8xi1>, vector<8x8xf32>
    %c1 = arith.constant 1 : index
    %c0_40 = arith.constant 0 : index
    %c0_41 = arith.constant 0 : index
    %66 = vector.load %arg11[%c1, %c0_40, %c0_41] : memref<4x8x1xf32, #tpu.memory_space<vmem>>, vector<1x8x1xf32>
    %67 = vector.shape_cast %66 : vector<1x8x1xf32> to vector<8x1xf32>
    %cst_42 = arith.constant dense<0xFF800000> : vector<8xf32>
    %68 = vector.multi_reduction <maximumf>, %65, %cst_42 [1] : vector<8x8xf32> to vector<8xf32>
    %69 = vector.shape_cast %68 : vector<8xf32> to vector<8x1xf32>
    %70 = arith.maximumf %67, %69 : vector<8x1xf32>
    %71 = arith.subf %67, %70 : vector<8x1xf32>
    %72 = math.exp %71 : vector<8x1xf32>
    %73 = vector.broadcast %70 : vector<8x1xf32> to vector<8x8xf32>
    %74 = arith.subf %65, %73 : vector<8x8xf32>
    %75 = math.exp %74 : vector<8x8xf32>
    %c1_43 = arith.constant 1 : index
    %c0_44 = arith.constant 0 : index
    %c0_45 = arith.constant 0 : index
    %76 = vector.load %arg12[%c1_43, %c0_44, %c0_45] : memref<4x8x1xf32, #tpu.memory_space<vmem>>, vector<1x8x1xf32>
    %77 = vector.shape_cast %76 : vector<1x8x1xf32> to vector<8x1xf32>
    %78 = arith.mulf %72, %77 : vector<8x1xf32>
    %cst_46 = arith.constant dense<0.000000e+00> : vector<8xf32>
    %79 = vector.multi_reduction <add>, %75, %cst_46 [1] : vector<8x8xf32> to vector<8xf32>
    %80 = vector.shape_cast %79 : vector<8xf32> to vector<8x1xf32>
    %81 = arith.addf %78, %80 : vector<8x1xf32>
    %c1_47 = arith.constant 1 : index
    %c0_48 = arith.constant 0 : index
    %c0_49 = arith.constant 0 : index
    %82 = vector.load %arg12[%c1_47, %c0_48, %c0_49] : memref<4x8x1xf32, #tpu.memory_space<vmem>>, vector<1x8x1xf32>
    %83 = vector.shape_cast %82 : vector<1x8x1xf32> to vector<8x1xf32>
    %84 = vector.shape_cast %81 : vector<8x1xf32> to vector<1x8x1xf32>
    tpu.vector_store %arg12[%c1_47, %c0_48, %c0_49], %84 {strides = array<i32>} : memref<4x8x1xf32, #tpu.memory_space<vmem>>, vector<1x8x1xf32>,
    %85 = arith.truncf %75 : vector<8x8xf32> to vector<8x8xbf16>
    %86 = vector.extract_strided_slice %8 {offsets = [0, 8], sizes = [8, 8], strides = [1, 1]} : vector<8x32xbf16> to vector<8x8xbf16>
    %cst_50 = arith.constant dense<0.000000e+00> : vector<8x8xf32>
    %87 = tpu.matmul %85, %86, %cst_50 {dimension_numbers = #tpu.dot_dimension_numbers<[1], [0], [0], [1], [0, 0, 1, 1], [], []>} : vector<8x8xbf16>, vector<8x8xbf16>, vector<8x8xf32> -> vector<8x8xf32>
    %c1_51 = arith.constant 1 : index
    %c0_52 = arith.constant 0 : index
    %c0_53 = arith.constant 0 : index
    %88 = vector.load %arg13[%c1_51, %c0_52, %c0_53] : memref<4x8x8xf32, #tpu.memory_space<vmem>>, vector<1x8x8xf32>
    %89 = vector.shape_cast %88 : vector<1x8x8xf32> to vector<8x8xf32>
    %90 = vector.broadcast %72 : vector<8x1xf32> to vector<8x8xf32>
    %91 = arith.mulf %90, %89 : vector<8x8xf32>
    %92 = arith.addf %91, %87 : vector<8x8xf32>
    %c1_54 = arith.constant 1 : index
    %c0_55 = arith.constant 0 : index
    %c0_56 = arith.constant 0 : index
    %93 = vector.load %arg13[%c1_54, %c0_55, %c0_56] : memref<4x8x8xf32, #tpu.memory_space<vmem>>, vector<1x8x8xf32>
    %94 = vector.shape_cast %93 : vector<1x8x8xf32> to vector<8x8xf32>
    %95 = vector.shape_cast %92 : vector<8x8xf32> to vector<1x8x8xf32>
    tpu.vector_store %arg13[%c1_54, %c0_55, %c0_56], %95 {strides = array<i32>} : memref<4x8x8xf32, #tpu.memory_space<vmem>>, vector<1x8x8xf32>,
    %c1_57 = arith.constant 1 : index
    %c0_58 = arith.constant 0 : index
    %c0_59 = arith.constant 0 : index
    %96 = vector.load %arg11[%c1_57, %c0_58, %c0_59] : memref<4x8x1xf32, #tpu.memory_space<vmem>>, vector<1x8x1xf32>
    %97 = vector.shape_cast %96 : vector<1x8x1xf32> to vector<8x1xf32>
    %98 = vector.shape_cast %70 : vector<8x1xf32> to vector<1x8x1xf32>
    tpu.vector_store %arg11[%c1_57, %c0_58, %c0_59], %98 {strides = array<i32>} : memref<4x8x1xf32, #tpu.memory_space<vmem>>, vector<1x8x1xf32>,
    %99 = vector.extract_strided_slice %4 {offsets = [0, 16], sizes = [8, 8], strides = [1, 1]} : vector<8x32xbf16> to vector<8x8xbf16>
    %100 = vector.extract_strided_slice %6 {offsets = [0, 16], sizes = [8, 8], strides = [1, 1]} : vector<8x32xbf16> to vector<8x8xbf16>
    %cst_60 = arith.constant dense<0.000000e+00> : vector<8x8xf32>
    %101 = tpu.matmul %99, %100, %cst_60 {dimension_numbers = #tpu.dot_dimension_numbers<[1], [1], [0], [0], [0, 0, 1, 0], [], []>} : vector<8x8xbf16>, vector<8x8xbf16>, vector<8x8xf32> -> vector<8x8xf32>
    %cst_61 = arith.constant 0.353553385 : f32
    %102 = vector.broadcast %cst_61 : f32 to vector<8x8xf32>
    %103 = arith.mulf %101, %102 : vector<8x8xf32>
    %cst_62 = arith.constant 0.000000e+00 : bf16
    %104 = vector.broadcast %cst_62 : bf16 to vector<1x8xbf16>
    %105 = arith.cmpf oeq, %10, %104 : vector<1x8xbf16>
    %cst_63 = arith.constant -1.000000e+09 : f32
    %106 = vector.shape_cast %105 : vector<1x8xi1> to vector<1x8xi1>
    %107 = vector.broadcast %106 : vector<1x8xi1> to vector<8x8xi1>
    %108 = vector.broadcast %cst_63 : f32 to vector<8x8xf32>
    %109 = arith.select %107, %108, %103 : vector<8x8xi1>, vector<8x8xf32>
    %c2 = arith.constant 2 : index
    %c0_64 = arith.constant 0 : index
    %c0_65 = arith.constant 0 : index
    %110 = vector.load %arg11[%c2, %c0_64, %c0_65] : memref<4x8x1xf32, #tpu.memory_space<vmem>>, vector<1x8x1xf32>
    %111 = vector.shape_cast %110 : vector<1x8x1xf32> to vector<8x1xf32>
    %cst_66 = arith.constant dense<0xFF800000> : vector<8xf32>
    %112 = vector.multi_reduction <maximumf>, %109, %cst_66 [1] : vector<8x8xf32> to vector<8xf32>
    %113 = vector.shape_cast %112 : vector<8xf32> to vector<8x1xf32>
    %114 = arith.maximumf %111, %113 : vector<8x1xf32>
    %115 = arith.subf %111, %114 : vector<8x1xf32>
    %116 = math.exp %115 : vector<8x1xf32>
    %117 = vector.broadcast %114 : vector<8x1xf32> to vector<8x8xf32>
    %118 = arith.subf %109, %117 : vector<8x8xf32>
    %119 = math.exp %118 : vector<8x8xf32>
    %c2_67 = arith.constant 2 : index
    %c0_68 = arith.constant 0 : index
    %c0_69 = arith.constant 0 : index
    %120 = vector.load %arg12[%c2_67, %c0_68, %c0_69] : memref<4x8x1xf32, #tpu.memory_space<vmem>>, vector<1x8x1xf32>
    %121 = vector.shape_cast %120 : vector<1x8x1xf32> to vector<8x1xf32>
    %122 = arith.mulf %116, %121 : vector<8x1xf32>
    %cst_70 = arith.constant dense<0.000000e+00> : vector<8xf32>
    %123 = vector.multi_reduction <add>, %119, %cst_70 [1] : vector<8x8xf32> to vector<8xf32>
    %124 = vector.shape_cast %123 : vector<8xf32> to vector<8x1xf32>
    %125 = arith.addf %122, %124 : vector<8x1xf32>
    %c2_71 = arith.constant 2 : index
    %c0_72 = arith.constant 0 : index
    %c0_73 = arith.constant 0 : index
    %126 = vector.load %arg12[%c2_71, %c0_72, %c0_73] : memref<4x8x1xf32, #tpu.memory_space<vmem>>, vector<1x8x1xf32>
    %127 = vector.shape_cast %126 : vector<1x8x1xf32> to vector<8x1xf32>
    %128 = vector.shape_cast %125 : vector<8x1xf32> to vector<1x8x1xf32>
    tpu.vector_store %arg12[%c2_71, %c0_72, %c0_73], %128 {strides = array<i32>} : memref<4x8x1xf32, #tpu.memory_space<vmem>>, vector<1x8x1xf32>,
    %129 = arith.truncf %119 : vector<8x8xf32> to vector<8x8xbf16>
    %130 = vector.extract_strided_slice %8 {offsets = [0, 16], sizes = [8, 8], strides = [1, 1]} : vector<8x32xbf16> to vector<8x8xbf16>
    %cst_74 = arith.constant dense<0.000000e+00> : vector<8x8xf32>
    %131 = tpu.matmul %129, %130, %cst_74 {dimension_numbers = #tpu.dot_dimension_numbers<[1], [0], [0], [1], [0, 0, 1, 1], [], []>} : vector<8x8xbf16>, vector<8x8xbf16>, vector<8x8xf32> -> vector<8x8xf32>
    %c2_75 = arith.constant 2 : index
    %c0_76 = arith.constant 0 : index
    %c0_77 = arith.constant 0 : index
    %132 = vector.load %arg13[%c2_75, %c0_76, %c0_77] : memref<4x8x8xf32, #tpu.memory_space<vmem>>, vector<1x8x8xf32>
    %133 = vector.shape_cast %132 : vector<1x8x8xf32> to vector<8x8xf32>
    %134 = vector.broadcast %116 : vector<8x1xf32> to vector<8x8xf32>
    %135 = arith.mulf %134, %133 : vector<8x8xf32>
    %136 = arith.addf %135, %131 : vector<8x8xf32>
    %c2_78 = arith.constant 2 : index
    %c0_79 = arith.constant 0 : index
    %c0_80 = arith.constant 0 : index
    %137 = vector.load %arg13[%c2_78, %c0_79, %c0_80] : memref<4x8x8xf32, #tpu.memory_space<vmem>>, vector<1x8x8xf32>
    %138 = vector.shape_cast %137 : vector<1x8x8xf32> to vector<8x8xf32>
    %139 = vector.shape_cast %136 : vector<8x8xf32> to vector<1x8x8xf32>
    tpu.vector_store %arg13[%c2_78, %c0_79, %c0_80], %139 {strides = array<i32>} : memref<4x8x8xf32, #tpu.memory_space<vmem>>, vector<1x8x8xf32>,
    %c2_81 = arith.constant 2 : index
    %c0_82 = arith.constant 0 : index
    %c0_83 = arith.constant 0 : index
    %140 = vector.load %arg11[%c2_81, %c0_82, %c0_83] : memref<4x8x1xf32, #tpu.memory_space<vmem>>, vector<1x8x1xf32>
    %141 = vector.shape_cast %140 : vector<1x8x1xf32> to vector<8x1xf32>
    %142 = vector.shape_cast %114 : vector<8x1xf32> to vector<1x8x1xf32>
    tpu.vector_store %arg11[%c2_81, %c0_82, %c0_83], %142 {strides = array<i32>} : memref<4x8x1xf32, #tpu.memory_space<vmem>>, vector<1x8x1xf32>,
    %143 = vector.extract_strided_slice %4 {offsets = [0, 24], sizes = [8, 8], strides = [1, 1]} : vector<8x32xbf16> to vector<8x8xbf16>
    %144 = vector.extract_strided_slice %6 {offsets = [0, 24], sizes = [8, 8], strides = [1, 1]} : vector<8x32xbf16> to vector<8x8xbf16>
    %cst_84 = arith.constant dense<0.000000e+00> : vector<8x8xf32>
    %145 = tpu.matmul %143, %144, %cst_84 {dimension_numbers = #tpu.dot_dimension_numbers<[1], [1], [0], [0], [0, 0, 1, 0], [], []>} : vector<8x8xbf16>, vector<8x8xbf16>, vector<8x8xf32> -> vector<8x8xf32>
    %cst_85 = arith.constant 0.353553385 : f32
    %146 = vector.broadcast %cst_85 : f32 to vector<8x8xf32>
    %147 = arith.mulf %145, %146 : vector<8x8xf32>
    %cst_86 = arith.constant 0.000000e+00 : bf16
    %148 = vector.broadcast %cst_86 : bf16 to vector<1x8xbf16>
    %149 = arith.cmpf oeq, %10, %148 : vector<1x8xbf16>
    %cst_87 = arith.constant -1.000000e+09 : f32
    %150 = vector.shape_cast %149 : vector<1x8xi1> to vector<1x8xi1>
    %151 = vector.broadcast %150 : vector<1x8xi1> to vector<8x8xi1>
    %152 = vector.broadcast %cst_87 : f32 to vector<8x8xf32>
    %153 = arith.select %151, %152, %147 : vector<8x8xi1>, vector<8x8xf32>
    %c3 = arith.constant 3 : index
    %c0_88 = arith.constant 0 : index
    %c0_89 = arith.constant 0 : index
    %154 = vector.load %arg11[%c3, %c0_88, %c0_89] : memref<4x8x1xf32, #tpu.memory_space<vmem>>, vector<1x8x1xf32>
    %155 = vector.shape_cast %154 : vector<1x8x1xf32> to vector<8x1xf32>
    %cst_90 = arith.constant dense<0xFF800000> : vector<8xf32>
    %156 = vector.multi_reduction <maximumf>, %153, %cst_90 [1] : vector<8x8xf32> to vector<8xf32>
    %157 = vector.shape_cast %156 : vector<8xf32> to vector<8x1xf32>
    %158 = arith.maximumf %155, %157 : vector<8x1xf32>
    %159 = arith.subf %155, %158 : vector<8x1xf32>
    %160 = math.exp %159 : vector<8x1xf32>
    %161 = vector.broadcast %158 : vector<8x1xf32> to vector<8x8xf32>
    %162 = arith.subf %153, %161 : vector<8x8xf32>
    %163 = math.exp %162 : vector<8x8xf32>
    %c3_91 = arith.constant 3 : index
    %c0_92 = arith.constant 0 : index
    %c0_93 = arith.constant 0 : index
    %164 = vector.load %arg12[%c3_91, %c0_92, %c0_93] : memref<4x8x1xf32, #tpu.memory_space<vmem>>, vector<1x8x1xf32>
    %165 = vector.shape_cast %164 : vector<1x8x1xf32> to vector<8x1xf32>
    %166 = arith.mulf %160, %165 : vector<8x1xf32>
    %cst_94 = arith.constant dense<0.000000e+00> : vector<8xf32>
    %167 = vector.multi_reduction <add>, %163, %cst_94 [1] : vector<8x8xf32> to vector<8xf32>
    %168 = vector.shape_cast %167 : vector<8xf32> to vector<8x1xf32>
    %169 = arith.addf %166, %168 : vector<8x1xf32>
    %c3_95 = arith.constant 3 : index
    %c0_96 = arith.constant 0 : index
    %c0_97 = arith.constant 0 : index
    %170 = vector.load %arg12[%c3_95, %c0_96, %c0_97] : memref<4x8x1xf32, #tpu.memory_space<vmem>>, vector<1x8x1xf32>
    %171 = vector.shape_cast %170 : vector<1x8x1xf32> to vector<8x1xf32>
    %172 = vector.shape_cast %169 : vector<8x1xf32> to vector<1x8x1xf32>
    tpu.vector_store %arg12[%c3_95, %c0_96, %c0_97], %172 {strides = array<i32>} : memref<4x8x1xf32, #tpu.memory_space<vmem>>, vector<1x8x1xf32>,
    %173 = arith.truncf %163 : vector<8x8xf32> to vector<8x8xbf16>
    %174 = vector.extract_strided_slice %8 {offsets = [0, 24], sizes = [8, 8], strides = [1, 1]} : vector<8x32xbf16> to vector<8x8xbf16>
    %cst_98 = arith.constant dense<0.000000e+00> : vector<8x8xf32>
    %175 = tpu.matmul %173, %174, %cst_98 {dimension_numbers = #tpu.dot_dimension_numbers<[1], [0], [0], [1], [0, 0, 1, 1], [], []>} : vector<8x8xbf16>, vector<8x8xbf16>, vector<8x8xf32> -> vector<8x8xf32>
    %c3_99 = arith.constant 3 : index
    %c0_100 = arith.constant 0 : index
    %c0_101 = arith.constant 0 : index
    %176 = vector.load %arg13[%c3_99, %c0_100, %c0_101] : memref<4x8x8xf32, #tpu.memory_space<vmem>>, vector<1x8x8xf32>
    %177 = vector.shape_cast %176 : vector<1x8x8xf32> to vector<8x8xf32>
    %178 = vector.broadcast %160 : vector<8x1xf32> to vector<8x8xf32>
    %179 = arith.mulf %178, %177 : vector<8x8xf32>
    %180 = arith.addf %179, %175 : vector<8x8xf32>
    %c3_102 = arith.constant 3 : index
    %c0_103 = arith.constant 0 : index
    %c0_104 = arith.constant 0 : index
    %181 = vector.load %arg13[%c3_102, %c0_103, %c0_104] : memref<4x8x8xf32, #tpu.memory_space<vmem>>, vector<1x8x8xf32>
    %182 = vector.shape_cast %181 : vector<1x8x8xf32> to vector<8x8xf32>
    %183 = vector.shape_cast %180 : vector<8x8xf32> to vector<1x8x8xf32>
    tpu.vector_store %arg13[%c3_102, %c0_103, %c0_104], %183 {strides = array<i32>} : memref<4x8x8xf32, #tpu.memory_space<vmem>>, vector<1x8x8xf32>,
    %c3_105 = arith.constant 3 : index
    %c0_106 = arith.constant 0 : index
    %c0_107 = arith.constant 0 : index
    %184 = vector.load %arg11[%c3_105, %c0_106, %c0_107] : memref<4x8x1xf32, #tpu.memory_space<vmem>>, vector<1x8x1xf32>
    %185 = vector.shape_cast %184 : vector<1x8x1xf32> to vector<8x1xf32>
    %186 = vector.shape_cast %158 : vector<8x1xf32> to vector<1x8x1xf32>
    tpu.vector_store %arg11[%c3_105, %c0_106, %c0_107], %186 {strides = array<i32>} : memref<4x8x1xf32, #tpu.memory_space<vmem>>, vector<1x8x1xf32>,
    %c0_i32_108 = arith.constant 0 : i32
    %187 = arith.cmpi eq, %arg2, %c0_i32_108 : i32
    %188 = arith.extui %187 : i1 to i32
    %c0_i32_109 = arith.constant 0 : i32
    %189 = arith.cmpi ne, %188, %c0_i32_109 : i32
    scf.if %189 {
      %c0_110 = arith.constant 0 : index
      %c0_111 = arith.constant 0 : index
      %c0_112 = arith.constant 0 : index
      %190 = vector.load %arg13[%c0_110, %c0_111, %c0_112] : memref<4x8x8xf32, #tpu.memory_space<vmem>>, vector<1x8x8xf32>
      %191 = vector.shape_cast %190 : vector<1x8x8xf32> to vector<8x8xf32>
      %c0_113 = arith.constant 0 : index
      %c0_114 = arith.constant 0 : index
      %c0_115 = arith.constant 0 : index
      %192 = vector.load %arg12[%c0_113, %c0_114, %c0_115] : memref<4x8x1xf32, #tpu.memory_space<vmem>>, vector<1x8x1xf32>
      %193 = vector.shape_cast %192 : vector<1x8x1xf32> to vector<8x1xf32>
      %194 = tpu.reciprocal %193 : vector<8x1xf32> -> vector<8x1xf32>
      %195 = vector.broadcast %194 : vector<8x1xf32> to vector<8x8xf32>
      %196 = arith.mulf %191, %195 : vector<8x8xf32>
      %c1_116 = arith.constant 1 : index
      %c0_117 = arith.constant 0 : index
      %c0_118 = arith.constant 0 : index
      %197 = vector.load %arg13[%c1_116, %c0_117, %c0_118] : memref<4x8x8xf32, #tpu.memory_space<vmem>>, vector<1x8x8xf32>
      %198 = vector.shape_cast %197 : vector<1x8x8xf32> to vector<8x8xf32>
      %c1_119 = arith.constant 1 : index
      %c0_120 = arith.constant 0 : index
      %c0_121 = arith.constant 0 : index
      %199 = vector.load %arg12[%c1_119, %c0_120, %c0_121] : memref<4x8x1xf32, #tpu.memory_space<vmem>>, vector<1x8x1xf32>
      %200 = vector.shape_cast %199 : vector<1x8x1xf32> to vector<8x1xf32>
      %201 = tpu.reciprocal %200 : vector<8x1xf32> -> vector<8x1xf32>
      %202 = vector.broadcast %201 : vector<8x1xf32> to vector<8x8xf32>
      %203 = arith.mulf %198, %202 : vector<8x8xf32>
      %c2_122 = arith.constant 2 : index
      %c0_123 = arith.constant 0 : index
      %c0_124 = arith.constant 0 : index
      %204 = vector.load %arg13[%c2_122, %c0_123, %c0_124] : memref<4x8x8xf32, #tpu.memory_space<vmem>>, vector<1x8x8xf32>
      %205 = vector.shape_cast %204 : vector<1x8x8xf32> to vector<8x8xf32>
      %c2_125 = arith.constant 2 : index
      %c0_126 = arith.constant 0 : index
      %c0_127 = arith.constant 0 : index
      %206 = vector.load %arg12[%c2_125, %c0_126, %c0_127] : memref<4x8x1xf32, #tpu.memory_space<vmem>>, vector<1x8x1xf32>
      %207 = vector.shape_cast %206 : vector<1x8x1xf32> to vector<8x1xf32>
      %208 = tpu.reciprocal %207 : vector<8x1xf32> -> vector<8x1xf32>
      %209 = vector.broadcast %208 : vector<8x1xf32> to vector<8x8xf32>
      %210 = arith.mulf %205, %209 : vector<8x8xf32>
      %c3_128 = arith.constant 3 : index
      %c0_129 = arith.constant 0 : index
      %c0_130 = arith.constant 0 : index
      %211 = vector.load %arg13[%c3_128, %c0_129, %c0_130] : memref<4x8x8xf32, #tpu.memory_space<vmem>>, vector<1x8x8xf32>
      %212 = vector.shape_cast %211 : vector<1x8x8xf32> to vector<8x8xf32>
      %c3_131 = arith.constant 3 : index
      %c0_132 = arith.constant 0 : index
      %c0_133 = arith.constant 0 : index
      %213 = vector.load %arg12[%c3_131, %c0_132, %c0_133] : memref<4x8x1xf32, #tpu.memory_space<vmem>>, vector<1x8x1xf32>
      %214 = vector.shape_cast %213 : vector<1x8x1xf32> to vector<8x1xf32>
      %215 = tpu.reciprocal %214 : vector<8x1xf32> -> vector<8x1xf32>
      %216 = vector.broadcast %215 : vector<8x1xf32> to vector<8x8xf32>
      %217 = arith.mulf %212, %216 : vector<8x8xf32>
      %218 = tpu.concatenate %196, %203, %210, %217 in 1 : vector<8x8xf32>, vector<8x8xf32>, vector<8x8xf32>, vector<8x8xf32> -> vector<8x32xf32>
      %219 = arith.truncf %218 : vector<8x32xf32> to vector<8x32xbf16>
      %c0_134 = arith.constant 0 : index
      %c0_135 = arith.constant 0 : index
      %220 = vector.load %arg7[%c0_134, %c0_135] : memref<32x32xbf16, #tpu.memory_space<vmem>>, vector<32x32xbf16>
      %cst_136 = arith.constant dense<0.000000e+00> : vector<8x32xf32>
      %221 = tpu.matmul %219, %220, %cst_136 {dimension_numbers = #tpu.dot_dimension_numbers<[1], [0], [0], [1], [0, 0, 1, 1], [], []>} : vector<8x32xbf16>, vector<32x32xbf16>, vector<8x32xf32> -> vector<8x32xf32>
      %c0_137 = arith.constant 0 : index
      %c0_138 = arith.constant 0 : index
      %222 = vector.load %arg8[%c0_137, %c0_138] : memref<1x32xf32, #tpu.memory_space<vmem>>, vector<1x32xf32>
      %223 = vector.broadcast %222 : vector<1x32xf32> to vector<8x32xf32>
      %224 = arith.addf %221, %223 : vector<8x32xf32>
      %c0_139 = arith.constant 0 : index
      %c0_140 = arith.constant 0 : index
      %c0_141 = arith.constant 0 : index
      %225 = vector.load %arg9[%c0_139, %c0_140, %c0_141] : memref<1x8x32xf32, #tpu.memory_space<vmem>>, vector<1x8x32xf32>
      %226 = vector.shape_cast %225 : vector<1x8x32xf32> to vector<8x32xf32>
      %227 = arith.addf %224, %226 : vector<8x32xf32>
      %c0_142 = arith.constant 0 : index
      %c0_143 = arith.constant 0 : index
      %c0_144 = arith.constant 0 : index
      %228 = vector.load %arg10[%c0_142, %c0_143, %c0_144] : memref<1x8x32xf32, #tpu.memory_space<vmem>>, vector<1x8x32xf32>
      %229 = vector.shape_cast %228 : vector<1x8x32xf32> to vector<8x32xf32>
      %230 = vector.shape_cast %227 : vector<8x32xf32> to vector<1x8x32xf32>
      tpu.vector_store %arg10[%c0_142, %c0_143, %c0_144], %230 {strides = array<i32>} : memref<1x8x32xf32, #tpu.memory_space<vmem>>, vector<1x8x32xf32>,
    } else {
    }
    return
  }
  func.func @transform_0(%arg0: i32, %arg1: i32, %arg2: i32) -> (i32, i32, i32) {
    %c0_i32 = arith.constant 0 : i32
    %c0_i32_0 = arith.constant 0 : i32
    return %arg0, %arg1, %c0_i32 : i32, i32, i32
  }
  func.func @transform_1(%arg0: i32, %arg1: i32, %arg2: i32) -> (i32, i32, i32) {
    %c0_i32 = arith.constant 0 : i32
    %c0_i32_0 = arith.constant 0 : i32
    return %arg0, %arg2, %c0_i32 : i32, i32, i32
  }
  func.func @transform_2(%arg0: i32, %arg1: i32, %arg2: i32) -> (i32, i32, i32) {
    %c0_i32 = arith.constant 0 : i32
    %c0_i32_0 = arith.constant 0 : i32
    return %arg0, %arg2, %c0_i32 : i32, i32, i32
  }
  func.func @transform_3(%arg0: i32, %arg1: i32, %arg2: i32) -> (i32, i32, i32) {
    %c0_i32 = arith.constant 0 : i32
    %c0_i32_0 = arith.constant 0 : i32
    return %arg0, %c0_i32, %arg2 : i32, i32, i32
  }
  func.func @transform_4(%arg0: i32, %arg1: i32, %arg2: i32) -> (i32, i32) {
    %c0_i32 = arith.constant 0 : i32
    %c0_i32_0 = arith.constant 0 : i32
    %c0_i32_1 = arith.constant 0 : i32
    return %c0_i32, %c0_i32_0 : i32, i32
  }
  func.func @transform_5(%arg0: i32, %arg1: i32, %arg2: i32) -> (i32, i32) {
    %c0_i32 = arith.constant 0 : i32
    %c0_i32_0 = arith.constant 0 : i32
    %c0_i32_1 = arith.constant 0 : i32
    return %c0_i32, %c0_i32_0 : i32, i32
  }
  func.func @transform_6(%arg0: i32, %arg1: i32, %arg2: i32) -> (i32, i32, i32) {
    %c0_i32 = arith.constant 0 : i32
    %c0_i32_0 = arith.constant 0 : i32
    return %arg0, %arg1, %c0_i32 : i32, i32, i32
  }
  func.func @transform_7(%arg0: i32, %arg1: i32, %arg2: i32) -> (i32, i32, i32) {
    %c0_i32 = arith.constant 0 : i32
    %c0_i32_0 = arith.constant 0 : i32
    return %arg0, %arg1, %c0_i32 : i32, i32, i32
  }
}

module attributes {stable_mosaic.version = 11 : i64} {
  func.func @_ffn_kernel(%arg0: i32, %arg1: i32, %arg2: memref<16x32xf32, #tpu.memory_space<vmem>>, %arg3: memref<1x32xf32, #tpu.memory_space<vmem>>, %arg4: memref<1x32xf32, #tpu.memory_space<vmem>>, %arg5: memref<32x64xbf16, #tpu.memory_space<vmem>>, %arg6: memref<1x64xf32, #tpu.memory_space<vmem>>, %arg7: memref<64x32xbf16, #tpu.memory_space<vmem>>, %arg8: memref<1x32xf32, #tpu.memory_space<vmem>>, %arg9: memref<16x32xf32, #tpu.memory_space<vmem>>, %arg10: memref<16x32xbf16, #tpu.memory_space<vmem>>, %arg11: memref<16x32xf32, #tpu.memory_space<vmem>>) attributes {dimension_semantics = [#tpu.dimension_semantics<parallel>, #tpu.dimension_semantics<arbitrary>], iteration_bounds = array<i64: 1, 1>, scalar_prefetch = 0 : i64, scratch_operands = 2 : i64, tpu.core_type = #tpu.core_type<tc>, window_params = [{transform_indices = @transform_0, window_bounds = array<i64: 16, 32>}, {pipeline_mode = #tpu.pipeline_mode<synchronous>, transform_indices = @transform_1, window_bounds = array<i64: 1, 32>}, {pipeline_mode = #tpu.pipeline_mode<synchronous>, transform_indices = @transform_2, window_bounds = array<i64: 1, 32>}, {transform_indices = @transform_3, window_bounds = array<i64: 32, 64>}, {transform_indices = @transform_4, window_bounds = array<i64: 1, 64>}, {transform_indices = @transform_5, window_bounds = array<i64: 64, 32>}, {pipeline_mode = #tpu.pipeline_mode<synchronous>, transform_indices = @transform_6, window_bounds = array<i64: 1, 32>}, {transform_indices = @transform_7, window_bounds = array<i64: 16, 32>}]} {
    %c0_i32 = arith.constant 0 : i32
    %0 = arith.cmpi eq, %arg1, %c0_i32 : i32
    %1 = arith.extui %0 : i1 to i32
    %c0_i32_0 = arith.constant 0 : i32
    %2 = arith.cmpi ne, %1, %c0_i32_0 : i32
    scf.if %2 {
      %c0_16 = arith.constant 0 : index
      %c0_17 = arith.constant 0 : index
      %20 = vector.load %arg2[%c0_16, %c0_17] : memref<16x32xf32, #tpu.memory_space<vmem>>, vector<16x32xf32>
      %cst_18 = arith.constant dense<0.000000e+00> : vector<16xf32>
      %21 = vector.multi_reduction <add>, %20, %cst_18 [1] : vector<16x32xf32> to vector<16xf32>
      %22 = vector.shape_cast %21 : vector<16xf32> to vector<16x1xf32>
      %cst_19 = arith.constant 3.200000e+01 : f32
      %23 = vector.broadcast %cst_19 : f32 to vector<16x1xf32>
      %24 = arith.divf %22, %23 : vector<16x1xf32>
      %25 = vector.broadcast %24 : vector<16x1xf32> to vector<16x32xf32>
      %26 = arith.subf %20, %25 : vector<16x32xf32>
      %27 = arith.mulf %26, %26 : vector<16x32xf32>
      %cst_20 = arith.constant dense<0.000000e+00> : vector<16xf32>
      %28 = vector.multi_reduction <add>, %27, %cst_20 [1] : vector<16x32xf32> to vector<16xf32>
      %29 = vector.shape_cast %28 : vector<16xf32> to vector<16x1xf32>
      %cst_21 = arith.constant 3.100000e+01 : f32
      %30 = vector.broadcast %cst_21 : f32 to vector<16x1xf32>
      %31 = arith.divf %29, %30 : vector<16x1xf32>
      %32 = math.sqrt %31 : vector<16x1xf32>
      %cst_22 = arith.constant 9.99999997E-7 : f32
      %33 = vector.broadcast %cst_22 : f32 to vector<16x1xf32>
      %34 = arith.addf %32, %33 : vector<16x1xf32>
      %35 = tpu.reciprocal %34 : vector<16x1xf32> -> vector<16x1xf32>
      %c0_23 = arith.constant 0 : index
      %c0_24 = arith.constant 0 : index
      %36 = vector.load %arg3[%c0_23, %c0_24] : memref<1x32xf32, #tpu.memory_space<vmem>>, vector<1x32xf32>
      %37 = vector.broadcast %36 : vector<1x32xf32> to vector<16x32xf32>
      %38 = arith.mulf %37, %26 : vector<16x32xf32>
      %39 = vector.broadcast %35 : vector<16x1xf32> to vector<16x32xf32>
      %40 = arith.mulf %38, %39 : vector<16x32xf32>
      %c0_25 = arith.constant 0 : index
      %c0_26 = arith.constant 0 : index
      %41 = vector.load %arg4[%c0_25, %c0_26] : memref<1x32xf32, #tpu.memory_space<vmem>>, vector<1x32xf32>
      %42 = vector.broadcast %41 : vector<1x32xf32> to vector<16x32xf32>
      %43 = arith.addf %40, %42 : vector<16x32xf32>
      %44 = arith.truncf %43 : vector<16x32xf32> to vector<16x32xbf16>
      %c0_27 = arith.constant 0 : index
      %c0_28 = arith.constant 0 : index
      %45 = vector.load %arg10[%c0_27, %c0_28] : memref<16x32xbf16, #tpu.memory_space<vmem>>, vector<16x32xbf16>
      tpu.vector_store %arg10[%c0_27, %c0_28], %44 {strides = array<i32>} : memref<16x32xbf16, #tpu.memory_space<vmem>>, vector<16x32xbf16>,
      %cst_29 = arith.constant 0.000000e+00 : f32
      %46 = vector.broadcast %cst_29 : f32 to vector<16x32xf32>
      %c0_30 = arith.constant 0 : index
      %c0_31 = arith.constant 0 : index
      %47 = vector.load %arg11[%c0_30, %c0_31] : memref<16x32xf32, #tpu.memory_space<vmem>>, vector<16x32xf32>
      tpu.vector_store %arg11[%c0_30, %c0_31], %46 {strides = array<i32>} : memref<16x32xf32, #tpu.memory_space<vmem>>, vector<16x32xf32>,
    } else {
    }
    %c0 = arith.constant 0 : index
    %c0_1 = arith.constant 0 : index
    %3 = vector.load %arg10[%c0, %c0_1] : memref<16x32xbf16, #tpu.memory_space<vmem>>, vector<16x32xbf16>
    %c0_2 = arith.constant 0 : index
    %c0_3 = arith.constant 0 : index
    %4 = vector.load %arg5[%c0_2, %c0_3] : memref<32x64xbf16, #tpu.memory_space<vmem>>, vector<32x64xbf16>
    %cst = arith.constant dense<0.000000e+00> : vector<16x64xf32>
    %5 = tpu.matmul %3, %4, %cst {dimension_numbers = #tpu.dot_dimension_numbers<[1], [0], [0], [1], [0, 0, 1, 1], [], []>} : vector<16x32xbf16>, vector<32x64xbf16>, vector<16x64xf32> -> vector<16x64xf32>
    %c0_4 = arith.constant 0 : index
    %c0_5 = arith.constant 0 : index
    %6 = vector.load %arg6[%c0_4, %c0_5] : memref<1x64xf32, #tpu.memory_space<vmem>>, vector<1x64xf32>
    %7 = vector.broadcast %6 : vector<1x64xf32> to vector<16x64xf32>
    %8 = arith.addf %5, %7 : vector<16x64xf32>
    %cst_6 = arith.constant 0.000000e+00 : f32
    %9 = vector.broadcast %cst_6 : f32 to vector<16x64xf32>
    %10 = arith.maximumf %8, %9 : vector<16x64xf32>
    %11 = arith.truncf %10 : vector<16x64xf32> to vector<16x64xbf16>
    %c0_7 = arith.constant 0 : index
    %c0_8 = arith.constant 0 : index
    %12 = vector.load %arg11[%c0_7, %c0_8] : memref<16x32xf32, #tpu.memory_space<vmem>>, vector<16x32xf32>
    %c0_9 = arith.constant 0 : index
    %c0_10 = arith.constant 0 : index
    %13 = vector.load %arg7[%c0_9, %c0_10] : memref<64x32xbf16, #tpu.memory_space<vmem>>, vector<64x32xbf16>
    %cst_11 = arith.constant dense<0.000000e+00> : vector<16x32xf32>
    %14 = tpu.matmul %11, %13, %cst_11 {dimension_numbers = #tpu.dot_dimension_numbers<[1], [0], [0], [1], [0, 0, 1, 1], [], []>} : vector<16x64xbf16>, vector<64x32xbf16>, vector<16x32xf32> -> vector<16x32xf32>
    %15 = arith.addf %12, %14 : vector<16x32xf32>
    %c0_12 = arith.constant 0 : index
    %c0_13 = arith.constant 0 : index
    %16 = vector.load %arg11[%c0_12, %c0_13] : memref<16x32xf32, #tpu.memory_space<vmem>>, vector<16x32xf32>
    tpu.vector_store %arg11[%c0_12, %c0_13], %15 {strides = array<i32>} : memref<16x32xf32, #tpu.memory_space<vmem>>, vector<16x32xf32>,
    %c0_i32_14 = arith.constant 0 : i32
    %17 = arith.cmpi eq, %arg1, %c0_i32_14 : i32
    %18 = arith.extui %17 : i1 to i32
    %c0_i32_15 = arith.constant 0 : i32
    %19 = arith.cmpi ne, %18, %c0_i32_15 : i32
    scf.if %19 {
      %c0_16 = arith.constant 0 : index
      %c0_17 = arith.constant 0 : index
      %20 = vector.load %arg2[%c0_16, %c0_17] : memref<16x32xf32, #tpu.memory_space<vmem>>, vector<16x32xf32>
      %c0_18 = arith.constant 0 : index
      %c0_19 = arith.constant 0 : index
      %21 = vector.load %arg11[%c0_18, %c0_19] : memref<16x32xf32, #tpu.memory_space<vmem>>, vector<16x32xf32>
      %22 = arith.addf %20, %21 : vector<16x32xf32>
      %c0_20 = arith.constant 0 : index
      %c0_21 = arith.constant 0 : index
      %23 = vector.load %arg8[%c0_20, %c0_21] : memref<1x32xf32, #tpu.memory_space<vmem>>, vector<1x32xf32>
      %24 = vector.broadcast %23 : vector<1x32xf32> to vector<16x32xf32>
      %25 = arith.addf %22, %24 : vector<16x32xf32>
      %c0_22 = arith.constant 0 : index
      %c0_23 = arith.constant 0 : index
      %26 = vector.load %arg9[%c0_22, %c0_23] : memref<16x32xf32, #tpu.memory_space<vmem>>, vector<16x32xf32>
      tpu.vector_store %arg9[%c0_22, %c0_23], %25 {strides = array<i32>} : memref<16x32xf32, #tpu.memory_space<vmem>>, vector<16x32xf32>,
    } else {
    }
    return
  }
  func.func @transform_0(%arg0: i32, %arg1: i32) -> (i32, i32) {
    %c0_i32 = arith.constant 0 : i32
    %c0_i32_0 = arith.constant 0 : i32
    return %arg0, %c0_i32 : i32, i32
  }
  func.func @transform_1(%arg0: i32, %arg1: i32) -> (i32, i32) {
    %c0_i32 = arith.constant 0 : i32
    %c0_i32_0 = arith.constant 0 : i32
    %c0_i32_1 = arith.constant 0 : i32
    return %c0_i32, %c0_i32_0 : i32, i32
  }
  func.func @transform_2(%arg0: i32, %arg1: i32) -> (i32, i32) {
    %c0_i32 = arith.constant 0 : i32
    %c0_i32_0 = arith.constant 0 : i32
    %c0_i32_1 = arith.constant 0 : i32
    return %c0_i32, %c0_i32_0 : i32, i32
  }
  func.func @transform_3(%arg0: i32, %arg1: i32) -> (i32, i32) {
    %c0_i32 = arith.constant 0 : i32
    %c0_i32_0 = arith.constant 0 : i32
    return %c0_i32, %arg1 : i32, i32
  }
  func.func @transform_4(%arg0: i32, %arg1: i32) -> (i32, i32) {
    %c0_i32 = arith.constant 0 : i32
    %c0_i32_0 = arith.constant 0 : i32
    return %c0_i32, %arg1 : i32, i32
  }
  func.func @transform_5(%arg0: i32, %arg1: i32) -> (i32, i32) {
    %c0_i32 = arith.constant 0 : i32
    %c0_i32_0 = arith.constant 0 : i32
    return %arg1, %c0_i32 : i32, i32
  }
  func.func @transform_6(%arg0: i32, %arg1: i32) -> (i32, i32) {
    %c0_i32 = arith.constant 0 : i32
    %c0_i32_0 = arith.constant 0 : i32
    %c0_i32_1 = arith.constant 0 : i32
    return %c0_i32, %c0_i32_0 : i32, i32
  }
  func.func @transform_7(%arg0: i32, %arg1: i32) -> (i32, i32) {
    %c0_i32 = arith.constant 0 : i32
    %c0_i32_0 = arith.constant 0 : i32
    return %arg0, %c0_i32 : i32, i32
  }
}

</mosaic_0001>

<llo_original>
// kernel: decoder_layer.6
$region0: #{decoder_layer.6}
  #allocation0 [shape = 'u32[]', space=smem, size = 0x4, offset = 0x4, fixed_abs, tag = 'smem constant byte address 0x4 - core index']
  #allocation1 [shape = 'u32[72,128]{1,0:T(1,128)}', space=vmem, size = 0x9000, scoped, tag = 'internal scratch']
  %s0 = inlined_call_operand.vmem [shape: f32[16,32], index: 0, kind: input, shape index: {}]
  %s1 = inlined_call_operand.vmem [shape: f32[1,32], index: 1, kind: input, shape index: {}]
  %s2 = inlined_call_operand.vmem [shape: f32[1,32], index: 2, kind: input, shape index: {}]
  %s3 = inlined_call_operand.hbm [shape: bf16[32,96], index: 3, kind: input, shape index: {}]
  %s4 = inlined_call_operand.vmem [shape: f32[1,96], index: 4, kind: input, shape index: {}]
  %s5 = inlined_call_operand.vmem [shape: bf16[16,32], index: 5, kind: output, shape index: {0}]
  %s6 = inlined_call_operand.vmem [shape: bf16[16,32], index: 6, kind: output, shape index: {1}]
  %s7 = inlined_call_operand.vmem [shape: bf16[16,32], index: 7, kind: output, shape index: {2}]
  %8 = xla_tuple %s5, %s6, %s7
  %s9 = sld [smem:[#allocation0]]
  $region50: #{decoder_layer.6} parent=0
    _
  %s11 = ssub.s32 1, %s9
  %s12 = scalar_select 0, %s11, %s9
  $region1: #{decoder_layer.6} parent=0
    #allocation2 [shape = 'u8[8192]{0}', space=vmem, size = 0x2000, scoped, tag = 'input window, operand 3, single buffered']
    #allocation3 [shape = 's32[1]{0}', space=sflag, size = 0x4, scoped, tag = 'scoped memory for decoder_layer.6']
    %13 = vsyncpa [#allocation3], 0
    // Predicated region
    $region2: #{decoder_layer.6} parent=1 // pred_check
      _
    $region3: #{decoder_layer.6} parent=1 // pred_check_branch
      %15 = sbr.rel (0) target = $region5
    $region4: #{decoder_layer.6} parent=1 // pred_region
      _
    $region5: #{decoder_layer.6} parent=1 // pred_fallthru
      _
    // Predicated region
    $region6: #{decoder_layer.6} parent=1 // pred_check
      _
    $region7: #{decoder_layer.6} parent=1 // pred_check_branch
      %17 = sbr.rel (0) target = $region9
    $region8: #{decoder_layer.6} parent=1 // pred_region
      _
    $region9: #{decoder_layer.6} parent=1 // pred_fallthru
      _
    // Predicated region
    $region10: #{decoder_layer.6} parent=1 // pred_check
      _
    $region11: #{decoder_layer.6} parent=1 // pred_check_branch
      %19 = sbr.rel (0) target = $region13
    $region12: #{decoder_layer.6} parent=1 // pred_region
      _
    $region13: #{decoder_layer.6} parent=1 // pred_fallthru
      _
    // Predicated region
    $region14: #{decoder_layer.6} parent=1 // pred_check
      _
    $region15: #{decoder_layer.6} parent=1 // pred_check_branch
      %21 = sbr.rel (0) target = $region17
    $region16: #{decoder_layer.6} parent=1 // pred_region
      %23 = vsyncadd [#allocation3], 0
      %s24 = sshll.u32 %s3, 4
      %s25 = int_to_ptr.hbm [resolvable:$true] %s24
      %s26 = sshll.u32 [#allocation2], 4
      %s27 = int_to_ptr.vmem [resolvable:$true] %s26
      %32 = dma.hbm_to_vmem [thread:$0]  %s25, 256, %s27, [#allocation3], 64, 64, 4
    $region17: #{decoder_layer.6} parent=1 // pred_fallthru
      _
    // Predicated region
    $region18: #{decoder_layer.6} parent=1 // pred_check
      _
    $region19: #{decoder_layer.6} parent=1 // pred_check_branch
      %34 = sbr.rel (0) target = $region21
    $region20: #{decoder_layer.6} parent=1 // pred_region
      _
    $region21: #{decoder_layer.6} parent=1 // pred_fallthru
      _
    // Predicated region
    $region22: #{decoder_layer.6} parent=1 // pred_check
      _
    $region23: #{decoder_layer.6} parent=1 // pred_check_branch
      %36 = sbr.rel (0) target = $region25
    $region24: #{decoder_layer.6} parent=1 // pred_region
      %38 = dma.done [#allocation3], 256
    $region25: #{decoder_layer.6} parent=1 // pred_fallthru
      _
    %v40 = vld [vmem:[%s0] sm:$0xff]
    %v41 = vld [vmem:[%s0 + $0x8] sm:$0xff]
    %vm42 = vcmask 261120
    %v43 = vsel %vm42, %v40, 0.0
    %44 = vadd.xlane.f32.xlu0 %v43
    %v45 = vpop.xlane.xlu0 %44
    %v46 = vsel %vm42, %v41, 0.0
    %47 = vadd.xlane.f32.xlu0 %v46
    %v48 = vpop.xlane.xlu0 %47
    %v49 = vrcp.pop 32.0
    %v50 = vmul.f32 32.0, %v49
    %v51 = vsub.f32 1.0, %v50
    %v52 = vmul.f32 %v49, %v51
    %v53 = vadd.f32 %v49, %v52
    %vm54 = vweird.f32 %v49
    %v55 = vsel %vm54, %v49, %v53
    %v56 = vmul.f32 %v45, %v55
    %v57 = vmul.f32 %v48, %v55
    %v58 = vsub.f32 %v40, %v56
    %v59 = vsub.f32 %v41, %v57
    %v60 = vmul.f32 %v58, %v58
    %v61 = vmul.f32 %v59, %v59
    %v62 = vsel %vm42, %v60, 0.0
    %63 = vadd.xlane.f32.xlu0 %v62
    %v64 = vpop.xlane.xlu0 %63
    %v65 = vsel %vm42, %v61, 0.0
    %66 = vadd.xlane.f32.xlu0 %v65
    %v67 = vpop.xlane.xlu0 %66
    %v68 = vrcp.pop 31.0
    %v69 = vmul.f32 31.0, %v68
    %v70 = vsub.f32 1.0, %v69
    %v71 = vmul.f32 %v68, %v70
    %v72 = vadd.f32 %v68, %v71
    %vm73 = vweird.f32 %v68
    %v74 = vsel %vm73, %v68, %v72
    %v75 = vmul.f32 %v64, %v74
    %v76 = vmul.f32 %v67, %v74
    %v77 = vrsqrt.pop %v75
    %v78 = vmul.f32 %v77, %v75
    %v79 = vmul.f32 %v78, %v77
    %v80 = vmul.f32 0.5, %v79
    %v81 = vsub.f32 1.5, %v80
    %v82 = vmul.f32 %v77, %v81
    %v83 = vmul.f32 %v75, %v82
    %vm84 = vcmp.eq.f32.partialorder %v75, inf
    %v85 = vsel %vm84, %v75, %v83
    %vm86 = vcmp.eq.f32.partialorder %v75, 0.0
    %v87 = vand.u32 %v75, 2147483648
    %v88 = vsel %vm86, %v87, %v85
    %v89 = vrsqrt.pop %v76
    %v90 = vmul.f32 %v89, %v76
    %v91 = vmul.f32 %v90, %v89
    %v92 = vmul.f32 0.5, %v91
    %v93 = vsub.f32 1.5, %v92
    %v94 = vmul.f32 %v89, %v93
    %v95 = vmul.f32 %v76, %v94
    %vm96 = vcmp.eq.f32.partialorder %v76, inf
    %v97 = vsel %vm96, %v76, %v95
    %vm98 = vcmp.eq.f32.partialorder %v76, 0.0
    %v99 = vand.u32 %v76, 2147483648
    %v100 = vsel %vm98, %v99, %v97
    %v101 = vadd.f32 %v88, 1e-06
    %v102 = vadd.f32 %v100, 1e-06
    %v103 = vrcp.pop %v101
    %v104 = vmul.f32 %v101, %v103
    %v105 = vsub.f32 1.0, %v104
    %v106 = vmul.f32 %v103, %v105
    %v107 = vadd.f32 %v103, %v106
    %vm108 = vweird.f32 %v101
    %vm109 = vweird.f32 %v103
    %vm110 = vmor %vm108, %vm109
    %v111 = vsel %vm110, %v103, %v107
    %v112 = vand.u32 2147483647, %v101
    %vm113 = vcmp.eq.f32.partialorder %v112, 8.507059e+37
    %v114 = vand.u32 %v101, 2147483648
    %v115 = vor.u32 1.1754944e-38, %v114
    %v116 = vsel %vm113, %v115, %v111
    %v117 = vrcp.pop %v102
    %v118 = vmul.f32 %v102, %v117
    %v119 = vsub.f32 1.0, %v118
    %v120 = vmul.f32 %v117, %v119
    %v121 = vadd.f32 %v117, %v120
    %vm122 = vweird.f32 %v102
    %vm123 = vweird.f32 %v117
    %vm124 = vmor %vm122, %vm123
    %v125 = vsel %vm124, %v117, %v121
    %v126 = vand.u32 2147483647, %v102
    %vm127 = vcmp.eq.f32.partialorder %v126, 8.507059e+37
    %v128 = vand.u32 %v102, 2147483648
    %v129 = vor.u32 1.1754944e-38, %v128
    %v130 = vsel %vm127, %v129, %v125
    %v131 = vld [vmem:[%s1] sm:$0x1]
    %v133 = vperm.slane %v131, 0
    %v135 = vmul.f32 %v133, %v58
    %v136 = vmul.f32 %v133, %v59
    %v137 = vmul.f32 %v135, %v116
    %v138 = vmul.f32 %v136, %v130
    %v139 = vld [vmem:[%s2] sm:$0x1]
    %v141 = vperm.slane %v139, 0
    %v143 = vadd.f32 %v137, %v141
    %v144 = vadd.f32 %v138, %v141
    %v145 = vpack.c.bf16 %v144, %v143
    %v146 = vld [vmem:[#allocation2] sm:$0xf]
    %v147 = vld [vmem:[#allocation2 + $0x4] sm:$0xf]
    %v148 = vld [vmem:[#allocation2 + $0x8] sm:$0xf]
    %v149 = vld [vmem:[#allocation2 + $0xc] sm:$0xf]
    %v150 = vld [vmem:[%s4] sm:$0x1]
    %v152 = vperm.slane %v150, 0
    %v158 = vunpack.c.l.b16 %v146
    %v159 = vunpack.c.l.b16 %v147
    %v160 = vunpack.c.l.b16 %v148
    %v161 = vunpack.c.l.b16 %v149
    %v162 = vpack.c.b16 %v159, %v158
    %v163 = vpack.c.b16 %v161, %v160
    %v167 = vsel %vm42, %v145, 0
    %169 = vmatpush.bf16.msra.mxu0 0
    %170 = vmatpush.bf16.msra.mxu0 0
    %171 = vmatpush.bf16.msra.mxu0 0
    %172 = vmatpush.bf16.msra.mxu0 0
    %173 = vmatpush.bf16.msra.mxu0 0
    %174 = vmatpush.bf16.msra.mxu0 0
    %175 = vmatpush.bf16.msra.mxu0 %v163
    %176 = vmatpush.bf16.msra.mxu0 %v162
    %177 = vmatmul.bf16.gmra.mxu0 %v167
    %v178 = vpop.f32.mrf.mxu0
    %v179 = vadd.f32 %v152, %v178
    %v180 = vpop.f32.mrf.mxu0
    %v181 = vadd.f32 %v152, %v180
    %182 = vdwg.mxu0
    %v183 = vpack.c.bf16 %v179, %v179
    %v184 = vpack.c.bf16 %v181, %v181
    %vm185 = vcmask 257024
    %186 = vst.msk [vmem:[%s5] sm:$0xf] %vm185, %v183
    %187 = vst.msk [vmem:[%s5 + $0x4] sm:$0xf] %vm185, %v184
    %190 = vrot.lane.b32.xlu0 %v183, 96
    %v191 = vpop.permute.xlu0 %190
    %192 = vrot.lane.b32.xlu0 %v184, 96
    %v193 = vpop.permute.xlu0 %192
    %196 = vst.msk [vmem:[%s6] sm:$0xf] %vm185, %v191
    %197 = vst.msk [vmem:[%s6 + $0x4] sm:$0xf] %vm185, %v193
    %198 = vrot.lane.b32.xlu0 %v183, 64
    %v199 = vpop.permute.xlu0 %198
    %200 = vrot.lane.b32.xlu0 %v184, 64
    %v201 = vpop.permute.xlu0 %200
    %204 = vst.msk [vmem:[%s7] sm:$0xf] %vm185, %v199
    %205 = vst.msk [vmem:[%s7 + $0x4] sm:$0xf] %vm185, %v201
    // Predicated region
    $region26: #{decoder_layer.6} parent=1 // pred_check
      _
    $region27: #{decoder_layer.6} parent=1 // pred_check_branch
      %207 = sbr.rel (0) target = $region29
    $region28: #{decoder_layer.6} parent=1 // pred_region
      _
    $region29: #{decoder_layer.6} parent=1 // pred_fallthru
      _
    // Predicated region
    $region30: #{decoder_layer.6} parent=1 // pred_check
      _
    $region31: #{decoder_layer.6} parent=1 // pred_check_branch
      %209 = sbr.rel (0) target = $region33
    $region32: #{decoder_layer.6} parent=1 // pred_region
      _
    $region33: #{decoder_layer.6} parent=1 // pred_fallthru
      _
    // Predicated region
    $region34: #{decoder_layer.6} parent=1 // pred_check
      _
    $region35: #{decoder_layer.6} parent=1 // pred_check_branch
      %211 = sbr.rel (0) target = $region37
    $region36: #{decoder_layer.6} parent=1 // pred_region
      _
    $region37: #{decoder_layer.6} parent=1 // pred_fallthru
      _
    // Predicated region
    $region38: #{decoder_layer.6} parent=1 // pred_check
      _
    $region39: #{decoder_layer.6} parent=1 // pred_check_branch
      %213 = sbr.rel (0) target = $region41
    $region40: #{decoder_layer.6} parent=1 // pred_region
      _
    $region41: #{decoder_layer.6} parent=1 // pred_fallthru
      _
    // Predicated region
    $region42: #{decoder_layer.6} parent=1 // pred_check
      _
    $region43: #{decoder_layer.6} parent=1 // pred_check_branch
      %215 = sbr.rel (0) target = $region45
    $region44: #{decoder_layer.6} parent=1 // pred_region
      _
    $region45: #{decoder_layer.6} parent=1 // pred_fallthru
      _
    // Predicated region
    $region46: #{decoder_layer.6} parent=1 // pred_check
      _
    $region47: #{decoder_layer.6} parent=1 // pred_check_branch
      %217 = sbr.rel (0) target = $region49
    $region48: #{decoder_layer.6} parent=1 // pred_region
      _
    $region49: #{decoder_layer.6} parent=1 // pred_fallthru
      _
    %218 = vsyncpa [#allocation3], 1

// kernel: decoder_layer.9
$region0: #{decoder_layer.9}
  #allocation0 [shape = 'u32[]', space=smem, size = 0x4, offset = 0x4, fixed_abs, tag = 'smem constant byte address 0x4 - core index']
  #allocation1 [shape = 'u32[72,128]{1,0:T(1,128)}', space=vmem, size = 0x9000, scoped, tag = 'internal scratch']
  %s0 = inlined_call_operand.vmem [shape: f32[16,32], index: 0, kind: input, shape index: {}]
  %s1 = inlined_call_operand.vmem [shape: bf16[32,64], index: 1, kind: input, shape index: {}]
  %s2 = inlined_call_operand.hbm [shape: f32[1,64], index: 2, kind: input, shape index: {}]
  %s3 = inlined_call_operand.vmem [shape: bf16[16,32], index: 3, kind: output, shape index: {0}]
  %s4 = inlined_call_operand.vmem [shape: bf16[16,32], index: 4, kind: output, shape index: {1}]
  %5 = xla_tuple %s3, %s4
  %s6 = sld [smem:[#allocation0]]
  $region34: #{decoder_layer.9} parent=0
    _
  %s8 = ssub.s32 1, %s6
  %s9 = scalar_select 0, %s8, %s6
  $region1: #{decoder_layer.9} parent=0
    #allocation2 [shape = 'u8[512]{0}', space=vmem, size = 0x400, scoped, tag = 'input window, operand 2, single buffered']
    #allocation3 [shape = 's32[1]{0}', space=sflag, size = 0x4, scoped, tag = 'scoped memory for decoder_layer.9']
    %10 = vsyncpa [#allocation3], 0
    // Predicated region
    $region2: #{decoder_layer.9} parent=1 // pred_check
      _
    $region3: #{decoder_layer.9} parent=1 // pred_check_branch
      %12 = sbr.rel (0) target = $region5
    $region4: #{decoder_layer.9} parent=1 // pred_region
      _
    $region5: #{decoder_layer.9} parent=1 // pred_fallthru
      _
    // Predicated region
    $region6: #{decoder_layer.9} parent=1 // pred_check
      _
    $region7: #{decoder_layer.9} parent=1 // pred_check_branch
      %14 = sbr.rel (0) target = $region9
    $region8: #{decoder_layer.9} parent=1 // pred_region
      _
    $region9: #{decoder_layer.9} parent=1 // pred_fallthru
      _
    // Predicated region
    $region10: #{decoder_layer.9} parent=1 // pred_check
      _
    $region11: #{decoder_layer.9} parent=1 // pred_check_branch
      %16 = sbr.rel (0) target = $region13
    $region12: #{decoder_layer.9} parent=1 // pred_region
      %18 = vsyncadd [#allocation3], 0
      %s20 = sshll.u32 %s2, 4
      %s21 = int_to_ptr.hbm [resolvable:$true] %s20
      %s22 = sshll.u32 [#allocation2], 4
      %s23 = int_to_ptr.vmem [resolvable:$true] %s22
      %25 = dma.hbm_to_vmem [thread:$0]  %s21, 16, %s23, [#allocation3]
    $region13: #{decoder_layer.9} parent=1 // pred_fallthru
      _
    // Predicated region
    $region14: #{decoder_layer.9} parent=1 // pred_check
      _
    $region15: #{decoder_layer.9} parent=1 // pred_check_branch
      %27 = sbr.rel (0) target = $region17
    $region16: #{decoder_layer.9} parent=1 // pred_region
      %29 = dma.done [#allocation3], 16
    $region17: #{decoder_layer.9} parent=1 // pred_fallthru
      _
    %v31 = vld [vmem:[%s0] sm:$0xff]
    %v32 = vld [vmem:[%s0 + $0x8] sm:$0xff]
    %v33 = vpack.c.bf16 %v32, %v31
    %v34 = vld [vmem:[%s1] sm:$0xf]
    %v35 = vld [vmem:[%s1 + $0x4] sm:$0xf]
    %v36 = vld [vmem:[%s1 + $0x8] sm:$0xf]
    %v37 = vld [vmem:[%s1 + $0xc] sm:$0xf]
    %v38 = vld [vmem:[#allocation2] sm:$0x1]
    %v40 = vperm.slane %v38, 0
    %v46 = vunpack.c.l.b16 %v34
    %v47 = vunpack.c.l.b16 %v35
    %v48 = vunpack.c.l.b16 %v36
    %v49 = vunpack.c.l.b16 %v37
    %v50 = vpack.c.b16 %v47, %v46
    %v51 = vpack.c.b16 %v49, %v48
    %vm54 = vcmask 261120
    %v56 = vsel %vm54, %v33, 0
    %58 = vmatpush.bf16.msra.mxu0 0
    %59 = vmatpush.bf16.msra.mxu0 0
    %60 = vmatpush.bf16.msra.mxu0 0
    %61 = vmatpush.bf16.msra.mxu0 0
    %62 = vmatpush.bf16.msra.mxu0 0
    %63 = vmatpush.bf16.msra.mxu0 0
    %64 = vmatpush.bf16.msra.mxu0 %v51
    %65 = vmatpush.bf16.msra.mxu0 %v50
    %66 = vmatmul.bf16.gmra.mxu0 %v56
    %v67 = vpop.f32.mrf.mxu0
    %v68 = vadd.f32 %v40, %v67
    %v69 = vpop.f32.mrf.mxu0
    %v70 = vadd.f32 %v40, %v69
    %71 = vdwg.mxu0
    %v72 = vpack.c.bf16 %v68, %v68
    %v73 = vpack.c.bf16 %v70, %v70
    %vm74 = vcmask 257024
    %75 = vst.msk [vmem:[%s3] sm:$0xf] %vm74, %v72
    %76 = vst.msk [vmem:[%s3 + $0x4] sm:$0xf] %vm74, %v73
    %79 = vrot.lane.b32.xlu0 %v72, 96
    %v80 = vpop.permute.xlu0 %79
    %81 = vrot.lane.b32.xlu0 %v73, 96
    %v82 = vpop.permute.xlu0 %81
    %85 = vst.msk [vmem:[%s4] sm:$0xf] %vm74, %v80
    %86 = vst.msk [vmem:[%s4 + $0x4] sm:$0xf] %vm74, %v82
    // Predicated region
    $region18: #{decoder_layer.9} parent=1 // pred_check
      _
    $region19: #{decoder_layer.9} parent=1 // pred_check_branch
      %88 = sbr.rel (0) target = $region21
    $region20: #{decoder_layer.9} parent=1 // pred_region
      _
    $region21: #{decoder_layer.9} parent=1 // pred_fallthru
      _
    // Predicated region
    $region22: #{decoder_layer.9} parent=1 // pred_check
      _
    $region23: #{decoder_layer.9} parent=1 // pred_check_branch
      %90 = sbr.rel (0) target = $region25
    $region24: #{decoder_layer.9} parent=1 // pred_region
      _
    $region25: #{decoder_layer.9} parent=1 // pred_fallthru
      _
    // Predicated region
    $region26: #{decoder_layer.9} parent=1 // pred_check
      _
    $region27: #{decoder_layer.9} parent=1 // pred_check_branch
      %92 = sbr.rel (0) target = $region29
    $region28: #{decoder_layer.9} parent=1 // pred_region
      _
    $region29: #{decoder_layer.9} parent=1 // pred_fallthru
      _
    // Predicated region
    $region30: #{decoder_layer.9} parent=1 // pred_check
      _
    $region31: #{decoder_layer.9} parent=1 // pred_check_branch
      %94 = sbr.rel (0) target = $region33
    $region32: #{decoder_layer.9} parent=1 // pred_region
      _
    $region33: #{decoder_layer.9} parent=1 // pred_fallthru
      _
    %95 = vsyncpa [#allocation3], 1

// kernel: decoder_layer.8
$region0: #{decoder_layer.8}
  #allocation0 [shape = 'u32[]', space=smem, size = 0x4, offset = 0x4, fixed_abs, tag = 'smem constant byte address 0x4 - core index']
  #allocation1 [shape = 'u32[72,128]{1,0:T(1,128)}', space=vmem, size = 0x9000, scoped, tag = 'internal scratch']
  %s0 = inlined_call_operand.vmem [shape: f32[16,32], index: 0, kind: input, shape index: {}]
  %s1 = inlined_call_operand.vmem [shape: f32[1,32], index: 1, kind: input, shape index: {}]
  %s2 = inlined_call_operand.vmem [shape: f32[1,32], index: 2, kind: input, shape index: {}]
  %s3 = inlined_call_operand.vmem [shape: bf16[32,32], index: 3, kind: input, shape index: {}]
  %s4 = inlined_call_operand.vmem [shape: f32[1,32], index: 4, kind: input, shape index: {}]
  %s5 = inlined_call_operand.vmem [shape: bf16[16,32], index: 5, kind: output, shape index: {}]
  %s6 = sld [smem:[#allocation0]]
  $region30: #{decoder_layer.8} parent=0
    _
  %s8 = ssub.s32 1, %s6
  %s9 = scalar_select 0, %s8, %s6
  // Predicated region
  $region2: #{decoder_layer.8} parent=0 // pred_check
    _
  $region3: #{decoder_layer.8} parent=0 // pred_check_branch
    %11 = sbr.rel (0) target = $region5
  $region4: #{decoder_layer.8} parent=0 // pred_region
    _
  $region5: #{decoder_layer.8} parent=0 // pred_fallthru
    _
  // Predicated region
  $region6: #{decoder_layer.8} parent=0 // pred_check
    _
  $region7: #{decoder_layer.8} parent=0 // pred_check_branch
    %13 = sbr.rel (0) target = $region9
  $region8: #{decoder_layer.8} parent=0 // pred_region
    _
  $region9: #{decoder_layer.8} parent=0 // pred_fallthru
    _
  // Predicated region
  $region10: #{decoder_layer.8} parent=0 // pred_check
    _
  $region11: #{decoder_layer.8} parent=0 // pred_check_branch
    %15 = sbr.rel (0) target = $region13
  $region12: #{decoder_layer.8} parent=0 // pred_region
    _
  $region13: #{decoder_layer.8} parent=0 // pred_fallthru
    _
  // Predicated region
  $region14: #{decoder_layer.8} parent=0 // pred_check
    _
  $region15: #{decoder_layer.8} parent=0 // pred_check_branch
    %17 = sbr.rel (0) target = $region17
  $region16: #{decoder_layer.8} parent=0 // pred_region
    _
  $region17: #{decoder_layer.8} parent=0 // pred_fallthru
    _
  // Predicated region
  $region18: #{decoder_layer.8} parent=0 // pred_check
    _
  $region19: #{decoder_layer.8} parent=0 // pred_check_branch
    %19 = sbr.rel (0) target = $region21
  $region20: #{decoder_layer.8} parent=0 // pred_region
    _
  $region21: #{decoder_layer.8} parent=0 // pred_fallthru
    _
  %v21 = vld [vmem:[%s0] sm:$0xff]
  %v22 = vld [vmem:[%s0 + $0x8] sm:$0xff]
  %vm23 = vcmask 261120
  %v24 = vsel %vm23, %v21, 0.0
  %25 = vadd.xlane.f32.xlu0 %v24
  %v26 = vpop.xlane.xlu0 %25
  %v27 = vsel %vm23, %v22, 0.0
  %28 = vadd.xlane.f32.xlu0 %v27
  %v29 = vpop.xlane.xlu0 %28
  %v30 = vrcp.pop 32.0
  %v31 = vmul.f32 32.0, %v30
  %v32 = vsub.f32 1.0, %v31
  %v33 = vmul.f32 %v30, %v32
  %v34 = vadd.f32 %v30, %v33
  %vm35 = vweird.f32 %v30
  %v36 = vsel %vm35, %v30, %v34
  %v37 = vmul.f32 %v26, %v36
  %v38 = vmul.f32 %v29, %v36
  %v39 = vsub.f32 %v21, %v37
  %v40 = vsub.f32 %v22, %v38
  %v41 = vmul.f32 %v39, %v39
  %v42 = vmul.f32 %v40, %v40
  %v43 = vsel %vm23, %v41, 0.0
  %44 = vadd.xlane.f32.xlu0 %v43
  %v45 = vpop.xlane.xlu0 %44
  %v46 = vsel %vm23, %v42, 0.0
  %47 = vadd.xlane.f32.xlu0 %v46
  %v48 = vpop.xlane.xlu0 %47
  %v49 = vrcp.pop 31.0
  %v50 = vmul.f32 31.0, %v49
  %v51 = vsub.f32 1.0, %v50
  %v52 = vmul.f32 %v49, %v51
  %v53 = vadd.f32 %v49, %v52
  %vm54 = vweird.f32 %v49
  %v55 = vsel %vm54, %v49, %v53
  %v56 = vmul.f32 %v45, %v55
  %v57 = vmul.f32 %v48, %v55
  %v58 = vrsqrt.pop %v56
  %v59 = vmul.f32 %v58, %v56
  %v60 = vmul.f32 %v59, %v58
  %v61 = vmul.f32 0.5, %v60
  %v62 = vsub.f32 1.5, %v61
  %v63 = vmul.f32 %v58, %v62
  %v64 = vmul.f32 %v56, %v63
  %vm65 = vcmp.eq.f32.partialorder %v56, inf
  %v66 = vsel %vm65, %v56, %v64
  %vm67 = vcmp.eq.f32.partialorder %v56, 0.0
  %v68 = vand.u32 %v56, 2147483648
  %v69 = vsel %vm67, %v68, %v66
  %v70 = vrsqrt.pop %v57
  %v71 = vmul.f32 %v70, %v57
  %v72 = vmul.f32 %v71, %v70
  %v73 = vmul.f32 0.5, %v72
  %v74 = vsub.f32 1.5, %v73
  %v75 = vmul.f32 %v70, %v74
  %v76 = vmul.f32 %v57, %v75
  %vm77 = vcmp.eq.f32.partialorder %v57, inf
  %v78 = vsel %vm77, %v57, %v76
  %vm79 = vcmp.eq.f32.partialorder %v57, 0.0
  %v80 = vand.u32 %v57, 2147483648
  %v81 = vsel %vm79, %v80, %v78
  %v82 = vadd.f32 %v69, 1e-06
  %v83 = vadd.f32 %v81, 1e-06
  %v84 = vrcp.pop %v82
  %v85 = vmul.f32 %v82, %v84
  %v86 = vsub.f32 1.0, %v85
  %v87 = vmul.f32 %v84, %v86
  %v88 = vadd.f32 %v84, %v87
  %vm89 = vweird.f32 %v82
  %vm90 = vweird.f32 %v84
  %vm91 = vmor %vm89, %vm90
  %v92 = vsel %vm91, %v84, %v88
  %v93 = vand.u32 2147483647, %v82
  %vm94 = vcmp.eq.f32.partialorder %v93, 8.507059e+37
  %v95 = vand.u32 %v82, 2147483648
  %v96 = vor.u32 1.1754944e-38, %v95
  %v97 = vsel %vm94, %v96, %v92
  %v98 = vrcp.pop %v83
  %v99 = vmul.f32 %v83, %v98
  %v100 = vsub.f32 1.0, %v99
  %v101 = vmul.f32 %v98, %v100
  %v102 = vadd.f32 %v98, %v101
  %vm103 = vweird.f32 %v83
  %vm104 = vweird.f32 %v98
  %vm105 = vmor %vm103, %vm104
  %v106 = vsel %vm105, %v98, %v102
  %v107 = vand.u32 2147483647, %v83
  %vm108 = vcmp.eq.f32.partialorder %v107, 8.507059e+37
  %v109 = vand.u32 %v83, 2147483648
  %v110 = vor.u32 1.1754944e-38, %v109
  %v111 = vsel %vm108, %v110, %v106
  %v112 = vld [vmem:[%s1] sm:$0x1]
  %v114 = vperm.slane %v112, 0
  %v116 = vmul.f32 %v114, %v39
  %v117 = vmul.f32 %v114, %v40
  %v118 = vmul.f32 %v116, %v97
  %v119 = vmul.f32 %v117, %v111
  %v120 = vld [vmem:[%s2] sm:$0x1]
  %v122 = vperm.slane %v120, 0
  %v124 = vadd.f32 %v118, %v122
  %v125 = vadd.f32 %v119, %v122
  %v126 = vpack.c.bf16 %v125, %v124
  %v127 = vld [vmem:[%s3] sm:$0xf]
  %v128 = vld [vmem:[%s3 + $0x4] sm:$0xf]
  %v129 = vld [vmem:[%s3 + $0x8] sm:$0xf]
  %v130 = vld [vmem:[%s3 + $0xc] sm:$0xf]
  %v131 = vld [vmem:[%s4] sm:$0x1]
  %v133 = vperm.slane %v131, 0
  %v139 = vunpack.c.l.b16 %v127
  %v140 = vunpack.c.l.b16 %v128
  %v141 = vunpack.c.l.b16 %v129
  %v142 = vunpack.c.l.b16 %v130
  %v143 = vpack.c.b16 %v140, %v139
  %v144 = vpack.c.b16 %v142, %v141
  %v148 = vsel %vm23, %v126, 0
  %150 = vmatpush.bf16.msra.mxu0 0
  %151 = vmatpush.bf16.msra.mxu0 0
  %152 = vmatpush.bf16.msra.mxu0 0
  %153 = vmatpush.bf16.msra.mxu0 0
  %154 = vmatpush.bf16.msra.mxu0 0
  %155 = vmatpush.bf16.msra.mxu0 0
  %156 = vmatpush.bf16.msra.mxu0 %v144
  %157 = vmatpush.bf16.msra.mxu0 %v143
  %158 = vmatmul.bf16.gmra.mxu0 %v148
  %v159 = vpop.f32.mrf.mxu0
  %v160 = vadd.f32 %v133, %v159
  %v161 = vpop.f32.mrf.mxu0
  %v162 = vadd.f32 %v133, %v161
  %163 = vdwg.mxu0
  %v164 = vpack.c.bf16 %v160, %v160
  %v165 = vpack.c.bf16 %v162, %v162
  %vm166 = vcmask 257024
  %167 = vst.msk [vmem:[%s5] sm:$0xf] %vm166, %v164
  %168 = vst.msk [vmem:[%s5 + $0x4] sm:$0xf] %vm166, %v165
  // Predicated region
  $region22: #{decoder_layer.8} parent=0 // pred_check
    _
  $region23: #{decoder_layer.8} parent=0 // pred_check_branch
    %170 = sbr.rel (0) target = $region25
  $region24: #{decoder_layer.8} parent=0 // pred_region
    _
  $region25: #{decoder_layer.8} parent=0 // pred_fallthru
    _
  // Predicated region
  $region26: #{decoder_layer.8} parent=0 // pred_check
    _
  $region27: #{decoder_layer.8} parent=0 // pred_check_branch
    %172 = sbr.rel (0) target = $region29
  $region28: #{decoder_layer.8} parent=0 // pred_region
    _
  $region29: #{decoder_layer.8} parent=0 // pred_fallthru
    _

// kernel: decoder_layer.7
$region0: #{decoder_layer.7}
  #allocation0 [shape = 'u32[]', space=smem, size = 0x4, offset = 0x4, fixed_abs, tag = 'smem constant byte address 0x4 - core index']
  #allocation1 [shape = 'u32[72,128]{1,0:T(1,128)}', space=vmem, size = 0x9000, scoped, tag = 'internal scratch']
  #allocation2 [shape = 'f32[4,8,1]{2,1,0:T(8,128)}', space=vmem, size = 0x4000, scoped, tag = 'scratch operand']
  #allocation3 [shape = 'f32[4,8,1]{2,1,0:T(8,128)}', space=vmem, size = 0x4000, scoped, tag = 'scratch operand']
  #allocation4 [shape = 'f32[4,8,8]{2,1,0:T(8,128)}', space=vmem, size = 0x4000, scoped, tag = 'scratch operand']
  %s0 = inlined_call_operand.vmem [shape: bf16[2,8,32], index: 0, kind: input, shape index: {}]
  %s1 = inlined_call_operand.vmem [shape: bf16[2,8,32], index: 1, kind: input, shape index: {}]
  %s2 = inlined_call_operand.vmem [shape: bf16[2,8,32], index: 2, kind: input, shape index: {}]
  %s3 = inlined_call_operand.vmem [shape: bf16[1,8,8], index: 3, kind: input, shape index: {}]
  %s4 = inlined_call_operand.vmem [shape: bf16[32,32], index: 4, kind: input, shape index: {}]
  %s5 = inlined_call_operand.vmem [shape: f32[1,32], index: 5, kind: input, shape index: {}]
  %s6 = inlined_call_operand.vmem [shape: f32[2,8,32], index: 6, kind: input, shape index: {}]
  %s7 = inlined_call_operand.vmem [shape: f32[2,8,32], index: 7, kind: output, shape index: {}]
  %s8 = sld [smem:[#allocation0]]
  $region69: #{decoder_layer.7} parent=0
    _
  %s10 = ssub.s32 1, %s8
  %s11 = scalar_select 0, %s10, %s8
  loop: start=0, step=1, limit=4
  $region2: #{decoder_layer.7} parent=0 // loop_pre_header
    _
  $region3: #{decoder_layer.7} parent=0 // loop_header
    %s13 = sphi 0, %s17
    %p14 = scmp.ge.s32.totalorder %s13, 4
    %s20 = sphi 0, %s39
    %s21 = sphi 0, %s35
    %s22 = sphi 0, %s31
    %s23 = sphi 0, %s20
    %s24 = sphi 0, %s21
    %s25 = sphi 0, %s22
    %s26 = sphi 0, %s23
    %s27 = sphi 0, %s24
    %s28 = sphi 0, %s25
    %s44 = sphi 0, %s46
    %s47 = sphi 0, %s44
    %s48 = sphi 0, %s47
    %s64 = sphi 0, %s48
    %s72 = sphi 0, %s74
    %s75 = sphi 0, %s72
    %s76 = sphi 0, %s75
    %s92 = sphi 0, %s76
    %s100 = sphi 0, %s102
    %s103 = sphi 0, %s100
    %s104 = sphi 0, %s103
    %s120 = sphi 0, %s104
    %s128 = sphi 0, %s130
    %s131 = sphi 0, %s128
    %s132 = sphi 0, %s131
    %s148 = sphi 0, %s132
    %s152 = sphi 0, %s152
    %s154 = sphi 0, %s152
    %s155 = sphi 0, %s154
    %s169 = sphi 0, %s155
    %s173 = sphi 0, %s173
    %s175 = sphi 0, %s173
    %s176 = sphi 0, %s175
    %s190 = sphi 0, %s176
    %s198 = sphi 0, %s200
    %s201 = sphi 0, %s198
    %s202 = sphi 0, %s201
    %s218 = sphi 0, %s202
    %s226 = sphi 0, %s228
    %s229 = sphi 0, %s226
    %s230 = sphi 0, %s229
    %s246 = sphi 0, %s230
  $region4: #{decoder_layer.7} parent=0 // loop_header_branch
    %16 = sbr.rel (%p14) target = $region8
  $region5: #{decoder_layer.7} parent=0 // loop_body
    %s18 = ssub.s32 %s13, 1
    %s19 = ssub.s32 %s13, 2
    %s29 = sadd.s32 1, %s22
    %p30 = scmp.ge.s32.totalorder %s29, 1
    %s31 = scalar_select %p30, 0, %s29
    %s32 = sadd.s32 1, %s21
    %s33 = scalar_select %p30, %s32, %s21
    %p34 = scmp.ge.s32.totalorder %s33, 1
    %s35 = scalar_select %p34, 0, %s33
    %s36 = sadd.s32 1, %s20
    %s37 = scalar_select %p34, %s36, %s20
    %p38 = scmp.ge.s32.totalorder %s37, 2
    %s39 = scalar_select %p38, 0, %s37
    %s40 = ssub.s32 %s20, %s39
    %s41 = ssub.s32 %s21, %s35
    %s42 = sor.u32 %s40, %s41
    %p43 = scmp.eq.s32.totalorder %s42, 0
    %s45 = sadd.s32 %s44, 1
    %s46 = scalar_select %p43, %s44, %s45
    %p49 = pneg %p43
    %p50 = scmp.eq.s32.totalorder %s13, 1
    %p51 = por %p49, %p50
    %p52 = scmp.ne.s32.totalorder %s44, %s47
    %p53 = scmp.eq.s32.totalorder %s13, 0
    %p54 = por %p52, %p53
    %p55 = scmp.ne.s32.totalorder %s44, %s47
    %p56 = scmp.eq.s32.totalorder %s18, 1
    %p57 = por %p55, %p56
    %p58 = scmp.ne.s32.totalorder %s47, %s48
    %p59 = scmp.eq.s32.totalorder %s18, 0
    %p60 = por %p58, %p59
    %p61 = scmp.ne.s32.totalorder %s47, %s48
    %p62 = scmp.eq.s32.totalorder %s19, 1
    %p63 = por %p61, %p62
    %p65 = scmp.ne.s32.totalorder %s48, %s64
    %p66 = scmp.eq.s32.totalorder %s19, 0
    %p67 = por %p65, %p66
    %s68 = ssub.s32 %s20, %s39
    %s69 = ssub.s32 %s22, %s31
    %s70 = sor.u32 %s68, %s69
    %p71 = scmp.eq.s32.totalorder %s70, 0
    %s73 = sadd.s32 %s72, 1
    %s74 = scalar_select %p71, %s72, %s73
    %p77 = pneg %p71
    %p78 = scmp.eq.s32.totalorder %s13, 1
    %p79 = por %p77, %p78
    %p80 = scmp.ne.s32.totalorder %s72, %s75
    %p81 = scmp.eq.s32.totalorder %s13, 0
    %p82 = por %p80, %p81
    %p83 = scmp.ne.s32.totalorder %s72, %s75
    %p84 = scmp.eq.s32.totalorder %s18, 1
    %p85 = por %p83, %p84
    %p86 = scmp.ne.s32.totalorder %s75, %s76
    %p87 = scmp.eq.s32.totalorder %s18, 0
    %p88 = por %p86, %p87
    %p89 = scmp.ne.s32.totalorder %s75, %s76
    %p90 = scmp.eq.s32.totalorder %s19, 1
    %p91 = por %p89, %p90
    %p93 = scmp.ne.s32.totalorder %s76, %s92
    %p94 = scmp.eq.s32.totalorder %s19, 0
    %p95 = por %p93, %p94
    %s96 = ssub.s32 %s20, %s39
    %s97 = ssub.s32 %s22, %s31
    %s98 = sor.u32 %s96, %s97
    %p99 = scmp.eq.s32.totalorder %s98, 0
    %s101 = sadd.s32 %s100, 1
    %s102 = scalar_select %p99, %s100, %s101
    %p105 = pneg %p99
    %p106 = scmp.eq.s32.totalorder %s13, 1
    %p107 = por %p105, %p106
    %p108 = scmp.ne.s32.totalorder %s100, %s103
    %p109 = scmp.eq.s32.totalorder %s13, 0
    %p110 = por %p108, %p109
    %p111 = scmp.ne.s32.totalorder %s100, %s103
    %p112 = scmp.eq.s32.totalorder %s18, 1
    %p113 = por %p111, %p112
    %p114 = scmp.ne.s32.totalorder %s103, %s104
    %p115 = scmp.eq.s32.totalorder %s18, 0
    %p116 = por %p114, %p115
    %p117 = scmp.ne.s32.totalorder %s103, %s104
    %p118 = scmp.eq.s32.totalorder %s19, 1
    %p119 = por %p117, %p118
    %p121 = scmp.ne.s32.totalorder %s104, %s120
    %p122 = scmp.eq.s32.totalorder %s19, 0
    %p123 = por %p121, %p122
    %s124 = ssub.s32 %s21, %s35
    %s125 = ssub.s32 %s22, %s31
    %s126 = sor.u32 %s124, %s125
    %p127 = scmp.eq.s32.totalorder %s126, 0
    %s129 = sadd.s32 %s128, 1
    %s130 = scalar_select %p127, %s128, %s129
    %p133 = pneg %p127
    %p134 = scmp.eq.s32.totalorder %s13, 1
    %p135 = por %p133, %p134
    %p136 = scmp.ne.s32.totalorder %s128, %s131
    %p137 = scmp.eq.s32.totalorder %s13, 0
    %p138 = por %p136, %p137
    %p139 = scmp.ne.s32.totalorder %s128, %s131
    %p140 = scmp.eq.s32.totalorder %s18, 1
    %p141 = por %p139, %p140
    %p142 = scmp.ne.s32.totalorder %s131, %s132
    %p143 = scmp.eq.s32.totalorder %s18, 0
    %p144 = por %p142, %p143
    %p145 = scmp.ne.s32.totalorder %s131, %s132
    %p146 = scmp.eq.s32.totalorder %s19, 1
    %p147 = por %p145, %p146
    %p149 = scmp.ne.s32.totalorder %s132, %s148
    %p150 = scmp.eq.s32.totalorder %s19, 0
    %p151 = por %p149, %p150
    %s153 = sadd.s32 %s152, 1
    %p156 = scmp.eq.s32.totalorder %s13, 1
    %p157 = scmp.ne.s32.totalorder %s152, %s154
    %p158 = scmp.eq.s32.totalorder %s13, 0
    %p159 = por %p157, %p158
    %p160 = scmp.ne.s32.totalorder %s152, %s154
    %p161 = scmp.eq.s32.totalorder %s18, 1
    %p162 = por %p160, %p161
    %p163 = scmp.ne.s32.totalorder %s154, %s155
    %p164 = scmp.eq.s32.totalorder %s18, 0
    %p165 = por %p163, %p164
    %p166 = scmp.ne.s32.totalorder %s154, %s155
    %p167 = scmp.eq.s32.totalorder %s19, 1
    %p168 = por %p166, %p167
    %p170 = scmp.ne.s32.totalorder %s155, %s169
    %p171 = scmp.eq.s32.totalorder %s19, 0
    %p172 = por %p170, %p171
    %s174 = sadd.s32 %s173, 1
    %p177 = scmp.eq.s32.totalorder %s13, 1
    %p178 = scmp.ne.s32.totalorder %s173, %s175
    %p179 = scmp.eq.s32.totalorder %s13, 0
    %p180 = por %p178, %p179
    %p181 = scmp.ne.s32.totalorder %s173, %s175
    %p182 = scmp.eq.s32.totalorder %s18, 1
    %p183 = por %p181, %p182
    %p184 = scmp.ne.s32.totalorder %s175, %s176
    %p185 = scmp.eq.s32.totalorder %s18, 0
    %p186 = por %p184, %p185
    %p187 = scmp.ne.s32.totalorder %s175, %s176
    %p188 = scmp.eq.s32.totalorder %s19, 1
    %p189 = por %p187, %p188
    %p191 = scmp.ne.s32.totalorder %s176, %s190
    %p192 = scmp.eq.s32.totalorder %s19, 0
    %p193 = por %p191, %p192
    %s194 = ssub.s32 %s20, %s39
    %s195 = ssub.s32 %s21, %s35
    %s196 = sor.u32 %s194, %s195
    %p197 = scmp.eq.s32.totalorder %s196, 0
    %s199 = sadd.s32 %s198, 1
    %s200 = scalar_select %p197, %s198, %s199
    %p203 = pneg %p197
    %p204 = scmp.eq.s32.totalorder %s13, 1
    %p205 = por %p203, %p204
    %p206 = scmp.ne.s32.totalorder %s198, %s201
    %p207 = scmp.eq.s32.totalorder %s13, 0
    %p208 = por %p206, %p207
    %p209 = scmp.ne.s32.totalorder %s198, %s201
    %p210 = scmp.eq.s32.totalorder %s18, 1
    %p211 = por %p209, %p210
    %p212 = scmp.ne.s32.totalorder %s201, %s202
    %p213 = scmp.eq.s32.totalorder %s18, 0
    %p214 = por %p212, %p213
    %p215 = scmp.ne.s32.totalorder %s201, %s202
    %p216 = scmp.eq.s32.totalorder %s19, 1
    %p217 = por %p215, %p216
    %p219 = scmp.ne.s32.totalorder %s202, %s218
    %p220 = scmp.eq.s32.totalorder %s19, 0
    %p221 = por %p219, %p220
    %s222 = ssub.s32 %s20, %s39
    %s223 = ssub.s32 %s21, %s35
    %s224 = sor.u32 %s222, %s223
    %p225 = scmp.eq.s32.totalorder %s224, 0
    %s227 = sadd.s32 %s226, 1
    %s228 = scalar_select %p225, %s226, %s227
    %p231 = pneg %p225
    %p232 = scmp.eq.s32.totalorder %s13, 1
    %p233 = por %p231, %p232
    %p234 = scmp.ne.s32.totalorder %s226, %s229
    %p235 = scmp.eq.s32.totalorder %s13, 0
    %p236 = por %p234, %p235
    %p237 = scmp.ne.s32.totalorder %s226, %s229
    %p238 = scmp.eq.s32.totalorder %s18, 1
    %p239 = por %p237, %p238
    %p240 = scmp.ne.s32.totalorder %s229, %s230
    %p241 = scmp.eq.s32.totalorder %s18, 0
    %p242 = por %p240, %p241
    %p243 = scmp.ne.s32.totalorder %s229, %s230
    %p244 = scmp.eq.s32.totalorder %s19, 1
    %p245 = por %p243, %p244
    %p247 = scmp.ne.s32.totalorder %s230, %s246
    %p248 = scmp.eq.s32.totalorder %s19, 0
    %p249 = por %p247, %p248
    %p250 = scmp.le.s32.totalorder 1, %s13
    %p251 = scmp.lt.s32.totalorder %s13, 3
    %p252 = pnand %p250, %p251
    %p253 = pneg %p252
    // Predicated region
    $region9: #{decoder_layer.7} parent=5 // pred_check
      _
    $region10: #{decoder_layer.7} parent=5 // pred_check_branch
      %255 = sbr.rel (%p252) target = $region12
    $region11: #{decoder_layer.7} parent=5 // pred_region
      %s256 = ssub.s32 %s13, 1
      // Predicated region
      $region13: #{decoder_layer.7} parent=11 // pred_check
        %p257 = pneg %p144
      $region14: #{decoder_layer.7} parent=11 // pred_check_branch
        %259 = sbr.rel (%p257) target = $region16
      $region15: #{decoder_layer.7} parent=11 // pred_region
        %p260 = scmp.lt.s32.totalorder %s24, 0
        %s261 = scalar_select %p260, %s24, 0
        %p262 = scmp.lt.s32.totalorder %s25, 0
        %s263 = scalar_select %p262, %s25, 0
        %s264 = sadd.s32 %s263, %s261
        %s265 = smul.addr %s264, 4
        %s266 = scalar_lea.vmem %s3, %s265
      $region16: #{decoder_layer.7} parent=11 // pred_fallthru
        _
      // Predicated region
      $region17: #{decoder_layer.7} parent=11 // pred_check
        %p267 = pneg %p165
      $region18: #{decoder_layer.7} parent=11 // pred_check_branch
        %269 = sbr.rel (%p267) target = $region20
      $region19: #{decoder_layer.7} parent=11 // pred_region
        _
      $region20: #{decoder_layer.7} parent=11 // pred_fallthru
        _
      // Predicated region
      $region21: #{decoder_layer.7} parent=11 // pred_check
        %p270 = pneg %p186
      $region22: #{decoder_layer.7} parent=11 // pred_check_branch
        %272 = sbr.rel (%p270) target = $region24
      $region23: #{decoder_layer.7} parent=11 // pred_region
        _
      $region24: #{decoder_layer.7} parent=11 // pred_fallthru
        _
    $region12: #{decoder_layer.7} parent=5 // pred_fallthru
      _
    %p273 = scmp.lt.s32.totalorder %s13, 2
    // Predicated region
    $region25: #{decoder_layer.7} parent=5 // pred_check
      %p274 = pneg %p273
    $region26: #{decoder_layer.7} parent=5 // pred_check_branch
      %276 = sbr.rel (%p274) target = $region28
    $region27: #{decoder_layer.7} parent=5 // pred_region
      // Predicated region
      $region29: #{decoder_layer.7} parent=27 // pred_check
        %p277 = pneg %p54
      $region30: #{decoder_layer.7} parent=27 // pred_check_branch
        %279 = sbr.rel (%p277) target = $region32
      $region31: #{decoder_layer.7} parent=27 // pred_region
        %p280 = scmp.lt.s32.totalorder %s20, 1
        %s281 = scalar_select %p280, %s20, 1
        %p282 = scmp.lt.s32.totalorder %s21, 0
        %s283 = scalar_select %p282, %s21, 0
        %s284 = sadd.s32 %s283, %s281
        %s285 = smul.addr %s284, 4
        %s286 = scalar_lea.vmem %s0, %s285
      $region32: #{decoder_layer.7} parent=27 // pred_fallthru
        _
      // Predicated region
      $region33: #{decoder_layer.7} parent=27 // pred_check
        %p287 = pneg %p82
      $region34: #{decoder_layer.7} parent=27 // pred_check_branch
        %289 = sbr.rel (%p287) target = $region36
      $region35: #{decoder_layer.7} parent=27 // pred_region
        %p290 = scmp.lt.s32.totalorder %s20, 1
        %s291 = scalar_select %p290, %s20, 1
        %p292 = scmp.lt.s32.totalorder %s22, 0
        %s293 = scalar_select %p292, %s22, 0
        %s294 = sadd.s32 %s293, %s291
        %s295 = smul.addr %s294, 4
        %s296 = scalar_lea.vmem %s1, %s295
      $region36: #{decoder_layer.7} parent=27 // pred_fallthru
        _
      // Predicated region
      $region37: #{decoder_layer.7} parent=27 // pred_check
        %p297 = pneg %p110
      $region38: #{decoder_layer.7} parent=27 // pred_check_branch
        %299 = sbr.rel (%p297) target = $region40
      $region39: #{decoder_layer.7} parent=27 // pred_region
        %p300 = scmp.lt.s32.totalorder %s20, 1
        %s301 = scalar_select %p300, %s20, 1
        %p302 = scmp.lt.s32.totalorder %s22, 0
        %s303 = scalar_select %p302, %s22, 0
        %s304 = sadd.s32 %s303, %s301
        %s305 = smul.addr %s304, 4
        %s306 = scalar_lea.vmem %s2, %s305
      $region40: #{decoder_layer.7} parent=27 // pred_fallthru
        _
      // Predicated region
      $region41: #{decoder_layer.7} parent=27 // pred_check
        %p307 = pneg %p208
      $region42: #{decoder_layer.7} parent=27 // pred_check_branch
        %309 = sbr.rel (%p307) target = $region44
      $region43: #{decoder_layer.7} parent=27 // pred_region
        %p310 = scmp.lt.s32.totalorder %s20, 1
        %s311 = scalar_select %p310, %s20, 1
        %p312 = scmp.lt.s32.totalorder %s21, 0
        %s313 = scalar_select %p312, %s21, 0
        %s314 = sadd.s32 %s313, %s311
        %s315 = smul.addr %s314, 8
        %s316 = scalar_lea.vmem %s6, %s315
      $region44: #{decoder_layer.7} parent=27 // pred_fallthru
        _
    $region28: #{decoder_layer.7} parent=5 // pred_fallthru
      _
    %p317 = scmp.le.s32.totalorder 1, %s13
    %p318 = scmp.lt.s32.totalorder %s13, 3
    %p319 = pnand %p317, %p318
    %p320 = pneg %p319
    // Predicated region
    $region45: #{decoder_layer.7} parent=5 // pred_check
      _
    $region46: #{decoder_layer.7} parent=5 // pred_check_branch
      %322 = sbr.rel (%p319) target = $region48
    $region47: #{decoder_layer.7} parent=5 // pred_region
      %s323 = ssub.s32 %s13, 1
      %p324 = scmp.lt.s32.totalorder %s23, 1
      %s325 = scalar_select %p324, %s23, 1
      %p326 = scmp.lt.s32.totalorder %s24, 0
      %s327 = scalar_select %p326, %s24, 0
      %s328 = sadd.s32 %s327, %s325
      %s329 = smul.addr %s328, 4
      %s330 = scalar_lea.vmem %s0, %s329
      %p331 = pneg %p60
      %p332 = pneg %p57
      %p333 = scmp.lt.s32.totalorder %s23, 1
      %s334 = scalar_select %p333, %s23, 1
      %p335 = scmp.lt.s32.totalorder %s25, 0
      %s336 = scalar_select %p335, %s25, 0
      %s337 = sadd.s32 %s336, %s334
      %s338 = smul.addr %s337, 4
      %s339 = scalar_lea.vmem %s1, %s338
      %p340 = pneg %p88
      %p341 = pneg %p85
      %p342 = scmp.lt.s32.totalorder %s23, 1
      %s343 = scalar_select %p342, %s23, 1
      %p344 = scmp.lt.s32.totalorder %s25, 0
      %s345 = scalar_select %p344, %s25, 0
      %s346 = sadd.s32 %s345, %s343
      %s347 = smul.addr %s346, 4
      %s348 = scalar_lea.vmem %s2, %s347
      %p349 = pneg %p116
      %p350 = pneg %p113
      %p351 = scmp.lt.s32.totalorder %s24, 0
      %s352 = scalar_select %p351, %s24, 0
      %p353 = scmp.lt.s32.totalorder %s25, 0
      %s354 = scalar_select %p353, %s25, 0
      %s355 = sadd.s32 %s354, %s352
      %s356 = smul.addr %s355, 4
      %s357 = scalar_lea.vmem %s3, %s356
      %p358 = pneg %p144
      %p359 = pneg %p141
      %p360 = pneg %p165
      %p361 = pneg %p162
      %p362 = pneg %p186
      %p363 = pneg %p183
      %p364 = scmp.lt.s32.totalorder %s23, 1
      %s365 = scalar_select %p364, %s23, 1
      %p366 = scmp.lt.s32.totalorder %s24, 0
      %s367 = scalar_select %p366, %s24, 0
      %s368 = sadd.s32 %s367, %s365
      %s369 = smul.addr %s368, 8
      %s370 = scalar_lea.vmem %s6, %s369
      %p371 = pneg %p214
      %p372 = pneg %p211
      %p373 = pneg %p242
      %p374 = pneg %p239
      %p375 = scmp.lt.s32.totalorder %s23, 1
      %s376 = scalar_select %p375, %s23, 1
      %p377 = scmp.lt.s32.totalorder %s24, 0
      %s378 = scalar_select %p377, %s24, 0
      %s379 = sadd.s32 %s378, %s376
      %s380 = smul.addr %s379, 8
      %s381 = scalar_lea.vmem %s7, %s380
      %p382 = scmp.lt.s32.totalorder %s23, 1
      %s383 = scalar_select %p382, %s23, 1
      %p384 = scmp.lt.s32.totalorder %s24, 0
      %s385 = scalar_select %p384, %s24, 0
      %s386 = sadd.s32 %s385, %s383
      %s387 = smul.addr %s386, 4
      %s388 = scalar_lea.vmem %s0, %s387
      %p389 = scmp.lt.s32.totalorder %s23, 1
      %s390 = scalar_select %p389, %s23, 1
      %p391 = scmp.lt.s32.totalorder %s25, 0
      %s392 = scalar_select %p391, %s25, 0
      %s393 = sadd.s32 %s392, %s390
      %s394 = smul.addr %s393, 4
      %s395 = scalar_lea.vmem %s1, %s394
      %p396 = scmp.lt.s32.totalorder %s23, 1
      %s397 = scalar_select %p396, %s23, 1
      %p398 = scmp.lt.s32.totalorder %s25, 0
      %s399 = scalar_select %p398, %s25, 0
      %s400 = sadd.s32 %s399, %s397
      %s401 = smul.addr %s400, 4
      %s402 = scalar_lea.vmem %s2, %s401
      %p403 = scmp.lt.s32.totalorder %s24, 0
      %s404 = scalar_select %p403, %s24, 0
      %p405 = scmp.lt.s32.totalorder %s25, 0
      %s406 = scalar_select %p405, %s25, 0
      %s407 = sadd.s32 %s406, %s404
      %s408 = smul.addr %s407, 4
      %s409 = scalar_lea.vmem %s3, %s408
      %p410 = scmp.lt.s32.totalorder %s23, 1
      %s411 = scalar_select %p410, %s23, 1
      %p412 = scmp.lt.s32.totalorder %s24, 0
      %s413 = scalar_select %p412, %s24, 0
      %s414 = sadd.s32 %s413, %s411
      %s415 = smul.addr %s414, 8
      %s416 = scalar_lea.vmem %s6, %s415
      %p417 = scmp.lt.s32.totalorder %s23, 1
      %s418 = scalar_select %p417, %s23, 1
      %p419 = scmp.lt.s32.totalorder %s24, 0
      %s420 = scalar_select %p419, %s24, 0
      %s421 = sadd.s32 %s420, %s418
      %s422 = smul.addr %s421, 8
      %s423 = scalar_lea.vmem %s7, %s422
      %p425 = scmp.eq.s32.totalorder %s25, 0
      // Predicated region
      $region49: #{decoder_layer.7} parent=47 // pred_check
        %p426 = pneg %p425
      $region50: #{decoder_layer.7} parent=47 // pred_check_branch
        %428 = sbr.rel (%p426) target = $region52
      $region51: #{decoder_layer.7} parent=47 // pred_region
        %vm429 = vcmask 7168
        %430 = vst.msk [vmem:[#allocation2] sm:$0xff] %vm429, -inf
        %431 = vst.msk [vmem:[#allocation2 + $0x8] sm:$0xff] %vm429, -inf
        %432 = vst.msk [vmem:[#allocation2 + $0x10] sm:$0xff] %vm429, -inf
        %433 = vst.msk [vmem:[#allocation2 + $0x18] sm:$0xff] %vm429, -inf
        %434 = vst.msk [vmem:[#allocation3] sm:$0xff] %vm429, 0.0
        %435 = vst.msk [vmem:[#allocation3 + $0x8] sm:$0xff] %vm429, 0.0
        %436 = vst.msk [vmem:[#allocation3 + $0x10] sm:$0xff] %vm429, 0.0
        %437 = vst.msk [vmem:[#allocation3 + $0x18] sm:$0xff] %vm429, 0.0
        %vm438 = vcmask 64512
        %439 = vst.msk [vmem:[#allocation4] sm:$0xff] %vm438, 0.0
        %440 = vst.msk [vmem:[#allocation4 + $0x8] sm:$0xff] %vm438, 0.0
        %441 = vst.msk [vmem:[#allocation4 + $0x10] sm:$0xff] %vm438, 0.0
        %442 = vst.msk [vmem:[#allocation4 + $0x18] sm:$0xff] %vm438, 0.0
      $region52: #{decoder_layer.7} parent=47 // pred_fallthru
        _
      %v443 = vld [vmem:[%s388] sm:$0xf]
      %v444 = vld [vmem:[%s395] sm:$0xf]
      %v445 = vld [vmem:[%s402] sm:$0xf]
      %v446 = vld [vmem:[%s409] sm:$0xf]
      %vm447 = vcmask 64512
      %v449 = vsel %vm447, %v443, 0
      %v452 = vsel %vm447, %v444, 0
      %454 = vmatpush.bf16.xpose.msra.mxu0 0
      %455 = vmatpush.bf16.xpose.msra.mxu0 0
      %456 = vmatpush.bf16.xpose.msra.mxu0 0
      %457 = vmatpush.bf16.xpose.msra.mxu0 0
      %458 = vmatpush.bf16.xpose.msra.mxu0 0
      %459 = vmatpush.bf16.xpose.msra.mxu0 0
      %460 = vmatpush.bf16.xpose.msra.mxu0 0
      %461 = vmatpush.bf16.xpose.msra.mxu0 %v452
      %462 = vmatmul.bf16.gmra.mxu0 %v449
      %v463 = vpop.f32.mrf.mxu0
      %v464 = vadd.f32 0.0, %v463
      %v465 = vpop.f32.mrf.mxu0
      %466 = vdwg.mxu0
      %v467 = vmul.f32 %v464, 0.35355338
      %v468 = vunpack.c.l.bf16 %v446
      %vm469 = vcmp.eq.f32.partialorder %v468, 0.0
      %v470 = vsel %vm469, -1e+09, %v467
      %v471 = vld [vmem:[#allocation2] sm:$0xff]
      %v472 = vsel %vm447, %v470, -inf
      %473 = vmax.xlane.f32.xlu0 %v472
      %v474 = vpop.xlane.xlu0 %473
      %v475 = vmax.f32 %v471, %v474
      %v476 = vsub.f32 %v471, %v475
      %v477 = vmul.f32 %v476, 1.442695
      %v478 = vpow.pop %v477
      %480 = vset.pattern.permute.xlu0 0
      %481 = vperm.xlu0 %480, %v475
      %v482 = vpop.permute.xlu0 %481
      %v484 = vsub.f32 %v470, %v482
      %v485 = vmul.f32 %v484, 1.442695
      %v486 = vpow.pop %v485
      %v487 = vld [vmem:[#allocation3] sm:$0xff]
      %v488 = vmul.f32 %v478, %v487
      %v489 = vsel %vm447, %v486, 0.0
      %490 = vadd.xlane.f32.xlu0 %v489
      %v491 = vpop.xlane.xlu0 %490
      %v492 = vadd.f32 %v488, %v491
      %vm493 = vcmask 7168
      %494 = vst.msk [vmem:[#allocation3] sm:$0xff] %vm493, %v492
      %v495 = vpack.c.bf16 %v486, %v486
      %v497 = vsel %vm447, %v495, 0
      %vm499 = vcmask 1043456
      %v501 = vsel %vm499, %v445, 0
      %503 = vmatpush.bf16.msra.mxu0 0
      %504 = vmatpush.bf16.msra.mxu0 0
      %505 = vmatpush.bf16.msra.mxu0 0
      %506 = vmatpush.bf16.msra.mxu0 0
      %507 = vmatpush.bf16.msra.mxu0 0
      %508 = vmatpush.bf16.msra.mxu0 0
      %509 = vmatpush.bf16.msra.mxu0 0
      %510 = vmatpush.bf16.msra.mxu0 %v501
      %511 = vmatmul.bf16.gmra.mxu0 %v497
      %v512 = vpop.f32.mrf.mxu0
      %v513 = vadd.f32 0.0, %v512
      %v514 = vpop.f32.mrf.mxu0
      %515 = vdwg.mxu0
      %v516 = vld [vmem:[#allocation4] sm:$0xff]
      %518 = vset.pattern.permute.xlu0 0
      %519 = vperm.xlu0 %518, %v478
      %v520 = vpop.permute.xlu0 %519
      %v522 = vmul.f32 %v520, %v516
      %v523 = vadd.f32 %v522, %v513
      %524 = vst.msk [vmem:[#allocation4] sm:$0xff] %vm447, %v523
      %525 = vst.msk [vmem:[#allocation2] sm:$0xff] %vm493, %v475
      %v527 = vunpack.c.l.b16 %v443
      %v528 = vpack.c.b16 %v527, %v527
      %529 = vrot.lane.b32.xlu0 %v528, 120
      %v530 = vpop.permute.xlu0 %529
      %v532 = vunpack.c.l.b16 %v444
      %v533 = vpack.c.b16 %v532, %v532
      %534 = vrot.lane.b32.xlu0 %v533, 120
      %v535 = vpop.permute.xlu0 %534
      %v537 = vsel %vm447, %v530, 0
      %v540 = vsel %vm447, %v535, 0
      %542 = vmatpush.bf16.xpose.msra.mxu0 0
      %543 = vmatpush.bf16.xpose.msra.mxu0 0
      %544 = vmatpush.bf16.xpose.msra.mxu0 0
      %545 = vmatpush.bf16.xpose.msra.mxu0 0
      %546 = vmatpush.bf16.xpose.msra.mxu0 0
      %547 = vmatpush.bf16.xpose.msra.mxu0 0
      %548 = vmatpush.bf16.xpose.msra.mxu0 0
      %549 = vmatpush.bf16.xpose.msra.mxu0 %v540
      %550 = vmatmul.bf16.gmra.mxu0 %v537
      %v551 = vpop.f32.mrf.mxu0
      %v552 = vadd.f32 0.0, %v551
      %v553 = vpop.f32.mrf.mxu0
      %554 = vdwg.mxu0
      %v555 = vmul.f32 %v552, 0.35355338
      %v556 = vsel %vm469, -1e+09, %v555
      %s557 = scalar_lea.vmem [#allocation2], 8
      %v558 = vld [vmem:[%s557] sm:$0xff]
      %v559 = vsel %vm447, %v556, -inf
      %560 = vmax.xlane.f32.xlu0 %v559
      %v561 = vpop.xlane.xlu0 %560
      %v562 = vmax.f32 %v558, %v561
      %v563 = vsub.f32 %v558, %v562
      %v564 = vmul.f32 %v563, 1.442695
      %v565 = vpow.pop %v564
      %567 = vset.pattern.permute.xlu0 0
      %568 = vperm.xlu0 %567, %v562
      %v569 = vpop.permute.xlu0 %568
      %v571 = vsub.f32 %v556, %v569
      %v572 = vmul.f32 %v571, 1.442695
      %v573 = vpow.pop %v572
      %s574 = scalar_lea.vmem [#allocation3], 8
      %v575 = vld [vmem:[%s574] sm:$0xff]
      %v576 = vmul.f32 %v565, %v575
      %v577 = vsel %vm447, %v573, 0.0
      %578 = vadd.xlane.f32.xlu0 %v577
      %v579 = vpop.xlane.xlu0 %578
      %v580 = vadd.f32 %v576, %v579
      %581 = vst.msk [vmem:[%s574] sm:$0xff] %vm493, %v580
      %v582 = vpack.c.bf16 %v573, %v573
      %v584 = vunpack.c.l.b16 %v445
      %v585 = vpack.c.b16 %v584, %v584
      %586 = vrot.lane.b32.xlu0 %v585, 120
      %v587 = vpop.permute.xlu0 %586
      %v589 = vsel %vm447, %v582, 0
      %v592 = vsel %vm499, %v587, 0
      %594 = vmatpush.bf16.msra.mxu0 0
      %595 = vmatpush.bf16.msra.mxu0 0
      %596 = vmatpush.bf16.msra.mxu0 0
      %597 = vmatpush.bf16.msra.mxu0 0
      %598 = vmatpush.bf16.msra.mxu0 0
      %599 = vmatpush.bf16.msra.mxu0 0
      %600 = vmatpush.bf16.msra.mxu0 0
      %601 = vmatpush.bf16.msra.mxu0 %v592
      %602 = vmatmul.bf16.gmra.mxu0 %v589
      %v603 = vpop.f32.mrf.mxu0
      %v604 = vadd.f32 0.0, %v603
      %v605 = vpop.f32.mrf.mxu0
      %606 = vdwg.mxu0
      %s607 = scalar_lea.vmem [#allocation4], 8
      %v608 = vld [vmem:[%s607] sm:$0xff]
      %610 = vset.pattern.permute.xlu0 0
      %611 = vperm.xlu0 %610, %v565
      %v612 = vpop.permute.xlu0 %611
      %v614 = vmul.f32 %v612, %v608
      %v615 = vadd.f32 %v614, %v604
      %616 = vst.msk [vmem:[%s607] sm:$0xff] %vm447, %v615
      %617 = vst.msk [vmem:[%s557] sm:$0xff] %vm493, %v562
      %618 = vrot.lane.b32.xlu0 %v528, 112
      %v619 = vpop.permute.xlu0 %618
      %620 = vrot.lane.b32.xlu0 %v533, 112
      %v621 = vpop.permute.xlu0 %620
      %v623 = vsel %vm447, %v619, 0
      %v626 = vsel %vm447, %v621, 0
      %628 = vmatpush.bf16.xpose.msra.mxu0 0
      %629 = vmatpush.bf16.xpose.msra.mxu0 0
      %630 = vmatpush.bf16.xpose.msra.mxu0 0
      %631 = vmatpush.bf16.xpose.msra.mxu0 0
      %632 = vmatpush.bf16.xpose.msra.mxu0 0
      %633 = vmatpush.bf16.xpose.msra.mxu0 0
      %634 = vmatpush.bf16.xpose.msra.mxu0 0
      %635 = vmatpush.bf16.xpose.msra.mxu0 %v626
      %636 = vmatmul.bf16.gmra.mxu0 %v623
      %v637 = vpop.f32.mrf.mxu0
      %v638 = vadd.f32 0.0, %v637
      %v639 = vpop.f32.mrf.mxu0
      %640 = vdwg.mxu0
      %v641 = vmul.f32 %v638, 0.35355338
      %v642 = vsel %vm469, -1e+09, %v641
      %s643 = scalar_lea.vmem [#allocation2], 16
      %v644 = vld [vmem:[%s643] sm:$0xff]
      %v645 = vsel %vm447, %v642, -inf
      %646 = vmax.xlane.f32.xlu0 %v645
      %v647 = vpop.xlane.xlu0 %646
      %v648 = vmax.f32 %v644, %v647
      %v649 = vsub.f32 %v644, %v648
      %v650 = vmul.f32 %v649, 1.442695
      %v651 = vpow.pop %v650
      %653 = vset.pattern.permute.xlu0 0
      %654 = vperm.xlu0 %653, %v648
      %v655 = vpop.permute.xlu0 %654
      %v657 = vsub.f32 %v642, %v655
      %v658 = vmul.f32 %v657, 1.442695
      %v659 = vpow.pop %v658
      %s660 = scalar_lea.vmem [#allocation3], 16
      %v661 = vld [vmem:[%s660] sm:$0xff]
      %v662 = vmul.f32 %v651, %v661
      %v663 = vsel %vm447, %v659, 0.0
      %664 = vadd.xlane.f32.xlu0 %v663
      %v665 = vpop.xlane.xlu0 %664
      %v666 = vadd.f32 %v662, %v665
      %667 = vst.msk [vmem:[%s660] sm:$0xff] %vm493, %v666
      %v668 = vpack.c.bf16 %v659, %v659
      %669 = vrot.lane.b32.xlu0 %v585, 112
      %v670 = vpop.permute.xlu0 %669
      %v672 = vsel %vm447, %v668, 0
      %v675 = vsel %vm499, %v670, 0
      %677 = vmatpush.bf16.msra.mxu0 0
      %678 = vmatpush.bf16.msra.mxu0 0
      %679 = vmatpush.bf16.msra.mxu0 0
      %680 = vmatpush.bf16.msra.mxu0 0
      %681 = vmatpush.bf16.msra.mxu0 0
      %682 = vmatpush.bf16.msra.mxu0 0
      %683 = vmatpush.bf16.msra.mxu0 0
      %684 = vmatpush.bf16.msra.mxu0 %v675
      %685 = vmatmul.bf16.gmra.mxu0 %v672
      %v686 = vpop.f32.mrf.mxu0
      %v687 = vadd.f32 0.0, %v686
      %v688 = vpop.f32.mrf.mxu0
      %689 = vdwg.mxu0
      %s690 = scalar_lea.vmem [#allocation4], 16
      %v691 = vld [vmem:[%s690] sm:$0xff]
      %693 = vset.pattern.permute.xlu0 0
      %694 = vperm.xlu0 %693, %v651
      %v695 = vpop.permute.xlu0 %694
      %v697 = vmul.f32 %v695, %v691
      %v698 = vadd.f32 %v697, %v687
      %699 = vst.msk [vmem:[%s690] sm:$0xff] %vm447, %v698
      %700 = vst.msk [vmem:[%s643] sm:$0xff] %vm493, %v648
      %701 = vrot.lane.b32.xlu0 %v528, 104
      %v702 = vpop.permute.xlu0 %701
      %703 = vrot.lane.b32.xlu0 %v533, 104
      %v704 = vpop.permute.xlu0 %703
      %v706 = vsel %vm447, %v702, 0
      %v709 = vsel %vm447, %v704, 0
      %711 = vmatpush.bf16.xpose.msra.mxu0 0
      %712 = vmatpush.bf16.xpose.msra.mxu0 0
      %713 = vmatpush.bf16.xpose.msra.mxu0 0
      %714 = vmatpush.bf16.xpose.msra.mxu0 0
      %715 = vmatpush.bf16.xpose.msra.mxu0 0
      %716 = vmatpush.bf16.xpose.msra.mxu0 0
      %717 = vmatpush.bf16.xpose.msra.mxu0 0
      %718 = vmatpush.bf16.xpose.msra.mxu0 %v709
      %719 = vmatmul.bf16.gmra.mxu0 %v706
      %v720 = vpop.f32.mrf.mxu0
      %v721 = vadd.f32 0.0, %v720
      %v722 = vpop.f32.mrf.mxu0
      %723 = vdwg.mxu0
      %v724 = vmul.f32 %v721, 0.35355338
      %v725 = vsel %vm469, -1e+09, %v724
      %s726 = scalar_lea.vmem [#allocation2], 24
      %v727 = vld [vmem:[%s726] sm:$0xff]
      %v728 = vsel %vm447, %v725, -inf
      %729 = vmax.xlane.f32.xlu0 %v728
      %v730 = vpop.xlane.xlu0 %729
      %v731 = vmax.f32 %v727, %v730
      %v732 = vsub.f32 %v727, %v731
      %v733 = vmul.f32 %v732, 1.442695
      %v734 = vpow.pop %v733
      %736 = vset.pattern.permute.xlu0 0
      %737 = vperm.xlu0 %736, %v731
      %v738 = vpop.permute.xlu0 %737
      %v740 = vsub.f32 %v725, %v738
      %v741 = vmul.f32 %v740, 1.442695
      %v742 = vpow.pop %v741
      %s743 = scalar_lea.vmem [#allocation3], 24
      %v744 = vld [vmem:[%s743] sm:$0xff]
      %v745 = vmul.f32 %v734, %v744
      %v746 = vsel %vm447, %v742, 0.0
      %747 = vadd.xlane.f32.xlu0 %v746
      %v748 = vpop.xlane.xlu0 %747
      %v749 = vadd.f32 %v745, %v748
      %750 = vst.msk [vmem:[%s743] sm:$0xff] %vm493, %v749
      %v751 = vpack.c.bf16 %v742, %v742
      %752 = vrot.lane.b32.xlu0 %v585, 104
      %v753 = vpop.permute.xlu0 %752
      %v755 = vsel %vm447, %v751, 0
      %v758 = vsel %vm499, %v753, 0
      %760 = vmatpush.bf16.msra.mxu0 0
      %761 = vmatpush.bf16.msra.mxu0 0
      %762 = vmatpush.bf16.msra.mxu0 0
      %763 = vmatpush.bf16.msra.mxu0 0
      %764 = vmatpush.bf16.msra.mxu0 0
      %765 = vmatpush.bf16.msra.mxu0 0
      %766 = vmatpush.bf16.msra.mxu0 0
      %767 = vmatpush.bf16.msra.mxu0 %v758
      %768 = vmatmul.bf16.gmra.mxu0 %v755
      %v769 = vpop.f32.mrf.mxu0
      %v770 = vadd.f32 0.0, %v769
      %v771 = vpop.f32.mrf.mxu0
      %772 = vdwg.mxu0
      %s773 = scalar_lea.vmem [#allocation4], 24
      %v774 = vld [vmem:[%s773] sm:$0xff]
      %776 = vset.pattern.permute.xlu0 0
      %777 = vperm.xlu0 %776, %v734
      %v778 = vpop.permute.xlu0 %777
      %v780 = vmul.f32 %v778, %v774
      %v781 = vadd.f32 %v780, %v770
      %782 = vst.msk [vmem:[%s773] sm:$0xff] %vm447, %v781
      %783 = vst.msk [vmem:[%s726] sm:$0xff] %vm493, %v731
      // Predicated region
      $region53: #{decoder_layer.7} parent=47 // pred_check
        %p784 = pneg %p425
      $region54: #{decoder_layer.7} parent=47 // pred_check_branch
        %786 = sbr.rel (%p784) target = $region56
      $region55: #{decoder_layer.7} parent=47 // pred_region
        %v787 = vld [vmem:[#allocation4] sm:$0xff]
        %v788 = vld [vmem:[#allocation3] sm:$0xff]
        %v789 = vrcp.pop %v788
        %v790 = vmul.f32 %v788, %v789
        %v791 = vsub.f32 1.0, %v790
        %v792 = vmul.f32 %v789, %v791
        %v793 = vadd.f32 %v789, %v792
        %vm794 = vweird.f32 %v788
        %vm795 = vweird.f32 %v789
        %vm796 = vmor %vm794, %vm795
        %v797 = vsel %vm796, %v789, %v793
        %v798 = vand.u32 2147483647, %v788
        %vm799 = vcmp.eq.f32.partialorder %v798, 8.507059e+37
        %v800 = vand.u32 %v788, 2147483648
        %v801 = vor.u32 1.1754944e-38, %v800
        %v802 = vsel %vm799, %v801, %v797
        %804 = vset.pattern.permute.xlu0 0
        %805 = vperm.xlu0 %804, %v802
        %v806 = vpop.permute.xlu0 %805
        %v808 = vmul.f32 %v787, %v806
        %v809 = vld [vmem:[%s607] sm:$0xff]
        %v810 = vld [vmem:[%s574] sm:$0xff]
        %v811 = vrcp.pop %v810
        %v812 = vmul.f32 %v810, %v811
        %v813 = vsub.f32 1.0, %v812
        %v814 = vmul.f32 %v811, %v813
        %v815 = vadd.f32 %v811, %v814
        %vm816 = vweird.f32 %v810
        %vm817 = vweird.f32 %v811
        %vm818 = vmor %vm816, %vm817
        %v819 = vsel %vm818, %v811, %v815
        %v820 = vand.u32 2147483647, %v810
        %vm821 = vcmp.eq.f32.partialorder %v820, 8.507059e+37
        %v822 = vand.u32 %v810, 2147483648
        %v823 = vor.u32 1.1754944e-38, %v822
        %v824 = vsel %vm821, %v823, %v819
        %826 = vset.pattern.permute.xlu0 0
        %827 = vperm.xlu0 %826, %v824
        %v828 = vpop.permute.xlu0 %827
        %v830 = vmul.f32 %v809, %v828
        %v831 = vld [vmem:[%s690] sm:$0xff]
        %v832 = vld [vmem:[%s660] sm:$0xff]
        %v833 = vrcp.pop %v832
        %v834 = vmul.f32 %v832, %v833
        %v835 = vsub.f32 1.0, %v834
        %v836 = vmul.f32 %v833, %v835
        %v837 = vadd.f32 %v833, %v836
        %vm838 = vweird.f32 %v832
        %vm839 = vweird.f32 %v833
        %vm840 = vmor %vm838, %vm839
        %v841 = vsel %vm840, %v833, %v837
        %v842 = vand.u32 2147483647, %v832
        %vm843 = vcmp.eq.f32.partialorder %v842, 8.507059e+37
        %v844 = vand.u32 %v832, 2147483648
        %v845 = vor.u32 1.1754944e-38, %v844
        %v846 = vsel %vm843, %v845, %v841
        %848 = vset.pattern.permute.xlu0 0
        %849 = vperm.xlu0 %848, %v846
        %v850 = vpop.permute.xlu0 %849
        %v852 = vmul.f32 %v831, %v850
        %v853 = vld [vmem:[%s773] sm:$0xff]
        %v854 = vld [vmem:[%s743] sm:$0xff]
        %v855 = vrcp.pop %v854
        %v856 = vmul.f32 %v854, %v855
        %v857 = vsub.f32 1.0, %v856
        %v858 = vmul.f32 %v855, %v857
        %v859 = vadd.f32 %v855, %v858
        %vm860 = vweird.f32 %v854
        %vm861 = vweird.f32 %v855
        %vm862 = vmor %vm860, %vm861
        %v863 = vsel %vm862, %v855, %v859
        %v864 = vand.u32 2147483647, %v854
        %vm865 = vcmp.eq.f32.partialorder %v864, 8.507059e+37
        %v866 = vand.u32 %v854, 2147483648
        %v867 = vor.u32 1.1754944e-38, %v866
        %v868 = vsel %vm865, %v867, %v863
        %870 = vset.pattern.permute.xlu0 0
        %871 = vperm.xlu0 %870, %v868
        %v872 = vpop.permute.xlu0 %871
        %v874 = vmul.f32 %v853, %v872
        %876 = vrot.lane.b32.xlu0 %v830, 8
        %v877 = vpop.permute.xlu0 %876
        %880 = vrot.lane.b32.xlu0 %v852, 16
        %v881 = vpop.permute.xlu0 %880
        %884 = vrot.lane.b32.xlu0 %v874, 24
        %v885 = vpop.permute.xlu0 %884
        %v887 = vsel %vm447, %v808, %v877
        %vm888 = vcmask 130048
        %v889 = vsel %vm888, %v887, %v881
        %vm890 = vcmask 195584
        %v891 = vsel %vm890, %v889, %v885
        %v892 = vpack.c.bf16 %v891, %v891
        %v893 = vld [vmem:[%s4] sm:$0xf]
        %v894 = vld [vmem:[%s4 + $0x4] sm:$0xf]
        %v895 = vld [vmem:[%s4 + $0x8] sm:$0xf]
        %v896 = vld [vmem:[%s4 + $0xc] sm:$0xf]
        %v897 = vld [vmem:[%s5] sm:$0x1]
        %v899 = vperm.slane %v897, 0
        %v905 = vunpack.c.l.b16 %v893
        %v906 = vunpack.c.l.b16 %v894
        %v907 = vunpack.c.l.b16 %v895
        %v908 = vunpack.c.l.b16 %v896
        %v909 = vpack.c.b16 %v906, %v905
        %v910 = vpack.c.b16 %v908, %v907
        %vm913 = vcmask 261120
        %v915 = vsel %vm913, %v892, 0
        %917 = vmatpush.bf16.msra.mxu0 0
        %918 = vmatpush.bf16.msra.mxu0 0
        %919 = vmatpush.bf16.msra.mxu0 0
        %920 = vmatpush.bf16.msra.mxu0 0
        %921 = vmatpush.bf16.msra.mxu0 0
        %922 = vmatpush.bf16.msra.mxu0 0
        %923 = vmatpush.bf16.msra.mxu0 %v910
        %924 = vmatpush.bf16.msra.mxu0 %v909
        %925 = vmatmul.bf16.gmra.mxu0 %v915
        %v926 = vpop.f32.mrf.mxu0
        %v927 = vadd.f32 %v899, %v926
        %v928 = vpop.f32.mrf.mxu0
        %929 = vdwg.mxu0
        %v930 = vld [vmem:[%s416] sm:$0xff]
        %v931 = vadd.f32 %v927, %v930
        %932 = vst.msk [vmem:[%s423] sm:$0xff] %vm913, %v931
      $region56: #{decoder_layer.7} parent=47 // pred_fallthru
        _
      %p933 = scmp.lt.s32.totalorder %s23, 1
      %s934 = scalar_select %p933, %s23, 1
      %p935 = scmp.lt.s32.totalorder %s24, 0
      %s936 = scalar_select %p935, %s24, 0
      %s937 = sadd.s32 %s936, %s934
      %s938 = smul.addr %s937, 8
      %s939 = scalar_lea.vmem %s7, %s938
      // Predicated region
      $region57: #{decoder_layer.7} parent=47 // pred_check
        %p940 = pneg %p239
      $region58: #{decoder_layer.7} parent=47 // pred_check_branch
        %942 = sbr.rel (%p940) target = $region60
      $region59: #{decoder_layer.7} parent=47 // pred_region
        _
      $region60: #{decoder_layer.7} parent=47 // pred_fallthru
        _
    $region48: #{decoder_layer.7} parent=5 // pred_fallthru
      _
    %p943 = scmp.le.s32.totalorder 2, %s13
    // Predicated region
    $region61: #{decoder_layer.7} parent=5 // pred_check
      %p944 = pneg %p943
    $region62: #{decoder_layer.7} parent=5 // pred_check_branch
      %946 = sbr.rel (%p944) target = $region64
    $region63: #{decoder_layer.7} parent=5 // pred_region
      %s947 = ssub.s32 %s13, 2
      // Predicated region
      $region65: #{decoder_layer.7} parent=63 // pred_check
        %p948 = pneg %p245
      $region66: #{decoder_layer.7} parent=63 // pred_check_branch
        %950 = sbr.rel (%p948) target = $region68
      $region67: #{decoder_layer.7} parent=63 // pred_region
        %p951 = scmp.lt.s32.totalorder %s26, 1
        %s952 = scalar_select %p951, %s26, 1
        %p953 = scmp.lt.s32.totalorder %s27, 0
        %s954 = scalar_select %p953, %s27, 0
        %s955 = sadd.s32 %s954, %s952
        %s956 = smul.addr %s955, 8
        %s957 = scalar_lea.vmem %s7, %s956
      $region68: #{decoder_layer.7} parent=63 // pred_fallthru
        _
    $region64: #{decoder_layer.7} parent=5 // pred_fallthru
      _
  $region6: #{decoder_layer.7} parent=0 // loop_footer
    %s17 = sadd.s32 1, %s13
  $region7: #{decoder_layer.7} parent=0 // loop_footer_branch
    %12 = sbr.rel target = $region3
  $region8: #{decoder_layer.7} parent=0 // loop_exit
    _

// kernel: decoder_layer.11
$region0: #{decoder_layer.11}
  #allocation0 [shape = 'u32[]', space=smem, size = 0x4, offset = 0x4, fixed_abs, tag = 'smem constant byte address 0x4 - core index']
  #allocation1 [shape = 'u32[72,128]{1,0:T(1,128)}', space=vmem, size = 0x9000, scoped, tag = 'internal scratch']
  #allocation2 [shape = 'bf16[16,32]{1,0:T(8,128)(2,1)}', space=vmem, size = 0x1000, scoped, tag = 'scratch operand']
  #allocation3 [shape = 'f32[16,32]{1,0:T(8,128)}', space=vmem, size = 0x2000, scoped, tag = 'scratch operand']
  %s0 = inlined_call_operand.vmem [shape: f32[16,32], index: 0, kind: input, shape index: {}]
  %s1 = inlined_call_operand.vmem [shape: f32[1,32], index: 1, kind: input, shape index: {}]
  %s2 = inlined_call_operand.vmem [shape: f32[1,32], index: 2, kind: input, shape index: {}]
  %s3 = inlined_call_operand.vmem [shape: bf16[32,64], index: 3, kind: input, shape index: {}]
  %s4 = inlined_call_operand.vmem [shape: f32[1,64], index: 4, kind: input, shape index: {}]
  %s5 = inlined_call_operand.vmem [shape: bf16[64,32], index: 5, kind: input, shape index: {}]
  %s6 = inlined_call_operand.vmem [shape: f32[1,32], index: 6, kind: input, shape index: {}]
  %s7 = inlined_call_operand.hbm [shape: f32[16,32], index: 7, kind: output, shape index: {}]
  %s8 = sld [smem:[#allocation0]]
  $region46: #{decoder_layer.11} parent=0
    _
  %s10 = ssub.s32 1, %s8
  %s11 = scalar_select 0, %s10, %s8
  $region1: #{decoder_layer.11} parent=0
    #allocation4 [shape = 'u8[8192]{0}', space=vmem, size = 0x2000, scoped, tag = 'output window, operand 0, single buffered']
    #allocation5 [shape = 's32[1]{0}', space=sflag, size = 0x4, scoped, tag = 'scoped memory for decoder_layer.11']
    %12 = vsyncpa [#allocation5], 0
    // Predicated region
    $region2: #{decoder_layer.11} parent=1 // pred_check
      _
    $region3: #{decoder_layer.11} parent=1 // pred_check_branch
      %14 = sbr.rel (0) target = $region5
    $region4: #{decoder_layer.11} parent=1 // pred_region
      _
    $region5: #{decoder_layer.11} parent=1 // pred_fallthru
      _
    // Predicated region
    $region6: #{decoder_layer.11} parent=1 // pred_check
      _
    $region7: #{decoder_layer.11} parent=1 // pred_check_branch
      %16 = sbr.rel (0) target = $region9
    $region8: #{decoder_layer.11} parent=1 // pred_region
      _
    $region9: #{decoder_layer.11} parent=1 // pred_fallthru
      _
    // Predicated region
    $region10: #{decoder_layer.11} parent=1 // pred_check
      _
    $region11: #{decoder_layer.11} parent=1 // pred_check_branch
      %18 = sbr.rel (0) target = $region13
    $region12: #{decoder_layer.11} parent=1 // pred_region
      _
    $region13: #{decoder_layer.11} parent=1 // pred_fallthru
      _
    // Predicated region
    $region14: #{decoder_layer.11} parent=1 // pred_check
      _
    $region15: #{decoder_layer.11} parent=1 // pred_check_branch
      %20 = sbr.rel (0) target = $region17
    $region16: #{decoder_layer.11} parent=1 // pred_region
      _
    $region17: #{decoder_layer.11} parent=1 // pred_fallthru
      _
    // Predicated region
    $region18: #{decoder_layer.11} parent=1 // pred_check
      _
    $region19: #{decoder_layer.11} parent=1 // pred_check_branch
      %22 = sbr.rel (0) target = $region21
    $region20: #{decoder_layer.11} parent=1 // pred_region
      _
    $region21: #{decoder_layer.11} parent=1 // pred_fallthru
      _
    // Predicated region
    $region22: #{decoder_layer.11} parent=1 // pred_check
      _
    $region23: #{decoder_layer.11} parent=1 // pred_check_branch
      %24 = sbr.rel (0) target = $region25
    $region24: #{decoder_layer.11} parent=1 // pred_region
      _
    $region25: #{decoder_layer.11} parent=1 // pred_fallthru
      _
    // Predicated region
    $region26: #{decoder_layer.11} parent=1 // pred_check
      _
    $region27: #{decoder_layer.11} parent=1 // pred_check_branch
      %26 = sbr.rel (0) target = $region29
    $region28: #{decoder_layer.11} parent=1 // pred_region
      _
    $region29: #{decoder_layer.11} parent=1 // pred_fallthru
      _
    %p28 = scmp.eq.s32.totalorder 0, 0
    // Predicated region
    $region30: #{decoder_layer.11} parent=1 // pred_check
      %p29 = pneg %p28
    $region31: #{decoder_layer.11} parent=1 // pred_check_branch
      %31 = sbr.rel (%p29) target = $region33
    $region32: #{decoder_layer.11} parent=1 // pred_region
      %v32 = vld [vmem:[%s0] sm:$0xff]
      %v33 = vld [vmem:[%s0 + $0x8] sm:$0xff]
      %vm34 = vcmask 261120
      %v35 = vsel %vm34, %v32, 0.0
      %36 = vadd.xlane.f32.xlu0 %v35
      %v37 = vpop.xlane.xlu0 %36
      %v38 = vsel %vm34, %v33, 0.0
      %39 = vadd.xlane.f32.xlu0 %v38
      %v40 = vpop.xlane.xlu0 %39
      %v41 = vrcp.pop 32.0
      %v42 = vmul.f32 32.0, %v41
      %v43 = vsub.f32 1.0, %v42
      %v44 = vmul.f32 %v41, %v43
      %v45 = vadd.f32 %v41, %v44
      %vm46 = vweird.f32 %v41
      %v47 = vsel %vm46, %v41, %v45
      %v48 = vmul.f32 %v37, %v47
      %v49 = vmul.f32 %v40, %v47
      %v50 = vsub.f32 %v32, %v48
      %v51 = vsub.f32 %v33, %v49
      %v52 = vmul.f32 %v50, %v50
      %v53 = vmul.f32 %v51, %v51
      %v54 = vsel %vm34, %v52, 0.0
      %55 = vadd.xlane.f32.xlu0 %v54
      %v56 = vpop.xlane.xlu0 %55
      %v57 = vsel %vm34, %v53, 0.0
      %58 = vadd.xlane.f32.xlu0 %v57
      %v59 = vpop.xlane.xlu0 %58
      %v60 = vrcp.pop 31.0
      %v61 = vmul.f32 31.0, %v60
      %v62 = vsub.f32 1.0, %v61
      %v63 = vmul.f32 %v60, %v62
      %v64 = vadd.f32 %v60, %v63
      %vm65 = vweird.f32 %v60
      %v66 = vsel %vm65, %v60, %v64
      %v67 = vmul.f32 %v56, %v66
      %v68 = vmul.f32 %v59, %v66
      %v69 = vrsqrt.pop %v67
      %v70 = vmul.f32 %v69, %v67
      %v71 = vmul.f32 %v70, %v69
      %v72 = vmul.f32 0.5, %v71
      %v73 = vsub.f32 1.5, %v72
      %v74 = vmul.f32 %v69, %v73
      %v75 = vmul.f32 %v67, %v74
      %vm76 = vcmp.eq.f32.partialorder %v67, inf
      %v77 = vsel %vm76, %v67, %v75
      %vm78 = vcmp.eq.f32.partialorder %v67, 0.0
      %v79 = vand.u32 %v67, 2147483648
      %v80 = vsel %vm78, %v79, %v77
      %v81 = vrsqrt.pop %v68
      %v82 = vmul.f32 %v81, %v68
      %v83 = vmul.f32 %v82, %v81
      %v84 = vmul.f32 0.5, %v83
      %v85 = vsub.f32 1.5, %v84
      %v86 = vmul.f32 %v81, %v85
      %v87 = vmul.f32 %v68, %v86
      %vm88 = vcmp.eq.f32.partialorder %v68, inf
      %v89 = vsel %vm88, %v68, %v87
      %vm90 = vcmp.eq.f32.partialorder %v68, 0.0
      %v91 = vand.u32 %v68, 2147483648
      %v92 = vsel %vm90, %v91, %v89
      %v93 = vadd.f32 %v80, 1e-06
      %v94 = vadd.f32 %v92, 1e-06
      %v95 = vrcp.pop %v93
      %v96 = vmul.f32 %v93, %v95
      %v97 = vsub.f32 1.0, %v96
      %v98 = vmul.f32 %v95, %v97
      %v99 = vadd.f32 %v95, %v98
      %vm100 = vweird.f32 %v93
      %vm101 = vweird.f32 %v95
      %vm102 = vmor %vm100, %vm101
      %v103 = vsel %vm102, %v95, %v99
      %v104 = vand.u32 2147483647, %v93
      %vm105 = vcmp.eq.f32.partialorder %v104, 8.507059e+37
      %v106 = vand.u32 %v93, 2147483648
      %v107 = vor.u32 1.1754944e-38, %v106
      %v108 = vsel %vm105, %v107, %v103
      %v109 = vrcp.pop %v94
      %v110 = vmul.f32 %v94, %v109
      %v111 = vsub.f32 1.0, %v110
      %v112 = vmul.f32 %v109, %v111
      %v113 = vadd.f32 %v109, %v112
      %vm114 = vweird.f32 %v94
      %vm115 = vweird.f32 %v109
      %vm116 = vmor %vm114, %vm115
      %v117 = vsel %vm116, %v109, %v113
      %v118 = vand.u32 2147483647, %v94
      %vm119 = vcmp.eq.f32.partialorder %v118, 8.507059e+37
      %v120 = vand.u32 %v94, 2147483648
      %v121 = vor.u32 1.1754944e-38, %v120
      %v122 = vsel %vm119, %v121, %v117
      %v123 = vld [vmem:[%s1] sm:$0x1]
      %v125 = vperm.slane %v123, 0
      %v127 = vmul.f32 %v125, %v50
      %v128 = vmul.f32 %v125, %v51
      %v129 = vmul.f32 %v127, %v108
      %v130 = vmul.f32 %v128, %v122
      %v131 = vld [vmem:[%s2] sm:$0x1]
      %v133 = vperm.slane %v131, 0
      %v135 = vadd.f32 %v129, %v133
      %v136 = vadd.f32 %v130, %v133
      %v137 = vpack.c.bf16 %v135, %v135
      %v138 = vpack.c.bf16 %v136, %v136
      %vm139 = vcmask 257024
      %140 = vst.msk [vmem:[#allocation2] sm:$0xf] %vm139, %v137
      %141 = vst.msk [vmem:[#allocation2 + $0x4] sm:$0xf] %vm139, %v138
      %142 = vst.msk [vmem:[#allocation3] sm:$0xff] %vm34, 0.0
      %143 = vst.msk [vmem:[#allocation3 + $0x8] sm:$0xff] %vm34, 0.0
    $region33: #{decoder_layer.11} parent=1 // pred_fallthru
      _
    %v144 = vld [vmem:[#allocation2] sm:$0xf]
    %v145 = vld [vmem:[#allocation2 + $0x4] sm:$0xf]
    %v146 = vld [vmem:[%s3] sm:$0xf]
    %v147 = vld [vmem:[%s3 + $0x4] sm:$0xf]
    %v148 = vld [vmem:[%s3 + $0x8] sm:$0xf]
    %v149 = vld [vmem:[%s3 + $0xc] sm:$0xf]
    %v150 = vld [vmem:[%s4] sm:$0x1]
    %v152 = vperm.slane %v150, 0
    %v156 = vunpack.c.l.b16 %v144
    %v157 = vunpack.c.l.b16 %v145
    %v158 = vpack.c.b16 %v157, %v156
    %v163 = vunpack.c.l.b16 %v146
    %v164 = vunpack.c.l.b16 %v147
    %v165 = vunpack.c.l.b16 %v148
    %v166 = vunpack.c.l.b16 %v149
    %v167 = vpack.c.b16 %v164, %v163
    %v168 = vpack.c.b16 %v166, %v165
    %vm171 = vcmask 261120
    %v173 = vsel %vm171, %v158, 0
    %175 = vmatpush.bf16.msra.mxu0 0
    %176 = vmatpush.bf16.msra.mxu0 0
    %177 = vmatpush.bf16.msra.mxu0 0
    %178 = vmatpush.bf16.msra.mxu0 0
    %179 = vmatpush.bf16.msra.mxu0 0
    %180 = vmatpush.bf16.msra.mxu0 0
    %181 = vmatpush.bf16.msra.mxu0 %v168
    %182 = vmatpush.bf16.msra.mxu0 %v167
    %183 = vmatmul.bf16.gmra.mxu0 %v173
    %v184 = vpop.f32.mrf.mxu0
    %v185 = vadd.f32 %v152, %v184
    %v186 = vpop.f32.mrf.mxu0
    %v187 = vadd.f32 %v152, %v186
    %188 = vdwg.mxu0
    %v189 = vmax.f32 %v185, 0.0
    %v190 = vmax.f32 %v187, 0.0
    %v191 = vpack.c.bf16 %v190, %v189
    %v192 = vld [vmem:[#allocation3] sm:$0xff]
    %v193 = vld [vmem:[#allocation3 + $0x8] sm:$0xff]
    %v194 = vld [vmem:[%s5] sm:$0xf]
    %v195 = vld [vmem:[%s5 + $0x4] sm:$0xf]
    %v196 = vld [vmem:[%s5 + $0x8] sm:$0xf]
    %v197 = vld [vmem:[%s5 + $0xc] sm:$0xf]
    %v198 = vld [vmem:[%s5 + $0x10] sm:$0xf]
    %v199 = vld [vmem:[%s5 + $0x14] sm:$0xf]
    %v200 = vld [vmem:[%s5 + $0x18] sm:$0xf]
    %v201 = vld [vmem:[%s5 + $0x1c] sm:$0xf]
    %v210 = vunpack.c.l.b16 %v194
    %v211 = vunpack.c.l.b16 %v195
    %v212 = vunpack.c.l.b16 %v196
    %v213 = vunpack.c.l.b16 %v197
    %v214 = vunpack.c.l.b16 %v198
    %v215 = vunpack.c.l.b16 %v199
    %v216 = vunpack.c.l.b16 %v200
    %v217 = vunpack.c.l.b16 %v201
    %v218 = vpack.c.b16 %v211, %v210
    %v219 = vpack.c.b16 %v213, %v212
    %v220 = vpack.c.b16 %v215, %v214
    %v221 = vpack.c.b16 %v217, %v216
    %vm226 = vcmask 523264
    %v228 = vsel %vm226, %v191, 0
    %230 = vmatpush.bf16.msra.mxu0 0
    %231 = vmatpush.bf16.msra.mxu0 0
    %232 = vmatpush.bf16.msra.mxu0 0
    %233 = vmatpush.bf16.msra.mxu0 0
    %234 = vmatpush.bf16.msra.mxu0 %v221
    %235 = vmatpush.bf16.msra.mxu0 %v220
    %236 = vmatpush.bf16.msra.mxu0 %v219
    %237 = vmatpush.bf16.msra.mxu0 %v218
    %238 = vmatmul.bf16.gmra.mxu0 %v228
    %v239 = vpop.f32.mrf.mxu0
    %v240 = vadd.f32 0.0, %v239
    %v241 = vpop.f32.mrf.mxu0
    %v242 = vadd.f32 0.0, %v241
    %243 = vdwg.mxu0
    %v244 = vadd.f32 %v192, %v240
    %v245 = vadd.f32 %v193, %v242
    %246 = vst.msk [vmem:[#allocation3] sm:$0xff] %vm171, %v244
    %247 = vst.msk [vmem:[#allocation3 + $0x8] sm:$0xff] %vm171, %v245
    // Predicated region
    $region34: #{decoder_layer.11} parent=1 // pred_check
      %p248 = pneg %p28
    $region35: #{decoder_layer.11} parent=1 // pred_check_branch
      %250 = sbr.rel (%p248) target = $region37
    $region36: #{decoder_layer.11} parent=1 // pred_region
      %v251 = vld [vmem:[%s0] sm:$0xff]
      %v252 = vld [vmem:[%s0 + $0x8] sm:$0xff]
      %v253 = vld [vmem:[#allocation3] sm:$0xff]
      %v254 = vld [vmem:[#allocation3 + $0x8] sm:$0xff]
      %v255 = vadd.f32 %v251, %v253
      %v256 = vadd.f32 %v252, %v254
      %v257 = vld [vmem:[%s6] sm:$0x1]
      %v259 = vperm.slane %v257, 0
      %v261 = vadd.f32 %v255, %v259
      %v262 = vadd.f32 %v256, %v259
      %263 = vst.msk [vmem:[#allocation4] sm:$0xff] %vm171, %v261
      %264 = vst.msk [vmem:[#allocation4 + $0x8] sm:$0xff] %vm171, %v262
    $region37: #{decoder_layer.11} parent=1 // pred_fallthru
      _
    // Predicated region
    $region38: #{decoder_layer.11} parent=1 // pred_check
      _
    $region39: #{decoder_layer.11} parent=1 // pred_check_branch
      %266 = sbr.rel (0) target = $region41
    $region40: #{decoder_layer.11} parent=1 // pred_region
      %268 = vsyncadd [#allocation5], 0
      %s269 = sshll.u32 [#allocation4], 4
      %s270 = int_to_ptr.vmem [resolvable:$true] %s269
      %s271 = sshll.u32 %s7, 4
      %s272 = int_to_ptr.hbm [resolvable:$true] %s271
      %277 = dma.vmem_to_hbm [thread:$0]  %s270, 256, %s272, [#allocation5], 128, 128, 8
    $region41: #{decoder_layer.11} parent=1 // pred_fallthru
      _
    // Predicated region
    $region42: #{decoder_layer.11} parent=1 // pred_check
      _
    $region43: #{decoder_layer.11} parent=1 // pred_check_branch
      %279 = sbr.rel (0) target = $region45
    $region44: #{decoder_layer.11} parent=1 // pred_region
      %281 = dma.done [#allocation5], 256
    $region45: #{decoder_layer.11} parent=1 // pred_fallthru
      _
    %282 = vsyncpa [#allocation5], 1

// kernel: decoder_layer.10
$region0: #{decoder_layer.10}
  #allocation0 [shape = 'u32[]', space=smem, size = 0x4, offset = 0x4, fixed_abs, tag = 'smem constant byte address 0x4 - core index']
  #allocation1 [shape = 'u32[72,128]{1,0:T(1,128)}', space=vmem, size = 0x9000, scoped, tag = 'internal scratch']
  #allocation2 [shape = 'f32[4,8,1]{2,1,0:T(8,128)}', space=vmem, size = 0x4000, scoped, tag = 'scratch operand']
  #allocation3 [shape = 'f32[4,8,1]{2,1,0:T(8,128)}', space=vmem, size = 0x4000, scoped, tag = 'scratch operand']
  #allocation4 [shape = 'f32[4,8,8]{2,1,0:T(8,128)}', space=vmem, size = 0x4000, scoped, tag = 'scratch operand']
  %s0 = inlined_call_operand.vmem [shape: bf16[2,8,32], index: 0, kind: input, shape index: {}]
  %s1 = inlined_call_operand.vmem [shape: bf16[2,8,32], index: 1, kind: input, shape index: {}]
  %s2 = inlined_call_operand.vmem [shape: bf16[2,8,32], index: 2, kind: input, shape index: {}]
  %s3 = inlined_call_operand.vmem [shape: bf16[2,1,8], index: 3, kind: input, shape index: {}]
  %s4 = inlined_call_operand.vmem [shape: bf16[32,32], index: 4, kind: input, shape index: {}]
  %s5 = inlined_call_operand.vmem [shape: f32[1,32], index: 5, kind: input, shape index: {}]
  %s6 = inlined_call_operand.vmem [shape: f32[2,8,32], index: 6, kind: input, shape index: {}]
  %s7 = inlined_call_operand.vmem [shape: f32[2,8,32], index: 7, kind: output, shape index: {}]
  %s8 = sld [smem:[#allocation0]]
  $region69: #{decoder_layer.10} parent=0
    _
  %s10 = ssub.s32 1, %s8
  %s11 = scalar_select 0, %s10, %s8
  loop: start=0, step=1, limit=4
  $region2: #{decoder_layer.10} parent=0 // loop_pre_header
    _
  $region3: #{decoder_layer.10} parent=0 // loop_header
    %s13 = sphi 0, %s17
    %p14 = scmp.ge.s32.totalorder %s13, 4
    %s20 = sphi 0, %s39
    %s21 = sphi 0, %s35
    %s22 = sphi 0, %s31
    %s23 = sphi 0, %s20
    %s24 = sphi 0, %s21
    %s25 = sphi 0, %s22
    %s26 = sphi 0, %s23
    %s27 = sphi 0, %s24
    %s28 = sphi 0, %s25
    %s44 = sphi 0, %s46
    %s47 = sphi 0, %s44
    %s48 = sphi 0, %s47
    %s64 = sphi 0, %s48
    %s72 = sphi 0, %s74
    %s75 = sphi 0, %s72
    %s76 = sphi 0, %s75
    %s92 = sphi 0, %s76
    %s100 = sphi 0, %s102
    %s103 = sphi 0, %s100
    %s104 = sphi 0, %s103
    %s120 = sphi 0, %s104
    %s128 = sphi 0, %s130
    %s131 = sphi 0, %s128
    %s132 = sphi 0, %s131
    %s148 = sphi 0, %s132
    %s152 = sphi 0, %s152
    %s154 = sphi 0, %s152
    %s155 = sphi 0, %s154
    %s169 = sphi 0, %s155
    %s173 = sphi 0, %s173
    %s175 = sphi 0, %s173
    %s176 = sphi 0, %s175
    %s190 = sphi 0, %s176
    %s198 = sphi 0, %s200
    %s201 = sphi 0, %s198
    %s202 = sphi 0, %s201
    %s218 = sphi 0, %s202
    %s226 = sphi 0, %s228
    %s229 = sphi 0, %s226
    %s230 = sphi 0, %s229
    %s246 = sphi 0, %s230
  $region4: #{decoder_layer.10} parent=0 // loop_header_branch
    %16 = sbr.rel (%p14) target = $region8
  $region5: #{decoder_layer.10} parent=0 // loop_body
    %s18 = ssub.s32 %s13, 1
    %s19 = ssub.s32 %s13, 2
    %s29 = sadd.s32 1, %s22
    %p30 = scmp.ge.s32.totalorder %s29, 1
    %s31 = scalar_select %p30, 0, %s29
    %s32 = sadd.s32 1, %s21
    %s33 = scalar_select %p30, %s32, %s21
    %p34 = scmp.ge.s32.totalorder %s33, 1
    %s35 = scalar_select %p34, 0, %s33
    %s36 = sadd.s32 1, %s20
    %s37 = scalar_select %p34, %s36, %s20
    %p38 = scmp.ge.s32.totalorder %s37, 2
    %s39 = scalar_select %p38, 0, %s37
    %s40 = ssub.s32 %s20, %s39
    %s41 = ssub.s32 %s21, %s35
    %s42 = sor.u32 %s40, %s41
    %p43 = scmp.eq.s32.totalorder %s42, 0
    %s45 = sadd.s32 %s44, 1
    %s46 = scalar_select %p43, %s44, %s45
    %p49 = pneg %p43
    %p50 = scmp.eq.s32.totalorder %s13, 1
    %p51 = por %p49, %p50
    %p52 = scmp.ne.s32.totalorder %s44, %s47
    %p53 = scmp.eq.s32.totalorder %s13, 0
    %p54 = por %p52, %p53
    %p55 = scmp.ne.s32.totalorder %s44, %s47
    %p56 = scmp.eq.s32.totalorder %s18, 1
    %p57 = por %p55, %p56
    %p58 = scmp.ne.s32.totalorder %s47, %s48
    %p59 = scmp.eq.s32.totalorder %s18, 0
    %p60 = por %p58, %p59
    %p61 = scmp.ne.s32.totalorder %s47, %s48
    %p62 = scmp.eq.s32.totalorder %s19, 1
    %p63 = por %p61, %p62
    %p65 = scmp.ne.s32.totalorder %s48, %s64
    %p66 = scmp.eq.s32.totalorder %s19, 0
    %p67 = por %p65, %p66
    %s68 = ssub.s32 %s20, %s39
    %s69 = ssub.s32 %s22, %s31
    %s70 = sor.u32 %s68, %s69
    %p71 = scmp.eq.s32.totalorder %s70, 0
    %s73 = sadd.s32 %s72, 1
    %s74 = scalar_select %p71, %s72, %s73
    %p77 = pneg %p71
    %p78 = scmp.eq.s32.totalorder %s13, 1
    %p79 = por %p77, %p78
    %p80 = scmp.ne.s32.totalorder %s72, %s75
    %p81 = scmp.eq.s32.totalorder %s13, 0
    %p82 = por %p80, %p81
    %p83 = scmp.ne.s32.totalorder %s72, %s75
    %p84 = scmp.eq.s32.totalorder %s18, 1
    %p85 = por %p83, %p84
    %p86 = scmp.ne.s32.totalorder %s75, %s76
    %p87 = scmp.eq.s32.totalorder %s18, 0
    %p88 = por %p86, %p87
    %p89 = scmp.ne.s32.totalorder %s75, %s76
    %p90 = scmp.eq.s32.totalorder %s19, 1
    %p91 = por %p89, %p90
    %p93 = scmp.ne.s32.totalorder %s76, %s92
    %p94 = scmp.eq.s32.totalorder %s19, 0
    %p95 = por %p93, %p94
    %s96 = ssub.s32 %s20, %s39
    %s97 = ssub.s32 %s22, %s31
    %s98 = sor.u32 %s96, %s97
    %p99 = scmp.eq.s32.totalorder %s98, 0
    %s101 = sadd.s32 %s100, 1
    %s102 = scalar_select %p99, %s100, %s101
    %p105 = pneg %p99
    %p106 = scmp.eq.s32.totalorder %s13, 1
    %p107 = por %p105, %p106
    %p108 = scmp.ne.s32.totalorder %s100, %s103
    %p109 = scmp.eq.s32.totalorder %s13, 0
    %p110 = por %p108, %p109
    %p111 = scmp.ne.s32.totalorder %s100, %s103
    %p112 = scmp.eq.s32.totalorder %s18, 1
    %p113 = por %p111, %p112
    %p114 = scmp.ne.s32.totalorder %s103, %s104
    %p115 = scmp.eq.s32.totalorder %s18, 0
    %p116 = por %p114, %p115
    %p117 = scmp.ne.s32.totalorder %s103, %s104
    %p118 = scmp.eq.s32.totalorder %s19, 1
    %p119 = por %p117, %p118
    %p121 = scmp.ne.s32.totalorder %s104, %s120
    %p122 = scmp.eq.s32.totalorder %s19, 0
    %p123 = por %p121, %p122
    %s124 = ssub.s32 %s20, %s39
    %s125 = ssub.s32 %s22, %s31
    %s126 = sor.u32 %s124, %s125
    %p127 = scmp.eq.s32.totalorder %s126, 0
    %s129 = sadd.s32 %s128, 1
    %s130 = scalar_select %p127, %s128, %s129
    %p133 = pneg %p127
    %p134 = scmp.eq.s32.totalorder %s13, 1
    %p135 = por %p133, %p134
    %p136 = scmp.ne.s32.totalorder %s128, %s131
    %p137 = scmp.eq.s32.totalorder %s13, 0
    %p138 = por %p136, %p137
    %p139 = scmp.ne.s32.totalorder %s128, %s131
    %p140 = scmp.eq.s32.totalorder %s18, 1
    %p141 = por %p139, %p140
    %p142 = scmp.ne.s32.totalorder %s131, %s132
    %p143 = scmp.eq.s32.totalorder %s18, 0
    %p144 = por %p142, %p143
    %p145 = scmp.ne.s32.totalorder %s131, %s132
    %p146 = scmp.eq.s32.totalorder %s19, 1
    %p147 = por %p145, %p146
    %p149 = scmp.ne.s32.totalorder %s132, %s148
    %p150 = scmp.eq.s32.totalorder %s19, 0
    %p151 = por %p149, %p150
    %s153 = sadd.s32 %s152, 1
    %p156 = scmp.eq.s32.totalorder %s13, 1
    %p157 = scmp.ne.s32.totalorder %s152, %s154
    %p158 = scmp.eq.s32.totalorder %s13, 0
    %p159 = por %p157, %p158
    %p160 = scmp.ne.s32.totalorder %s152, %s154
    %p161 = scmp.eq.s32.totalorder %s18, 1
    %p162 = por %p160, %p161
    %p163 = scmp.ne.s32.totalorder %s154, %s155
    %p164 = scmp.eq.s32.totalorder %s18, 0
    %p165 = por %p163, %p164
    %p166 = scmp.ne.s32.totalorder %s154, %s155
    %p167 = scmp.eq.s32.totalorder %s19, 1
    %p168 = por %p166, %p167
    %p170 = scmp.ne.s32.totalorder %s155, %s169
    %p171 = scmp.eq.s32.totalorder %s19, 0
    %p172 = por %p170, %p171
    %s174 = sadd.s32 %s173, 1
    %p177 = scmp.eq.s32.totalorder %s13, 1
    %p178 = scmp.ne.s32.totalorder %s173, %s175
    %p179 = scmp.eq.s32.totalorder %s13, 0
    %p180 = por %p178, %p179
    %p181 = scmp.ne.s32.totalorder %s173, %s175
    %p182 = scmp.eq.s32.totalorder %s18, 1
    %p183 = por %p181, %p182
    %p184 = scmp.ne.s32.totalorder %s175, %s176
    %p185 = scmp.eq.s32.totalorder %s18, 0
    %p186 = por %p184, %p185
    %p187 = scmp.ne.s32.totalorder %s175, %s176
    %p188 = scmp.eq.s32.totalorder %s19, 1
    %p189 = por %p187, %p188
    %p191 = scmp.ne.s32.totalorder %s176, %s190
    %p192 = scmp.eq.s32.totalorder %s19, 0
    %p193 = por %p191, %p192
    %s194 = ssub.s32 %s20, %s39
    %s195 = ssub.s32 %s21, %s35
    %s196 = sor.u32 %s194, %s195
    %p197 = scmp.eq.s32.totalorder %s196, 0
    %s199 = sadd.s32 %s198, 1
    %s200 = scalar_select %p197, %s198, %s199
    %p203 = pneg %p197
    %p204 = scmp.eq.s32.totalorder %s13, 1
    %p205 = por %p203, %p204
    %p206 = scmp.ne.s32.totalorder %s198, %s201
    %p207 = scmp.eq.s32.totalorder %s13, 0
    %p208 = por %p206, %p207
    %p209 = scmp.ne.s32.totalorder %s198, %s201
    %p210 = scmp.eq.s32.totalorder %s18, 1
    %p211 = por %p209, %p210
    %p212 = scmp.ne.s32.totalorder %s201, %s202
    %p213 = scmp.eq.s32.totalorder %s18, 0
    %p214 = por %p212, %p213
    %p215 = scmp.ne.s32.totalorder %s201, %s202
    %p216 = scmp.eq.s32.totalorder %s19, 1
    %p217 = por %p215, %p216
    %p219 = scmp.ne.s32.totalorder %s202, %s218
    %p220 = scmp.eq.s32.totalorder %s19, 0
    %p221 = por %p219, %p220
    %s222 = ssub.s32 %s20, %s39
    %s223 = ssub.s32 %s21, %s35
    %s224 = sor.u32 %s222, %s223
    %p225 = scmp.eq.s32.totalorder %s224, 0
    %s227 = sadd.s32 %s226, 1
    %s228 = scalar_select %p225, %s226, %s227
    %p231 = pneg %p225
    %p232 = scmp.eq.s32.totalorder %s13, 1
    %p233 = por %p231, %p232
    %p234 = scmp.ne.s32.totalorder %s226, %s229
    %p235 = scmp.eq.s32.totalorder %s13, 0
    %p236 = por %p234, %p235
    %p237 = scmp.ne.s32.totalorder %s226, %s229
    %p238 = scmp.eq.s32.totalorder %s18, 1
    %p239 = por %p237, %p238
    %p240 = scmp.ne.s32.totalorder %s229, %s230
    %p241 = scmp.eq.s32.totalorder %s18, 0
    %p242 = por %p240, %p241
    %p243 = scmp.ne.s32.totalorder %s229, %s230
    %p244 = scmp.eq.s32.totalorder %s19, 1
    %p245 = por %p243, %p244
    %p247 = scmp.ne.s32.totalorder %s230, %s246
    %p248 = scmp.eq.s32.totalorder %s19, 0
    %p249 = por %p247, %p248
    %p250 = scmp.le.s32.totalorder 1, %s13
    %p251 = scmp.lt.s32.totalorder %s13, 3
    %p252 = pnand %p250, %p251
    %p253 = pneg %p252
    // Predicated region
    $region9: #{decoder_layer.10} parent=5 // pred_check
      _
    $region10: #{decoder_layer.10} parent=5 // pred_check_branch
      %255 = sbr.rel (%p252) target = $region12
    $region11: #{decoder_layer.10} parent=5 // pred_region
      %s256 = ssub.s32 %s13, 1
      // Predicated region
      $region13: #{decoder_layer.10} parent=11 // pred_check
        %p257 = pneg %p165
      $region14: #{decoder_layer.10} parent=11 // pred_check_branch
        %259 = sbr.rel (%p257) target = $region16
      $region15: #{decoder_layer.10} parent=11 // pred_region
        _
      $region16: #{decoder_layer.10} parent=11 // pred_fallthru
        _
      // Predicated region
      $region17: #{decoder_layer.10} parent=11 // pred_check
        %p260 = pneg %p186
      $region18: #{decoder_layer.10} parent=11 // pred_check_branch
        %262 = sbr.rel (%p260) target = $region20
      $region19: #{decoder_layer.10} parent=11 // pred_region
        _
      $region20: #{decoder_layer.10} parent=11 // pred_fallthru
        _
    $region12: #{decoder_layer.10} parent=5 // pred_fallthru
      _
    %p263 = scmp.lt.s32.totalorder %s13, 2
    // Predicated region
    $region21: #{decoder_layer.10} parent=5 // pred_check
      %p264 = pneg %p263
    $region22: #{decoder_layer.10} parent=5 // pred_check_branch
      %266 = sbr.rel (%p264) target = $region24
    $region23: #{decoder_layer.10} parent=5 // pred_region
      // Predicated region
      $region25: #{decoder_layer.10} parent=23 // pred_check
        %p267 = pneg %p54
      $region26: #{decoder_layer.10} parent=23 // pred_check_branch
        %269 = sbr.rel (%p267) target = $region28
      $region27: #{decoder_layer.10} parent=23 // pred_region
        %p270 = scmp.lt.s32.totalorder %s20, 1
        %s271 = scalar_select %p270, %s20, 1
        %p272 = scmp.lt.s32.totalorder %s21, 0
        %s273 = scalar_select %p272, %s21, 0
        %s274 = sadd.s32 %s273, %s271
        %s275 = smul.addr %s274, 4
        %s276 = scalar_lea.vmem %s0, %s275
      $region28: #{decoder_layer.10} parent=23 // pred_fallthru
        _
      // Predicated region
      $region29: #{decoder_layer.10} parent=23 // pred_check
        %p277 = pneg %p82
      $region30: #{decoder_layer.10} parent=23 // pred_check_branch
        %279 = sbr.rel (%p277) target = $region32
      $region31: #{decoder_layer.10} parent=23 // pred_region
        %p280 = scmp.lt.s32.totalorder %s20, 1
        %s281 = scalar_select %p280, %s20, 1
        %p282 = scmp.lt.s32.totalorder %s22, 0
        %s283 = scalar_select %p282, %s22, 0
        %s284 = sadd.s32 %s283, %s281
        %s285 = smul.addr %s284, 4
        %s286 = scalar_lea.vmem %s1, %s285
      $region32: #{decoder_layer.10} parent=23 // pred_fallthru
        _
      // Predicated region
      $region33: #{decoder_layer.10} parent=23 // pred_check
        %p287 = pneg %p110
      $region34: #{decoder_layer.10} parent=23 // pred_check_branch
        %289 = sbr.rel (%p287) target = $region36
      $region35: #{decoder_layer.10} parent=23 // pred_region
        %p290 = scmp.lt.s32.totalorder %s20, 1
        %s291 = scalar_select %p290, %s20, 1
        %p292 = scmp.lt.s32.totalorder %s22, 0
        %s293 = scalar_select %p292, %s22, 0
        %s294 = sadd.s32 %s293, %s291
        %s295 = smul.addr %s294, 4
        %s296 = scalar_lea.vmem %s2, %s295
      $region36: #{decoder_layer.10} parent=23 // pred_fallthru
        _
      // Predicated region
      $region37: #{decoder_layer.10} parent=23 // pred_check
        %p297 = pneg %p138
      $region38: #{decoder_layer.10} parent=23 // pred_check_branch
        %299 = sbr.rel (%p297) target = $region40
      $region39: #{decoder_layer.10} parent=23 // pred_region
        %p300 = scmp.lt.s32.totalorder %s20, 1
        %s301 = scalar_select %p300, %s20, 1
        %p302 = scmp.lt.s32.totalorder %s22, 0
        %s303 = scalar_select %p302, %s22, 0
        %s304 = sadd.s32 %s303, %s301
        %s305 = scalar_lea.vmem %s3, %s304
      $region40: #{decoder_layer.10} parent=23 // pred_fallthru
        _
      // Predicated region
      $region41: #{decoder_layer.10} parent=23 // pred_check
        %p306 = pneg %p208
      $region42: #{decoder_layer.10} parent=23 // pred_check_branch
        %308 = sbr.rel (%p306) target = $region44
      $region43: #{decoder_layer.10} parent=23 // pred_region
        %p309 = scmp.lt.s32.totalorder %s20, 1
        %s310 = scalar_select %p309, %s20, 1
        %p311 = scmp.lt.s32.totalorder %s21, 0
        %s312 = scalar_select %p311, %s21, 0
        %s313 = sadd.s32 %s312, %s310
        %s314 = smul.addr %s313, 8
        %s315 = scalar_lea.vmem %s6, %s314
      $region44: #{decoder_layer.10} parent=23 // pred_fallthru
        _
    $region24: #{decoder_layer.10} parent=5 // pred_fallthru
      _
    %p316 = scmp.le.s32.totalorder 1, %s13
    %p317 = scmp.lt.s32.totalorder %s13, 3
    %p318 = pnand %p316, %p317
    %p319 = pneg %p318
    // Predicated region
    $region45: #{decoder_layer.10} parent=5 // pred_check
      _
    $region46: #{decoder_layer.10} parent=5 // pred_check_branch
      %321 = sbr.rel (%p318) target = $region48
    $region47: #{decoder_layer.10} parent=5 // pred_region
      %s322 = ssub.s32 %s13, 1
      %p323 = scmp.lt.s32.totalorder %s23, 1
      %s324 = scalar_select %p323, %s23, 1
      %p325 = scmp.lt.s32.totalorder %s24, 0
      %s326 = scalar_select %p325, %s24, 0
      %s327 = sadd.s32 %s326, %s324
      %s328 = smul.addr %s327, 4
      %s329 = scalar_lea.vmem %s0, %s328
      %p330 = pneg %p60
      %p331 = pneg %p57
      %p332 = scmp.lt.s32.totalorder %s23, 1
      %s333 = scalar_select %p332, %s23, 1
      %p334 = scmp.lt.s32.totalorder %s25, 0
      %s335 = scalar_select %p334, %s25, 0
      %s336 = sadd.s32 %s335, %s333
      %s337 = smul.addr %s336, 4
      %s338 = scalar_lea.vmem %s1, %s337
      %p339 = pneg %p88
      %p340 = pneg %p85
      %p341 = scmp.lt.s32.totalorder %s23, 1
      %s342 = scalar_select %p341, %s23, 1
      %p343 = scmp.lt.s32.totalorder %s25, 0
      %s344 = scalar_select %p343, %s25, 0
      %s345 = sadd.s32 %s344, %s342
      %s346 = smul.addr %s345, 4
      %s347 = scalar_lea.vmem %s2, %s346
      %p348 = pneg %p116
      %p349 = pneg %p113
      %p350 = scmp.lt.s32.totalorder %s23, 1
      %s351 = scalar_select %p350, %s23, 1
      %p352 = scmp.lt.s32.totalorder %s25, 0
      %s353 = scalar_select %p352, %s25, 0
      %s354 = sadd.s32 %s353, %s351
      %s355 = scalar_lea.vmem %s3, %s354
      %p356 = pneg %p144
      %p357 = pneg %p141
      %p358 = pneg %p165
      %p359 = pneg %p162
      %p360 = pneg %p186
      %p361 = pneg %p183
      %p362 = scmp.lt.s32.totalorder %s23, 1
      %s363 = scalar_select %p362, %s23, 1
      %p364 = scmp.lt.s32.totalorder %s24, 0
      %s365 = scalar_select %p364, %s24, 0
      %s366 = sadd.s32 %s365, %s363
      %s367 = smul.addr %s366, 8
      %s368 = scalar_lea.vmem %s6, %s367
      %p369 = pneg %p214
      %p370 = pneg %p211
      %p371 = pneg %p242
      %p372 = pneg %p239
      %p373 = scmp.lt.s32.totalorder %s23, 1
      %s374 = scalar_select %p373, %s23, 1
      %p375 = scmp.lt.s32.totalorder %s24, 0
      %s376 = scalar_select %p375, %s24, 0
      %s377 = sadd.s32 %s376, %s374
      %s378 = smul.addr %s377, 8
      %s379 = scalar_lea.vmem %s7, %s378
      %p380 = scmp.lt.s32.totalorder %s23, 1
      %s381 = scalar_select %p380, %s23, 1
      %p382 = scmp.lt.s32.totalorder %s24, 0
      %s383 = scalar_select %p382, %s24, 0
      %s384 = sadd.s32 %s383, %s381
      %s385 = smul.addr %s384, 4
      %s386 = scalar_lea.vmem %s0, %s385
      %p387 = scmp.lt.s32.totalorder %s23, 1
      %s388 = scalar_select %p387, %s23, 1
      %p389 = scmp.lt.s32.totalorder %s25, 0
      %s390 = scalar_select %p389, %s25, 0
      %s391 = sadd.s32 %s390, %s388
      %s392 = smul.addr %s391, 4
      %s393 = scalar_lea.vmem %s1, %s392
      %p394 = scmp.lt.s32.totalorder %s23, 1
      %s395 = scalar_select %p394, %s23, 1
      %p396 = scmp.lt.s32.totalorder %s25, 0
      %s397 = scalar_select %p396, %s25, 0
      %s398 = sadd.s32 %s397, %s395
      %s399 = smul.addr %s398, 4
      %s400 = scalar_lea.vmem %s2, %s399
      %p401 = scmp.lt.s32.totalorder %s23, 1
      %s402 = scalar_select %p401, %s23, 1
      %p403 = scmp.lt.s32.totalorder %s25, 0
      %s404 = scalar_select %p403, %s25, 0
      %s405 = sadd.s32 %s404, %s402
      %s406 = scalar_lea.vmem %s3, %s405
      %p407 = scmp.lt.s32.totalorder %s23, 1
      %s408 = scalar_select %p407, %s23, 1
      %p409 = scmp.lt.s32.totalorder %s24, 0
      %s410 = scalar_select %p409, %s24, 0
      %s411 = sadd.s32 %s410, %s408
      %s412 = smul.addr %s411, 8
      %s413 = scalar_lea.vmem %s6, %s412
      %p414 = scmp.lt.s32.totalorder %s23, 1
      %s415 = scalar_select %p414, %s23, 1
      %p416 = scmp.lt.s32.totalorder %s24, 0
      %s417 = scalar_select %p416, %s24, 0
      %s418 = sadd.s32 %s417, %s415
      %s419 = smul.addr %s418, 8
      %s420 = scalar_lea.vmem %s7, %s419
      %p422 = scmp.eq.s32.totalorder %s25, 0
      // Predicated region
      $region49: #{decoder_layer.10} parent=47 // pred_check
        %p423 = pneg %p422
      $region50: #{decoder_layer.10} parent=47 // pred_check_branch
        %425 = sbr.rel (%p423) target = $region52
      $region51: #{decoder_layer.10} parent=47 // pred_region
        %vm426 = vcmask 7168
        %427 = vst.msk [vmem:[#allocation2] sm:$0xff] %vm426, -inf
        %428 = vst.msk [vmem:[#allocation2 + $0x8] sm:$0xff] %vm426, -inf
        %429 = vst.msk [vmem:[#allocation2 + $0x10] sm:$0xff] %vm426, -inf
        %430 = vst.msk [vmem:[#allocation2 + $0x18] sm:$0xff] %vm426, -inf
        %431 = vst.msk [vmem:[#allocation3] sm:$0xff] %vm426, 0.0
        %432 = vst.msk [vmem:[#allocation3 + $0x8] sm:$0xff] %vm426, 0.0
        %433 = vst.msk [vmem:[#allocation3 + $0x10] sm:$0xff] %vm426, 0.0
        %434 = vst.msk [vmem:[#allocation3 + $0x18] sm:$0xff] %vm426, 0.0
        %vm435 = vcmask 64512
        %436 = vst.msk [vmem:[#allocation4] sm:$0xff] %vm435, 0.0
        %437 = vst.msk [vmem:[#allocation4 + $0x8] sm:$0xff] %vm435, 0.0
        %438 = vst.msk [vmem:[#allocation4 + $0x10] sm:$0xff] %vm435, 0.0
        %439 = vst.msk [vmem:[#allocation4 + $0x18] sm:$0xff] %vm435, 0.0
      $region52: #{decoder_layer.10} parent=47 // pred_fallthru
        _
      %v440 = vld [vmem:[%s386] sm:$0xf]
      %v441 = vld [vmem:[%s393] sm:$0xf]
      %v442 = vld [vmem:[%s400] sm:$0xf]
      %v443 = vld [vmem:[%s406] sm:$0x1]
      %vm444 = vcmask 64512
      %v446 = vsel %vm444, %v440, 0
      %v449 = vsel %vm444, %v441, 0
      %451 = vmatpush.bf16.xpose.msra.mxu0 0
      %452 = vmatpush.bf16.xpose.msra.mxu0 0
      %453 = vmatpush.bf16.xpose.msra.mxu0 0
      %454 = vmatpush.bf16.xpose.msra.mxu0 0
      %455 = vmatpush.bf16.xpose.msra.mxu0 0
      %456 = vmatpush.bf16.xpose.msra.mxu0 0
      %457 = vmatpush.bf16.xpose.msra.mxu0 0
      %458 = vmatpush.bf16.xpose.msra.mxu0 %v449
      %459 = vmatmul.bf16.gmra.mxu0 %v446
      %v460 = vpop.f32.mrf.mxu0
      %v461 = vadd.f32 0.0, %v460
      %v462 = vpop.f32.mrf.mxu0
      %463 = vdwg.mxu0
      %v464 = vmul.f32 %v461, 0.35355338
      %v465 = vunpack.c.l.bf16 %v443
      %vm466 = vcmp.eq.f32.partialorder %v465, 0.0
      %v467 = vsel %vm466, 1, 0
      %v468 = vperm.slane %v467, 0
      %vm469 = vcmp.eq.s32.totalorder %v468, 1
      %v470 = vsel %vm469, -1e+09, %v464
      %v471 = vld [vmem:[#allocation2] sm:$0xff]
      %v472 = vsel %vm444, %v470, -inf
      %473 = vmax.xlane.f32.xlu0 %v472
      %v474 = vpop.xlane.xlu0 %473
      %v475 = vmax.f32 %v471, %v474
      %v476 = vsub.f32 %v471, %v475
      %v477 = vmul.f32 %v476, 1.442695
      %v478 = vpow.pop %v477
      %480 = vset.pattern.permute.xlu0 0
      %481 = vperm.xlu0 %480, %v475
      %v482 = vpop.permute.xlu0 %481
      %v484 = vsub.f32 %v470, %v482
      %v485 = vmul.f32 %v484, 1.442695
      %v486 = vpow.pop %v485
      %v487 = vld [vmem:[#allocation3] sm:$0xff]
      %v488 = vmul.f32 %v478, %v487
      %v489 = vsel %vm444, %v486, 0.0
      %490 = vadd.xlane.f32.xlu0 %v489
      %v491 = vpop.xlane.xlu0 %490
      %v492 = vadd.f32 %v488, %v491
      %vm493 = vcmask 7168
      %494 = vst.msk [vmem:[#allocation3] sm:$0xff] %vm493, %v492
      %v495 = vpack.c.bf16 %v486, %v486
      %v497 = vsel %vm444, %v495, 0
      %vm499 = vcmask 1043456
      %v501 = vsel %vm499, %v442, 0
      %503 = vmatpush.bf16.msra.mxu0 0
      %504 = vmatpush.bf16.msra.mxu0 0
      %505 = vmatpush.bf16.msra.mxu0 0
      %506 = vmatpush.bf16.msra.mxu0 0
      %507 = vmatpush.bf16.msra.mxu0 0
      %508 = vmatpush.bf16.msra.mxu0 0
      %509 = vmatpush.bf16.msra.mxu0 0
      %510 = vmatpush.bf16.msra.mxu0 %v501
      %511 = vmatmul.bf16.gmra.mxu0 %v497
      %v512 = vpop.f32.mrf.mxu0
      %v513 = vadd.f32 0.0, %v512
      %v514 = vpop.f32.mrf.mxu0
      %515 = vdwg.mxu0
      %v516 = vld [vmem:[#allocation4] sm:$0xff]
      %518 = vset.pattern.permute.xlu0 0
      %519 = vperm.xlu0 %518, %v478
      %v520 = vpop.permute.xlu0 %519
      %v522 = vmul.f32 %v520, %v516
      %v523 = vadd.f32 %v522, %v513
      %524 = vst.msk [vmem:[#allocation4] sm:$0xff] %vm444, %v523
      %525 = vst.msk [vmem:[#allocation2] sm:$0xff] %vm493, %v475
      %v527 = vunpack.c.l.b16 %v440
      %v528 = vpack.c.b16 %v527, %v527
      %529 = vrot.lane.b32.xlu0 %v528, 120
      %v530 = vpop.permute.xlu0 %529
      %v532 = vunpack.c.l.b16 %v441
      %v533 = vpack.c.b16 %v532, %v532
      %534 = vrot.lane.b32.xlu0 %v533, 120
      %v535 = vpop.permute.xlu0 %534
      %v537 = vsel %vm444, %v530, 0
      %v540 = vsel %vm444, %v535, 0
      %542 = vmatpush.bf16.xpose.msra.mxu0 0
      %543 = vmatpush.bf16.xpose.msra.mxu0 0
      %544 = vmatpush.bf16.xpose.msra.mxu0 0
      %545 = vmatpush.bf16.xpose.msra.mxu0 0
      %546 = vmatpush.bf16.xpose.msra.mxu0 0
      %547 = vmatpush.bf16.xpose.msra.mxu0 0
      %548 = vmatpush.bf16.xpose.msra.mxu0 0
      %549 = vmatpush.bf16.xpose.msra.mxu0 %v540
      %550 = vmatmul.bf16.gmra.mxu0 %v537
      %v551 = vpop.f32.mrf.mxu0
      %v552 = vadd.f32 0.0, %v551
      %v553 = vpop.f32.mrf.mxu0
      %554 = vdwg.mxu0
      %v555 = vmul.f32 %v552, 0.35355338
      %v556 = vsel %vm469, -1e+09, %v555
      %s557 = scalar_lea.vmem [#allocation2], 8
      %v558 = vld [vmem:[%s557] sm:$0xff]
      %v559 = vsel %vm444, %v556, -inf
      %560 = vmax.xlane.f32.xlu0 %v559
      %v561 = vpop.xlane.xlu0 %560
      %v562 = vmax.f32 %v558, %v561
      %v563 = vsub.f32 %v558, %v562
      %v564 = vmul.f32 %v563, 1.442695
      %v565 = vpow.pop %v564
      %567 = vset.pattern.permute.xlu0 0
      %568 = vperm.xlu0 %567, %v562
      %v569 = vpop.permute.xlu0 %568
      %v571 = vsub.f32 %v556, %v569
      %v572 = vmul.f32 %v571, 1.442695
      %v573 = vpow.pop %v572
      %s574 = scalar_lea.vmem [#allocation3], 8
      %v575 = vld [vmem:[%s574] sm:$0xff]
      %v576 = vmul.f32 %v565, %v575
      %v577 = vsel %vm444, %v573, 0.0
      %578 = vadd.xlane.f32.xlu0 %v577
      %v579 = vpop.xlane.xlu0 %578
      %v580 = vadd.f32 %v576, %v579
      %581 = vst.msk [vmem:[%s574] sm:$0xff] %vm493, %v580
      %v582 = vpack.c.bf16 %v573, %v573
      %v584 = vunpack.c.l.b16 %v442
      %v585 = vpack.c.b16 %v584, %v584
      %586 = vrot.lane.b32.xlu0 %v585, 120
      %v587 = vpop.permute.xlu0 %586
      %v589 = vsel %vm444, %v582, 0
      %v592 = vsel %vm499, %v587, 0
      %594 = vmatpush.bf16.msra.mxu0 0
      %595 = vmatpush.bf16.msra.mxu0 0
      %596 = vmatpush.bf16.msra.mxu0 0
      %597 = vmatpush.bf16.msra.mxu0 0
      %598 = vmatpush.bf16.msra.mxu0 0
      %599 = vmatpush.bf16.msra.mxu0 0
      %600 = vmatpush.bf16.msra.mxu0 0
      %601 = vmatpush.bf16.msra.mxu0 %v592
      %602 = vmatmul.bf16.gmra.mxu0 %v589
      %v603 = vpop.f32.mrf.mxu0
      %v604 = vadd.f32 0.0, %v603
      %v605 = vpop.f32.mrf.mxu0
      %606 = vdwg.mxu0
      %s607 = scalar_lea.vmem [#allocation4], 8
      %v608 = vld [vmem:[%s607] sm:$0xff]
      %610 = vset.pattern.permute.xlu0 0
      %611 = vperm.xlu0 %610, %v565
      %v612 = vpop.permute.xlu0 %611
      %v614 = vmul.f32 %v612, %v608
      %v615 = vadd.f32 %v614, %v604
      %616 = vst.msk [vmem:[%s607] sm:$0xff] %vm444, %v615
      %617 = vst.msk [vmem:[%s557] sm:$0xff] %vm493, %v562
      %618 = vrot.lane.b32.xlu0 %v528, 112
      %v619 = vpop.permute.xlu0 %618
      %620 = vrot.lane.b32.xlu0 %v533, 112
      %v621 = vpop.permute.xlu0 %620
      %v623 = vsel %vm444, %v619, 0
      %v626 = vsel %vm444, %v621, 0
      %628 = vmatpush.bf16.xpose.msra.mxu0 0
      %629 = vmatpush.bf16.xpose.msra.mxu0 0
      %630 = vmatpush.bf16.xpose.msra.mxu0 0
      %631 = vmatpush.bf16.xpose.msra.mxu0 0
      %632 = vmatpush.bf16.xpose.msra.mxu0 0
      %633 = vmatpush.bf16.xpose.msra.mxu0 0
      %634 = vmatpush.bf16.xpose.msra.mxu0 0
      %635 = vmatpush.bf16.xpose.msra.mxu0 %v626
      %636 = vmatmul.bf16.gmra.mxu0 %v623
      %v637 = vpop.f32.mrf.mxu0
      %v638 = vadd.f32 0.0, %v637
      %v639 = vpop.f32.mrf.mxu0
      %640 = vdwg.mxu0
      %v641 = vmul.f32 %v638, 0.35355338
      %v642 = vsel %vm469, -1e+09, %v641
      %s643 = scalar_lea.vmem [#allocation2], 16
      %v644 = vld [vmem:[%s643] sm:$0xff]
      %v645 = vsel %vm444, %v642, -inf
      %646 = vmax.xlane.f32.xlu0 %v645
      %v647 = vpop.xlane.xlu0 %646
      %v648 = vmax.f32 %v644, %v647
      %v649 = vsub.f32 %v644, %v648
      %v650 = vmul.f32 %v649, 1.442695
      %v651 = vpow.pop %v650
      %653 = vset.pattern.permute.xlu0 0
      %654 = vperm.xlu0 %653, %v648
      %v655 = vpop.permute.xlu0 %654
      %v657 = vsub.f32 %v642, %v655
      %v658 = vmul.f32 %v657, 1.442695
      %v659 = vpow.pop %v658
      %s660 = scalar_lea.vmem [#allocation3], 16
      %v661 = vld [vmem:[%s660] sm:$0xff]
      %v662 = vmul.f32 %v651, %v661
      %v663 = vsel %vm444, %v659, 0.0
      %664 = vadd.xlane.f32.xlu0 %v663
      %v665 = vpop.xlane.xlu0 %664
      %v666 = vadd.f32 %v662, %v665
      %667 = vst.msk [vmem:[%s660] sm:$0xff] %vm493, %v666
      %v668 = vpack.c.bf16 %v659, %v659
      %669 = vrot.lane.b32.xlu0 %v585, 112
      %v670 = vpop.permute.xlu0 %669
      %v672 = vsel %vm444, %v668, 0
      %v675 = vsel %vm499, %v670, 0
      %677 = vmatpush.bf16.msra.mxu0 0
      %678 = vmatpush.bf16.msra.mxu0 0
      %679 = vmatpush.bf16.msra.mxu0 0
      %680 = vmatpush.bf16.msra.mxu0 0
      %681 = vmatpush.bf16.msra.mxu0 0
      %682 = vmatpush.bf16.msra.mxu0 0
      %683 = vmatpush.bf16.msra.mxu0 0
      %684 = vmatpush.bf16.msra.mxu0 %v675
      %685 = vmatmul.bf16.gmra.mxu0 %v672
      %v686 = vpop.f32.mrf.mxu0
      %v687 = vadd.f32 0.0, %v686
      %v688 = vpop.f32.mrf.mxu0
      %689 = vdwg.mxu0
      %s690 = scalar_lea.vmem [#allocation4], 16
      %v691 = vld [vmem:[%s690] sm:$0xff]
      %693 = vset.pattern.permute.xlu0 0
      %694 = vperm.xlu0 %693, %v651
      %v695 = vpop.permute.xlu0 %694
      %v697 = vmul.f32 %v695, %v691
      %v698 = vadd.f32 %v697, %v687
      %699 = vst.msk [vmem:[%s690] sm:$0xff] %vm444, %v698
      %700 = vst.msk [vmem:[%s643] sm:$0xff] %vm493, %v648
      %701 = vrot.lane.b32.xlu0 %v528, 104
      %v702 = vpop.permute.xlu0 %701
      %703 = vrot.lane.b32.xlu0 %v533, 104
      %v704 = vpop.permute.xlu0 %703
      %v706 = vsel %vm444, %v702, 0
      %v709 = vsel %vm444, %v704, 0
      %711 = vmatpush.bf16.xpose.msra.mxu0 0
      %712 = vmatpush.bf16.xpose.msra.mxu0 0
      %713 = vmatpush.bf16.xpose.msra.mxu0 0
      %714 = vmatpush.bf16.xpose.msra.mxu0 0
      %715 = vmatpush.bf16.xpose.msra.mxu0 0
      %716 = vmatpush.bf16.xpose.msra.mxu0 0
      %717 = vmatpush.bf16.xpose.msra.mxu0 0
      %718 = vmatpush.bf16.xpose.msra.mxu0 %v709
      %719 = vmatmul.bf16.gmra.mxu0 %v706
      %v720 = vpop.f32.mrf.mxu0
      %v721 = vadd.f32 0.0, %v720
      %v722 = vpop.f32.mrf.mxu0
      %723 = vdwg.mxu0
      %v724 = vmul.f32 %v721, 0.35355338
      %v725 = vsel %vm469, -1e+09, %v724
      %s726 = scalar_lea.vmem [#allocation2], 24
      %v727 = vld [vmem:[%s726] sm:$0xff]
      %v728 = vsel %vm444, %v725, -inf
      %729 = vmax.xlane.f32.xlu0 %v728
      %v730 = vpop.xlane.xlu0 %729
      %v731 = vmax.f32 %v727, %v730
      %v732 = vsub.f32 %v727, %v731
      %v733 = vmul.f32 %v732, 1.442695
      %v734 = vpow.pop %v733
      %736 = vset.pattern.permute.xlu0 0
      %737 = vperm.xlu0 %736, %v731
      %v738 = vpop.permute.xlu0 %737
      %v740 = vsub.f32 %v725, %v738
      %v741 = vmul.f32 %v740, 1.442695
      %v742 = vpow.pop %v741
      %s743 = scalar_lea.vmem [#allocation3], 24
      %v744 = vld [vmem:[%s743] sm:$0xff]
      %v745 = vmul.f32 %v734, %v744
      %v746 = vsel %vm444, %v742, 0.0
      %747 = vadd.xlane.f32.xlu0 %v746
      %v748 = vpop.xlane.xlu0 %747
      %v749 = vadd.f32 %v745, %v748
      %750 = vst.msk [vmem:[%s743] sm:$0xff] %vm493, %v749
      %v751 = vpack.c.bf16 %v742, %v742
      %752 = vrot.lane.b32.xlu0 %v585, 104
      %v753 = vpop.permute.xlu0 %752
      %v755 = vsel %vm444, %v751, 0
      %v758 = vsel %vm499, %v753, 0
      %760 = vmatpush.bf16.msra.mxu0 0
      %761 = vmatpush.bf16.msra.mxu0 0
      %762 = vmatpush.bf16.msra.mxu0 0
      %763 = vmatpush.bf16.msra.mxu0 0
      %764 = vmatpush.bf16.msra.mxu0 0
      %765 = vmatpush.bf16.msra.mxu0 0
      %766 = vmatpush.bf16.msra.mxu0 0
      %767 = vmatpush.bf16.msra.mxu0 %v758
      %768 = vmatmul.bf16.gmra.mxu0 %v755
      %v769 = vpop.f32.mrf.mxu0
      %v770 = vadd.f32 0.0, %v769
      %v771 = vpop.f32.mrf.mxu0
      %772 = vdwg.mxu0
      %s773 = scalar_lea.vmem [#allocation4], 24
      %v774 = vld [vmem:[%s773] sm:$0xff]
      %776 = vset.pattern.permute.xlu0 0
      %777 = vperm.xlu0 %776, %v734
      %v778 = vpop.permute.xlu0 %777
      %v780 = vmul.f32 %v778, %v774
      %v781 = vadd.f32 %v780, %v770
      %782 = vst.msk [vmem:[%s773] sm:$0xff] %vm444, %v781
      %783 = vst.msk [vmem:[%s726] sm:$0xff] %vm493, %v731
      // Predicated region
      $region53: #{decoder_layer.10} parent=47 // pred_check
        %p784 = pneg %p422
      $region54: #{decoder_layer.10} parent=47 // pred_check_branch
        %786 = sbr.rel (%p784) target = $region56
      $region55: #{decoder_layer.10} parent=47 // pred_region
        %v787 = vld [vmem:[#allocation4] sm:$0xff]
        %v788 = vld [vmem:[#allocation3] sm:$0xff]
        %v789 = vrcp.pop %v788
        %v790 = vmul.f32 %v788, %v789
        %v791 = vsub.f32 1.0, %v790
        %v792 = vmul.f32 %v789, %v791
        %v793 = vadd.f32 %v789, %v792
        %vm794 = vweird.f32 %v788
        %vm795 = vweird.f32 %v789
        %vm796 = vmor %vm794, %vm795
        %v797 = vsel %vm796, %v789, %v793
        %v798 = vand.u32 2147483647, %v788
        %vm799 = vcmp.eq.f32.partialorder %v798, 8.507059e+37
        %v800 = vand.u32 %v788, 2147483648
        %v801 = vor.u32 1.1754944e-38, %v800
        %v802 = vsel %vm799, %v801, %v797
        %804 = vset.pattern.permute.xlu0 0
        %805 = vperm.xlu0 %804, %v802
        %v806 = vpop.permute.xlu0 %805
        %v808 = vmul.f32 %v787, %v806
        %v809 = vld [vmem:[%s607] sm:$0xff]
        %v810 = vld [vmem:[%s574] sm:$0xff]
        %v811 = vrcp.pop %v810
        %v812 = vmul.f32 %v810, %v811
        %v813 = vsub.f32 1.0, %v812
        %v814 = vmul.f32 %v811, %v813
        %v815 = vadd.f32 %v811, %v814
        %vm816 = vweird.f32 %v810
        %vm817 = vweird.f32 %v811
        %vm818 = vmor %vm816, %vm817
        %v819 = vsel %vm818, %v811, %v815
        %v820 = vand.u32 2147483647, %v810
        %vm821 = vcmp.eq.f32.partialorder %v820, 8.507059e+37
        %v822 = vand.u32 %v810, 2147483648
        %v823 = vor.u32 1.1754944e-38, %v822
        %v824 = vsel %vm821, %v823, %v819
        %826 = vset.pattern.permute.xlu0 0
        %827 = vperm.xlu0 %826, %v824
        %v828 = vpop.permute.xlu0 %827
        %v830 = vmul.f32 %v809, %v828
        %v831 = vld [vmem:[%s690] sm:$0xff]
        %v832 = vld [vmem:[%s660] sm:$0xff]
        %v833 = vrcp.pop %v832
        %v834 = vmul.f32 %v832, %v833
        %v835 = vsub.f32 1.0, %v834
        %v836 = vmul.f32 %v833, %v835
        %v837 = vadd.f32 %v833, %v836
        %vm838 = vweird.f32 %v832
        %vm839 = vweird.f32 %v833
        %vm840 = vmor %vm838, %vm839
        %v841 = vsel %vm840, %v833, %v837
        %v842 = vand.u32 2147483647, %v832
        %vm843 = vcmp.eq.f32.partialorder %v842, 8.507059e+37
        %v844 = vand.u32 %v832, 2147483648
        %v845 = vor.u32 1.1754944e-38, %v844
        %v846 = vsel %vm843, %v845, %v841
        %848 = vset.pattern.permute.xlu0 0
        %849 = vperm.xlu0 %848, %v846
        %v850 = vpop.permute.xlu0 %849
        %v852 = vmul.f32 %v831, %v850
        %v853 = vld [vmem:[%s773] sm:$0xff]
        %v854 = vld [vmem:[%s743] sm:$0xff]
        %v855 = vrcp.pop %v854
        %v856 = vmul.f32 %v854, %v855
        %v857 = vsub.f32 1.0, %v856
        %v858 = vmul.f32 %v855, %v857
        %v859 = vadd.f32 %v855, %v858
        %vm860 = vweird.f32 %v854
        %vm861 = vweird.f32 %v855
        %vm862 = vmor %vm860, %vm861
        %v863 = vsel %vm862, %v855, %v859
        %v864 = vand.u32 2147483647, %v854
        %vm865 = vcmp.eq.f32.partialorder %v864, 8.507059e+37
        %v866 = vand.u32 %v854, 2147483648
        %v867 = vor.u32 1.1754944e-38, %v866
        %v868 = vsel %vm865, %v867, %v863
        %870 = vset.pattern.permute.xlu0 0
        %871 = vperm.xlu0 %870, %v868
        %v872 = vpop.permute.xlu0 %871
        %v874 = vmul.f32 %v853, %v872
        %876 = vrot.lane.b32.xlu0 %v830, 8
        %v877 = vpop.permute.xlu0 %876
        %880 = vrot.lane.b32.xlu0 %v852, 16
        %v881 = vpop.permute.xlu0 %880
        %884 = vrot.lane.b32.xlu0 %v874, 24
        %v885 = vpop.permute.xlu0 %884
        %v887 = vsel %vm444, %v808, %v877
        %vm888 = vcmask 130048
        %v889 = vsel %vm888, %v887, %v881
        %vm890 = vcmask 195584
        %v891 = vsel %vm890, %v889, %v885
        %v892 = vpack.c.bf16 %v891, %v891
        %v893 = vld [vmem:[%s4] sm:$0xf]
        %v894 = vld [vmem:[%s4 + $0x4] sm:$0xf]
        %v895 = vld [vmem:[%s4 + $0x8] sm:$0xf]
        %v896 = vld [vmem:[%s4 + $0xc] sm:$0xf]
        %v897 = vld [vmem:[%s5] sm:$0x1]
        %v899 = vperm.slane %v897, 0
        %v905 = vunpack.c.l.b16 %v893
        %v906 = vunpack.c.l.b16 %v894
        %v907 = vunpack.c.l.b16 %v895
        %v908 = vunpack.c.l.b16 %v896
        %v909 = vpack.c.b16 %v906, %v905
        %v910 = vpack.c.b16 %v908, %v907
        %vm913 = vcmask 261120
        %v915 = vsel %vm913, %v892, 0
        %917 = vmatpush.bf16.msra.mxu0 0
        %918 = vmatpush.bf16.msra.mxu0 0
        %919 = vmatpush.bf16.msra.mxu0 0
        %920 = vmatpush.bf16.msra.mxu0 0
        %921 = vmatpush.bf16.msra.mxu0 0
        %922 = vmatpush.bf16.msra.mxu0 0
        %923 = vmatpush.bf16.msra.mxu0 %v910
        %924 = vmatpush.bf16.msra.mxu0 %v909
        %925 = vmatmul.bf16.gmra.mxu0 %v915
        %v926 = vpop.f32.mrf.mxu0
        %v927 = vadd.f32 %v899, %v926
        %v928 = vpop.f32.mrf.mxu0
        %929 = vdwg.mxu0
        %v930 = vld [vmem:[%s413] sm:$0xff]
        %v931 = vadd.f32 %v927, %v930
        %932 = vst.msk [vmem:[%s420] sm:$0xff] %vm913, %v931
      $region56: #{decoder_layer.10} parent=47 // pred_fallthru
        _
      %p933 = scmp.lt.s32.totalorder %s23, 1
      %s934 = scalar_select %p933, %s23, 1
      %p935 = scmp.lt.s32.totalorder %s24, 0
      %s936 = scalar_select %p935, %s24, 0
      %s937 = sadd.s32 %s936, %s934
      %s938 = smul.addr %s937, 8
      %s939 = scalar_lea.vmem %s7, %s938
      // Predicated region
      $region57: #{decoder_layer.10} parent=47 // pred_check
        %p940 = pneg %p239
      $region58: #{decoder_layer.10} parent=47 // pred_check_branch
        %942 = sbr.rel (%p940) target = $region60
      $region59: #{decoder_layer.10} parent=47 // pred_region
        _
      $region60: #{decoder_layer.10} parent=47 // pred_fallthru
        _
    $region48: #{decoder_layer.10} parent=5 // pred_fallthru
      _
    %p943 = scmp.le.s32.totalorder 2, %s13
    // Predicated region
    $region61: #{decoder_layer.10} parent=5 // pred_check
      %p944 = pneg %p943
    $region62: #{decoder_layer.10} parent=5 // pred_check_branch
      %946 = sbr.rel (%p944) target = $region64
    $region63: #{decoder_layer.10} parent=5 // pred_region
      %s947 = ssub.s32 %s13, 2
      // Predicated region
      $region65: #{decoder_layer.10} parent=63 // pred_check
        %p948 = pneg %p245
      $region66: #{decoder_layer.10} parent=63 // pred_check_branch
        %950 = sbr.rel (%p948) target = $region68
      $region67: #{decoder_layer.10} parent=63 // pred_region
        %p951 = scmp.lt.s32.totalorder %s26, 1
        %s952 = scalar_select %p951, %s26, 1
        %p953 = scmp.lt.s32.totalorder %s27, 0
        %s954 = scalar_select %p953, %s27, 0
        %s955 = sadd.s32 %s954, %s952
        %s956 = smul.addr %s955, 8
        %s957 = scalar_lea.vmem %s7, %s956
      $region68: #{decoder_layer.10} parent=63 // pred_fallthru
        _
    $region64: #{decoder_layer.10} parent=5 // pred_fallthru
      _
  $region6: #{decoder_layer.10} parent=0 // loop_footer
    %s17 = sadd.s32 1, %s13
  $region7: #{decoder_layer.10} parent=0 // loop_footer_branch
    %12 = sbr.rel target = $region3
  $region8: #{decoder_layer.10} parent=0 // loop_exit
    _

</llo_original>
